<compile_context>
chip_gen: v7x
topology: tpu7x:2x2x1
jax: 0.10.0
libtpu: 0.0.40
codegen_flags: <defaults>
</compile_context>

<pallas_src>
import functools

import numpy as np

import jax
import jax.numpy as jnp
from jax import lax
from jax.experimental import pallas as pl
from jax.experimental.pallas import tpu as pltpu


_MAX_OFF = 2   # largest |spatial offset| used by any branch (5x5 conv, pad=2)


# ---------------------------------------------------------------------------
# im2col builder: scatter the k*k shifted taps of a (Cin, H*W) activation into
# a (k*k*Cin, H*W) VMEM scratch so the conv becomes a single MXU matmul.
# ---------------------------------------------------------------------------
def _fill_im2col(im_ref, src_ref, mask_ref, row0, cin, k, pad, H, W):
    """im_ref[(di*k+dj)*cin + c, y*W + x] =
           src_ref[row0 + c, (y+di-pad)*W + (x+dj-pad)]   (0 outside the image)

    Shifts are static flat slices of the (C, H*W) source.  Column wrap-around
    at row boundaries is killed with precomputed per-offset column masks; the
    vertical out-of-range positions fall outside the copied flat range and stay
    at the scratch's zero fill (== conv zero padding)."""
    HW = H * W
    im_ref[...] = jnp.zeros(im_ref.shape, im_ref.dtype)
    for di in range(k):
        for dj in range(k):
            oy, ox = di - pad, dj - pad
            s = oy * W + ox
            lo, hi = max(0, -s), HW - max(0, s)
            src = src_ref[row0:row0 + cin, lo + s:hi + s]
            if ox != 0:
                src = src * mask_ref[ox + _MAX_OFF:ox + _MAX_OFF + 1, lo:hi]
            t = di * k + dj
            im_ref[t * cin:(t + 1) * cin, lo:hi] = src


# ---------------------------------------------------------------------------
# The fused Inception-block kernel (one grid step == one image).
# ---------------------------------------------------------------------------
def _inception_kernel(x_ref, mask_ref, wred_ref, bred_ref, w3_ref, b3_ref,
                      w5_ref, b5_ref, wp_ref, bp_ref, o_ref,
                      red_ref, im3_ref, im5_ref, pool_ref,
                      *, H, W, f1, f3r, f3, f5r, f5, fp):
    HW = H * W
    x = x_ref[0]                                         # (Cin, H*W) bf16

    # ---- fused 1x1 convs: [branch-1 | 3x3-reduce | 5x5-reduce] (bf16 MXU) --
    red = jnp.dot(wred_ref[...], x, preferred_element_type=jnp.float32)
    red = jnp.maximum(red + bred_ref[...], 0.0)          # (f1+f3r+f5r, HW) f32
    red_ref[...] = red
    o_ref[0, 0:f1, :] = red[0:f1, :].astype(o_ref.dtype)            # branch 1

    # ---- branch 2: 3x3 conv (pad 1) == one im2col matmul, K = 9*f3r --------
    _fill_im2col(im3_ref, red_ref, mask_ref, f1, f3r, 3, 1, H, W)
    y3 = jnp.dot(w3_ref[...].astype(jnp.float32), im3_ref[...],
                 preferred_element_type=jnp.float32)
    o_ref[0, f1:f1 + f3, :] = jnp.maximum(
        y3 + b3_ref[...], 0.0).astype(o_ref.dtype)

    # ---- branch 3: 5x5 conv (pad 2) == one im2col matmul, K = 25*f5r -------
    _fill_im2col(im5_ref, red_ref, mask_ref, f1 + f3r, f5r, 5, 2, H, W)
    y5 = jnp.dot(w5_ref[...].astype(jnp.float32), im5_ref[...],
                 preferred_element_type=jnp.float32)
    o_ref[0, f1 + f3:f1 + f3 + f5, :] = jnp.maximum(
        y5 + b5_ref[...], 0.0).astype(o_ref.dtype)

    # ---- branch 4: separable 3x3/s1/p1 max-pool + fused 1x1 projection -----
    neg = jnp.asarray(-jnp.inf, dtype=x.dtype)
    pool_ref[...] = x                                    # centre tap
    for ox in (-1, 1):                                   # pass 1: along W
        lo, hi = max(0, -ox), HW - max(0, ox)
        src = jnp.where(
            mask_ref[ox + _MAX_OFF:ox + _MAX_OFF + 1, lo:hi] > 0.0,
            x[:, lo + ox:hi + ox], neg)
        pool_ref[:, lo:hi] = jnp.maximum(pool_ref[:, lo:hi], src)
    m1 = pool_ref[...]
    for oy in (-1, 1):                                   # pass 2: along H
        s = oy * W
        lo, hi = max(0, -s), HW - max(0, s)
        pool_ref[:, lo:hi] = jnp.maximum(pool_ref[:, lo:hi],
                                         m1[:, lo + s:hi + s])
    yp = jnp.dot(wp_ref[...], pool_ref[...], preferred_element_type=jnp.float32)
    o_ref[0, f1 + f3 + f5:f1 + f3 + f5 + fp, :] = jnp.maximum(
        yp + bp_ref[...], 0.0).astype(o_ref.dtype)


# ---------------------------------------------------------------------------
# Parameters (deterministic synthetic init; shapes follow the PyTorch module).
# KxK weights are packed once as (Cout, k*k*Cin), row-major over (di, dj, cin),
# matching the kernel's im2col row order; the three 1x1 convs that share the
# block input are fused along Cout.  Matmul weights are bf16; biases f32.
# ---------------------------------------------------------------------------
def init_inception_params(key, cin, f1, f3r, f3, f5r, f5, fp):
    ks = jax.random.split(key, 12)

    def conv_w(k, co, kh, kw, ci):
        w = jax.random.normal(k, (co, kh, kw, ci), jnp.float32)
        return w * (2.0 / (kh * kw * ci)) ** 0.5

    def conv_b(k, co, fan_in):
        bound = (1.0 / fan_in) ** 0.5
        return jax.random.uniform(k, (co, 1), jnp.float32, -bound, bound)

    wb1 = conv_w(ks[0], f1, 1, 1, cin)
    wb2r = conv_w(ks[1], f3r, 1, 1, cin)
    wb2 = conv_w(ks[2], f3, 3, 3, f3r)
    wb3r = conv_w(ks[3], f5r, 1, 1, cin)
    wb3 = conv_w(ks[4], f5, 5, 5, f5r)
    wb4 = conv_w(ks[5], fp, 1, 1, cin)

    return {
        "w_red": jnp.concatenate(
            [wb1.reshape(f1, cin), wb2r.reshape(f3r, cin),
             wb3r.reshape(f5r, cin)], axis=0).astype(jnp.bfloat16),
        "b_red": jnp.concatenate(
            [conv_b(ks[6], f1, cin), conv_b(ks[7], f3r, cin),
             conv_b(ks[9], f5r, cin)], axis=0),
        "w3": wb2.reshape(f3, 9 * f3r).astype(jnp.bfloat16),
        "b3": conv_b(ks[8], f3, 9 * f3r),
        "w5": wb3.reshape(f5, 25 * f5r).astype(jnp.bfloat16),
        "b5": conv_b(ks[10], f5, 25 * f5r),
        "wp": wb4.reshape(fp, cin).astype(jnp.bfloat16),
        "bp": conv_b(ks[11], fp, cin),
    }


# ---------------------------------------------------------------------------
# Inception_block forward: NCHW in -> NCHW out, channel order
# [1x1 | 3x3 | 5x5 | pool-proj] (== torch.cat(dim=1)).  Single pallas_call.
# ---------------------------------------------------------------------------
def inception_block_forward(params, x_nchw, *, cfg):
    f1, f3r, f3, f5r, f5, fp = cfg
    N, cin, H, W = x_nchw.shape
    HW = H * W
    fred = f1 + f3r + f5r
    ctot = f1 + f3 + f5 + fp

    x = x_nchw.reshape(N, cin, HW).astype(jnp.bfloat16)

    # Column-validity masks for horizontal offsets -2..2 (trace-time constant):
    # masks[o + 2, y*W + x] = 1.0 iff 0 <= x + o < W.
    col = np.arange(HW) % W
    offs = np.arange(-_MAX_OFF, _MAX_OFF + 1)
    masks = ((col[None, :] + offs[:, None] >= 0) &
             (col[None, :] + offs[:, None] < W)).astype(np.float32)

    kernel = functools.partial(
        _inception_kernel, H=H, W=W,
        f1=f1, f3r=f3r, f3=f3, f5r=f5r, f5=f5, fp=fp)

    out = pl.pallas_call(
        kernel,
        out_shape=jax.ShapeDtypeStruct((N, ctot, HW), jnp.bfloat16),
        grid=(N,),
        in_specs=[
            pl.BlockSpec((1, cin, HW), lambda n: (n, 0, 0)),
            pl.BlockSpec((2 * _MAX_OFF + 1, HW), lambda n: (0, 0)),
            pl.BlockSpec((fred, cin), lambda n: (0, 0)),
            pl.BlockSpec((fred, 1), lambda n: (0, 0)),
            pl.BlockSpec((f3, 9 * f3r), lambda n: (0, 0)),
            pl.BlockSpec((f3, 1), lambda n: (0, 0)),
            pl.BlockSpec((f5, 25 * f5r), lambda n: (0, 0)),
            pl.BlockSpec((f5, 1), lambda n: (0, 0)),
            pl.BlockSpec((fp, cin), lambda n: (0, 0)),
            pl.BlockSpec((fp, 1), lambda n: (0, 0)),
        ],
        out_specs=pl.BlockSpec((1, ctot, HW), lambda n: (n, 0, 0)),
        scratch_shapes=[
            pltpu.VMEM((fred, HW), jnp.float32),       # fused 1x1 "reduce" out
            pltpu.VMEM((9 * f3r, HW), jnp.float32),    # im2col for 3x3 conv
            pltpu.VMEM((25 * f5r, HW), jnp.float32),   # im2col for 5x5 conv
            pltpu.VMEM((cin, HW), jnp.bfloat16),       # pooled activation
        ],
        compiler_params=pltpu.CompilerParams(
            dimension_semantics=("parallel",)),
    )(x, jnp.asarray(masks), params["w_red"], params["b_red"],
      params["w3"], params["b3"], params["w5"], params["b5"],
      params["wp"], params["bp"])

    return out.reshape(N, ctot, H, W).astype(jnp.float32)


# ---------------------------------------------------------------------------
# Pure-JAX reference (same bf16 weight/input quantization as the kernel path).
# ---------------------------------------------------------------------------
def _reference(params, x_nchw, cfg):
    f1, f3r, f3, f5r, f5, fp = cfg
    N, cin, H, W = x_nchw.shape
    x = jnp.transpose(x_nchw, (0, 2, 3, 1)).astype(jnp.bfloat16).astype(jnp.float32)

    def conv(xx, w_packed, b, k, pad, ci, co):
        w = w_packed.astype(jnp.float32).reshape(co, k, k, ci)
        w = jnp.transpose(w, (1, 2, 3, 0))             # -> HWIO
        y = lax.conv_general_dilated(
            xx, w, window_strides=(1, 1), padding=((pad, pad), (pad, pad)),
            dimension_numbers=("NHWC", "HWIO", "NHWC"),
            precision=lax.Precision.HIGHEST)
        return jnp.maximum(y + b.reshape(1, 1, 1, co), 0.0)

    red = conv(x, params["w_red"], params["b_red"], 1, 0, cin, f1 + f3r + f5r)
    br1 = red[..., :f1]
    t2 = red[..., f1:f1 + f3r]
    t3 = red[..., f1 + f3r:]

    br2 = conv(t2, params["w3"], params["b3"], 3, 1, f3r, f3)
    br3 = conv(t3, params["w5"], params["b5"], 5, 2, f5r, f5)

    xp = jnp.pad(x, ((0, 0), (1, 1), (1, 1), (0, 0)), constant_values=-jnp.inf)
    pooled = xp[:, 0:H, 0:W, :]
    for di in range(3):
        for dj in range(3):
            pooled = jnp.maximum(pooled, xp[:, di:di + H, dj:dj + W, :])
    pooled = pooled.astype(jnp.bfloat16).astype(jnp.float32)
    br4 = conv(pooled, params["wp"], params["bp"], 1, 0, cin, fp)

    out = jnp.concatenate([br1, br2, br3, br4], axis=-1)   # NHWC
    return jnp.transpose(out, (0, 3, 1, 2))                # NCHW


if __name__ == "__main__":
    key = jax.random.PRNGKey(0)
    k_in, k_par = jax.random.split(key)

    # Small shapes consistent with the module: batch=2, in_channels=32, 16x16.
    N, CIN, H, W = 2, 32, 16, 16
    F1, F3R, F3, F5R, F5, FP = 16, 16, 32, 8, 16, 16
    CFG = (F1, F3R, F3, F5R, F5, FP)

    x = jax.random.normal(k_in, (N, CIN, H, W), jnp.float32)
    params = init_inception_params(k_par, CIN, *CFG)

    fwd = jax.jit(functools.partial(inception_block_forward, cfg=CFG))
    out = jax.block_until_ready(fwd(params, x))

    assert out.shape == (N, F1 + F3 + F5 + FP, H, W), out.shape
    assert bool(jnp.all(jnp.isfinite(out)))

    ref = _reference(params, x, CFG)
    assert bool(jnp.allclose(out, ref, rtol=2e-2, atol=2e-2))

    print("KERNEL_OK")
</pallas_src>

<mosaic_0001>
module attributes {stable_mosaic.version = 11 : i64} {
  func.func @_inception_kernel(%arg0: i32, %arg1: memref<1x32x256xbf16, #tpu.memory_space<vmem>>, %arg2: memref<5x256xf32, #tpu.memory_space<vmem>>, %arg3: memref<40x32xbf16, #tpu.memory_space<vmem>>, %arg4: memref<40x1xf32, #tpu.memory_space<vmem>>, %arg5: memref<32x144xbf16, #tpu.memory_space<vmem>>, %arg6: memref<32x1xf32, #tpu.memory_space<vmem>>, %arg7: memref<16x200xbf16, #tpu.memory_space<vmem>>, %arg8: memref<16x1xf32, #tpu.memory_space<vmem>>, %arg9: memref<16x32xbf16, #tpu.memory_space<vmem>>, %arg10: memref<16x1xf32, #tpu.memory_space<vmem>>, %arg11: memref<1x80x256xbf16, #tpu.memory_space<vmem>>, %arg12: memref<40x256xf32, #tpu.memory_space<vmem>>, %arg13: memref<144x256xf32, #tpu.memory_space<vmem>>, %arg14: memref<200x256xf32, #tpu.memory_space<vmem>>, %arg15: memref<32x256xbf16, #tpu.memory_space<vmem>>) attributes {dimension_semantics = [#tpu.dimension_semantics<parallel>], iteration_bounds = array<i64: 2>, scalar_prefetch = 0 : i64, scratch_operands = 4 : i64, tpu.core_type = #tpu.core_type<tc>, window_params = [{transform_indices = @transform_0, window_bounds = array<i64: 1, 32, 256>}, {pipeline_mode = #tpu.pipeline_mode<synchronous>, transform_indices = @transform_1, window_bounds = array<i64: 5, 256>}, {pipeline_mode = #tpu.pipeline_mode<synchronous>, transform_indices = @transform_2, window_bounds = array<i64: 40, 32>}, {pipeline_mode = #tpu.pipeline_mode<synchronous>, transform_indices = @transform_3, window_bounds = array<i64: 40, 1>}, {pipeline_mode = #tpu.pipeline_mode<synchronous>, transform_indices = @transform_4, window_bounds = array<i64: 32, 144>}, {pipeline_mode = #tpu.pipeline_mode<synchronous>, transform_indices = @transform_5, window_bounds = array<i64: 32, 1>}, {pipeline_mode = #tpu.pipeline_mode<synchronous>, transform_indices = @transform_6, window_bounds = array<i64: 16, 200>}, {pipeline_mode = #tpu.pipeline_mode<synchronous>, transform_indices = @transform_7, window_bounds = array<i64: 16, 1>}, {pipeline_mode = #tpu.pipeline_mode<synchronous>, transform_indices = @transform_8, window_bounds = array<i64: 16, 32>}, {pipeline_mode = #tpu.pipeline_mode<synchronous>, transform_indices = @transform_9, window_bounds = array<i64: 16, 1>}, {transform_indices = @transform_10, window_bounds = array<i64: 1, 80, 256>}]} {
    %c0 = arith.constant 0 : index
    %c0_0 = arith.constant 0 : index
    %c0_1 = arith.constant 0 : index
    %0 = vector.load %arg1[%c0, %c0_0, %c0_1] : memref<1x32x256xbf16, #tpu.memory_space<vmem>>, vector<1x32x256xbf16>
    %1 = vector.shape_cast %0 : vector<1x32x256xbf16> to vector<32x256xbf16>
    %c0_2 = arith.constant 0 : index
    %c0_3 = arith.constant 0 : index
    %2 = vector.load %arg3[%c0_2, %c0_3] : memref<40x32xbf16, #tpu.memory_space<vmem>>, vector<40x32xbf16>
    %cst = arith.constant dense<0.000000e+00> : vector<40x256xf32>
    %3 = tpu.matmul %2, %1, %cst {dimension_numbers = #tpu.dot_dimension_numbers<[1], [0], [0], [1], [0, 0, 1, 1], [], []>} : vector<40x32xbf16>, vector<32x256xbf16>, vector<40x256xf32> -> vector<40x256xf32>
    %c0_4 = arith.constant 0 : index
    %c0_5 = arith.constant 0 : index
    %4 = vector.load %arg4[%c0_4, %c0_5] : memref<40x1xf32, #tpu.memory_space<vmem>>, vector<40x1xf32>
    %5 = vector.broadcast %4 : vector<40x1xf32> to vector<40x256xf32>
    %6 = arith.addf %3, %5 : vector<40x256xf32>
    %cst_6 = arith.constant 0.000000e+00 : f32
    %7 = vector.broadcast %cst_6 : f32 to vector<40x256xf32>
    %8 = arith.maximumf %6, %7 : vector<40x256xf32>
    %c0_7 = arith.constant 0 : index
    %c0_8 = arith.constant 0 : index
    %9 = vector.load %arg12[%c0_7, %c0_8] : memref<40x256xf32, #tpu.memory_space<vmem>>, vector<40x256xf32>
    tpu.vector_store %arg12[%c0_7, %c0_8], %8 {strides = array<i32>} : memref<40x256xf32, #tpu.memory_space<vmem>>, vector<40x256xf32>,
    %10 = vector.extract_strided_slice %8 {offsets = [0, 0], sizes = [16, 256], strides = [1, 1]} : vector<40x256xf32> to vector<16x256xf32>
    %11 = arith.truncf %10 : vector<16x256xf32> to vector<16x256xbf16>
    %c0_9 = arith.constant 0 : index
    %c0_10 = arith.constant 0 : index
    %c0_11 = arith.constant 0 : index
    %12 = vector.load %arg11[%c0_9, %c0_10, %c0_11] : memref<1x80x256xbf16, #tpu.memory_space<vmem>>, vector<1x16x256xbf16>
    %13 = vector.shape_cast %12 : vector<1x16x256xbf16> to vector<16x256xbf16>
    %14 = vector.shape_cast %11 : vector<16x256xbf16> to vector<1x16x256xbf16>
    tpu.vector_store %arg11[%c0_9, %c0_10, %c0_11], %14 {strides = array<i32>} : memref<1x80x256xbf16, #tpu.memory_space<vmem>>, vector<1x16x256xbf16>,
    %cst_12 = arith.constant 0.000000e+00 : f32
    %15 = vector.broadcast %cst_12 : f32 to vector<144x256xf32>
    %c0_13 = arith.constant 0 : index
    %c0_14 = arith.constant 0 : index
    %16 = vector.load %arg13[%c0_13, %c0_14] : memref<144x256xf32, #tpu.memory_space<vmem>>, vector<144x256xf32>
    tpu.vector_store %arg13[%c0_13, %c0_14], %15 {strides = array<i32>} : memref<144x256xf32, #tpu.memory_space<vmem>>, vector<144x256xf32>,
    %c16 = arith.constant 16 : index
    %c0_15 = arith.constant 0 : index
    %17 = vector.load %arg12[%c16, %c0_15] : memref<40x256xf32, #tpu.memory_space<vmem>>, vector<16x239xf32>
    %c1 = arith.constant 1 : index
    %c17 = arith.constant 17 : index
    %18 = vector.load %arg2[%c1, %c17] : memref<5x256xf32, #tpu.memory_space<vmem>>, vector<1x239xf32>
    %19 = vector.broadcast %18 : vector<1x239xf32> to vector<16x239xf32>
    %20 = arith.mulf %17, %19 : vector<16x239xf32>
    %c0_16 = arith.constant 0 : index
    %c17_17 = arith.constant 17 : index
    %21 = vector.load %arg13[%c0_16, %c17_17] : memref<144x256xf32, #tpu.memory_space<vmem>>, vector<16x239xf32>
    tpu.vector_store %arg13[%c0_16, %c17_17], %20 {strides = array<i32>} : memref<144x256xf32, #tpu.memory_space<vmem>>, vector<16x239xf32>,
    %c16_18 = arith.constant 16 : index
    %c0_19 = arith.constant 0 : index
    %22 = vector.load %arg12[%c16_18, %c0_19] : memref<40x256xf32, #tpu.memory_space<vmem>>, vector<16x240xf32>
    %c16_20 = arith.constant 16 : index
    %c16_21 = arith.constant 16 : index
    %23 = vector.load %arg13[%c16_20, %c16_21] : memref<144x256xf32, #tpu.memory_space<vmem>>, vector<16x240xf32>
    tpu.vector_store %arg13[%c16_20, %c16_21], %22 {strides = array<i32>} : memref<144x256xf32, #tpu.memory_space<vmem>>, vector<16x240xf32>,
    %c16_22 = arith.constant 16 : index
    %c0_23 = arith.constant 0 : index
    %24 = vector.load %arg12[%c16_22, %c0_23] : memref<40x256xf32, #tpu.memory_space<vmem>>, vector<16x241xf32>
    %c3 = arith.constant 3 : index
    %c15 = arith.constant 15 : index
    %25 = vector.load %arg2[%c3, %c15] : memref<5x256xf32, #tpu.memory_space<vmem>>, vector<1x241xf32>
    %26 = vector.broadcast %25 : vector<1x241xf32> to vector<16x241xf32>
    %27 = arith.mulf %24, %26 : vector<16x241xf32>
    %c32 = arith.constant 32 : index
    %c15_24 = arith.constant 15 : index
    %28 = vector.load %arg13[%c32, %c15_24] : memref<144x256xf32, #tpu.memory_space<vmem>>, vector<16x241xf32>
    tpu.vector_store %arg13[%c32, %c15_24], %27 {strides = array<i32>} : memref<144x256xf32, #tpu.memory_space<vmem>>, vector<16x241xf32>,
    %c16_25 = arith.constant 16 : index
    %c0_26 = arith.constant 0 : index
    %29 = vector.load %arg12[%c16_25, %c0_26] : memref<40x256xf32, #tpu.memory_space<vmem>>, vector<16x255xf32>
    %c1_27 = arith.constant 1 : index
    %c1_28 = arith.constant 1 : index
    %30 = vector.load %arg2[%c1_27, %c1_28] : memref<5x256xf32, #tpu.memory_space<vmem>>, vector<1x255xf32>
    %31 = vector.broadcast %30 : vector<1x255xf32> to vector<16x255xf32>
    %32 = arith.mulf %29, %31 : vector<16x255xf32>
    %c48 = arith.constant 48 : index
    %c1_29 = arith.constant 1 : index
    %33 = vector.load %arg13[%c48, %c1_29] : memref<144x256xf32, #tpu.memory_space<vmem>>, vector<16x255xf32>
    tpu.vector_store %arg13[%c48, %c1_29], %32 {strides = array<i32>} : memref<144x256xf32, #tpu.memory_space<vmem>>, vector<16x255xf32>,
    %c16_30 = arith.constant 16 : index
    %c0_31 = arith.constant 0 : index
    %34 = vector.load %arg12[%c16_30, %c0_31] : memref<40x256xf32, #tpu.memory_space<vmem>>, vector<16x256xf32>
    %c64 = arith.constant 64 : index
    %c0_32 = arith.constant 0 : index
    %35 = vector.load %arg13[%c64, %c0_32] : memref<144x256xf32, #tpu.memory_space<vmem>>, vector<16x256xf32>
    tpu.vector_store %arg13[%c64, %c0_32], %34 {strides = array<i32>} : memref<144x256xf32, #tpu.memory_space<vmem>>, vector<16x256xf32>,
    %c16_33 = arith.constant 16 : index
    %c1_34 = arith.constant 1 : index
    %36 = vector.load %arg12[%c16_33, %c1_34] : memref<40x256xf32, #tpu.memory_space<vmem>>, vector<16x255xf32>
    %c3_35 = arith.constant 3 : index
    %c0_36 = arith.constant 0 : index
    %37 = vector.load %arg2[%c3_35, %c0_36] : memref<5x256xf32, #tpu.memory_space<vmem>>, vector<1x255xf32>
    %38 = vector.broadcast %37 : vector<1x255xf32> to vector<16x255xf32>
    %39 = arith.mulf %36, %38 : vector<16x255xf32>
    %c80 = arith.constant 80 : index
    %c0_37 = arith.constant 0 : index
    %40 = vector.load %arg13[%c80, %c0_37] : memref<144x256xf32, #tpu.memory_space<vmem>>, vector<16x255xf32>
    tpu.vector_store %arg13[%c80, %c0_37], %39 {strides = array<i32>} : memref<144x256xf32, #tpu.memory_space<vmem>>, vector<16x255xf32>,
    %c16_38 = arith.constant 16 : index
    %c15_39 = arith.constant 15 : index
    %41 = vector.load %arg12[%c16_38, %c15_39] : memref<40x256xf32, #tpu.memory_space<vmem>>, vector<16x241xf32>
    %c1_40 = arith.constant 1 : index
    %c0_41 = arith.constant 0 : index
    %42 = vector.load %arg2[%c1_40, %c0_41] : memref<5x256xf32, #tpu.memory_space<vmem>>, vector<1x241xf32>
    %43 = vector.broadcast %42 : vector<1x241xf32> to vector<16x241xf32>
    %44 = arith.mulf %41, %43 : vector<16x241xf32>
    %c96 = arith.constant 96 : index
    %c0_42 = arith.constant 0 : index
    %45 = vector.load %arg13[%c96, %c0_42] : memref<144x256xf32, #tpu.memory_space<vmem>>, vector<16x241xf32>
    tpu.vector_store %arg13[%c96, %c0_42], %44 {strides = array<i32>} : memref<144x256xf32, #tpu.memory_space<vmem>>, vector<16x241xf32>,
    %c16_43 = arith.constant 16 : index
    %c16_44 = arith.constant 16 : index
    %46 = vector.load %arg12[%c16_43, %c16_44] : memref<40x256xf32, #tpu.memory_space<vmem>>, vector<16x240xf32>
    %c112 = arith.constant 112 : index
    %c0_45 = arith.constant 0 : index
    %47 = vector.load %arg13[%c112, %c0_45] : memref<144x256xf32, #tpu.memory_space<vmem>>, vector<16x240xf32>
    tpu.vector_store %arg13[%c112, %c0_45], %46 {strides = array<i32>} : memref<144x256xf32, #tpu.memory_space<vmem>>, vector<16x240xf32>,
    %c16_46 = arith.constant 16 : index
    %c17_47 = arith.constant 17 : index
    %48 = vector.load %arg12[%c16_46, %c17_47] : memref<40x256xf32, #tpu.memory_space<vmem>>, vector<16x239xf32>
    %c3_48 = arith.constant 3 : index
    %c0_49 = arith.constant 0 : index
    %49 = vector.load %arg2[%c3_48, %c0_49] : memref<5x256xf32, #tpu.memory_space<vmem>>, vector<1x239xf32>
    %50 = vector.broadcast %49 : vector<1x239xf32> to vector<16x239xf32>
    %51 = arith.mulf %48, %50 : vector<16x239xf32>
    %c128 = arith.constant 128 : index
    %c0_50 = arith.constant 0 : index
    %52 = vector.load %arg13[%c128, %c0_50] : memref<144x256xf32, #tpu.memory_space<vmem>>, vector<16x239xf32>
    tpu.vector_store %arg13[%c128, %c0_50], %51 {strides = array<i32>} : memref<144x256xf32, #tpu.memory_space<vmem>>, vector<16x239xf32>,
    %c0_51 = arith.constant 0 : index
    %c0_52 = arith.constant 0 : index
    %53 = vector.load %arg5[%c0_51, %c0_52] : memref<32x144xbf16, #tpu.memory_space<vmem>>, vector<32x144xbf16>
    %54 = arith.extf %53 : vector<32x144xbf16> to vector<32x144xf32>
    %c0_53 = arith.constant 0 : index
    %c0_54 = arith.constant 0 : index
    %55 = vector.load %arg13[%c0_53, %c0_54] : memref<144x256xf32, #tpu.memory_space<vmem>>, vector<144x256xf32>
    %cst_55 = arith.constant dense<0.000000e+00> : vector<32x256xf32>
    %56 = tpu.matmul %54, %55, %cst_55 {dimension_numbers = #tpu.dot_dimension_numbers<[1], [0], [0], [1], [0, 0, 1, 1], [], []>} : vector<32x144xf32>, vector<144x256xf32>, vector<32x256xf32> -> vector<32x256xf32>
    %c0_56 = arith.constant 0 : index
    %c0_57 = arith.constant 0 : index
    %57 = vector.load %arg6[%c0_56, %c0_57] : memref<32x1xf32, #tpu.memory_space<vmem>>, vector<32x1xf32>
    %58 = vector.broadcast %57 : vector<32x1xf32> to vector<32x256xf32>
    %59 = arith.addf %56, %58 : vector<32x256xf32>
    %cst_58 = arith.constant 0.000000e+00 : f32
    %60 = vector.broadcast %cst_58 : f32 to vector<32x256xf32>
    %61 = arith.maximumf %59, %60 : vector<32x256xf32>
    %62 = arith.truncf %61 : vector<32x256xf32> to vector<32x256xbf16>
    %c0_59 = arith.constant 0 : index
    %c16_60 = arith.constant 16 : index
    %c0_61 = arith.constant 0 : index
    %63 = vector.load %arg11[%c0_59, %c16_60, %c0_61] : memref<1x80x256xbf16, #tpu.memory_space<vmem>>, vector<1x32x256xbf16>
    %64 = vector.shape_cast %63 : vector<1x32x256xbf16> to vector<32x256xbf16>
    %65 = vector.shape_cast %62 : vector<32x256xbf16> to vector<1x32x256xbf16>
    tpu.vector_store %arg11[%c0_59, %c16_60, %c0_61], %65 {strides = array<i32>} : memref<1x80x256xbf16, #tpu.memory_space<vmem>>, vector<1x32x256xbf16>,
    %cst_62 = arith.constant 0.000000e+00 : f32
    %66 = vector.broadcast %cst_62 : f32 to vector<200x256xf32>
    %c0_63 = arith.constant 0 : index
    %c0_64 = arith.constant 0 : index
    %67 = vector.load %arg14[%c0_63, %c0_64] : memref<200x256xf32, #tpu.memory_space<vmem>>, vector<200x256xf32>
    tpu.vector_store %arg14[%c0_63, %c0_64], %66 {strides = array<i32>} : memref<200x256xf32, #tpu.memory_space<vmem>>, vector<200x256xf32>,
    %c32_65 = arith.constant 32 : index
    %c0_66 = arith.constant 0 : index
    %68 = vector.load %arg12[%c32_65, %c0_66] : memref<40x256xf32, #tpu.memory_space<vmem>>, vector<8x222xf32>
    %c0_67 = arith.constant 0 : index
    %c34 = arith.constant 34 : index
    %69 = vector.load %arg2[%c0_67, %c34] : memref<5x256xf32, #tpu.memory_space<vmem>>, vector<1x222xf32>
    %70 = vector.broadcast %69 : vector<1x222xf32> to vector<8x222xf32>
    %71 = arith.mulf %68, %70 : vector<8x222xf32>
    %c0_68 = arith.constant 0 : index
    %c34_69 = arith.constant 34 : index
    %72 = vector.load %arg14[%c0_68, %c34_69] : memref<200x256xf32, #tpu.memory_space<vmem>>, vector<8x222xf32>
    tpu.vector_store %arg14[%c0_68, %c34_69], %71 {strides = array<i32>} : memref<200x256xf32, #tpu.memory_space<vmem>>, vector<8x222xf32>,
    %c32_70 = arith.constant 32 : index
    %c0_71 = arith.constant 0 : index
    %73 = vector.load %arg12[%c32_70, %c0_71] : memref<40x256xf32, #tpu.memory_space<vmem>>, vector<8x223xf32>
    %c1_72 = arith.constant 1 : index
    %c33 = arith.constant 33 : index
    %74 = vector.load %arg2[%c1_72, %c33] : memref<5x256xf32, #tpu.memory_space<vmem>>, vector<1x223xf32>
    %75 = vector.broadcast %74 : vector<1x223xf32> to vector<8x223xf32>
    %76 = arith.mulf %73, %75 : vector<8x223xf32>
    %c8 = arith.constant 8 : index
    %c33_73 = arith.constant 33 : index
    %77 = vector.load %arg14[%c8, %c33_73] : memref<200x256xf32, #tpu.memory_space<vmem>>, vector<8x223xf32>
    tpu.vector_store %arg14[%c8, %c33_73], %76 {strides = array<i32>} : memref<200x256xf32, #tpu.memory_space<vmem>>, vector<8x223xf32>,
    %c32_74 = arith.constant 32 : index
    %c0_75 = arith.constant 0 : index
    %78 = vector.load %arg12[%c32_74, %c0_75] : memref<40x256xf32, #tpu.memory_space<vmem>>, vector<8x224xf32>
    %c16_76 = arith.constant 16 : index
    %c32_77 = arith.constant 32 : index
    %79 = vector.load %arg14[%c16_76, %c32_77] : memref<200x256xf32, #tpu.memory_space<vmem>>, vector<8x224xf32>
    tpu.vector_store %arg14[%c16_76, %c32_77], %78 {strides = array<i32>} : memref<200x256xf32, #tpu.memory_space<vmem>>, vector<8x224xf32>,
    %c32_78 = arith.constant 32 : index
    %c0_79 = arith.constant 0 : index
    %80 = vector.load %arg12[%c32_78, %c0_79] : memref<40x256xf32, #tpu.memory_space<vmem>>, vector<8x225xf32>
    %c3_80 = arith.constant 3 : index
    %c31 = arith.constant 31 : index
    %81 = vector.load %arg2[%c3_80, %c31] : memref<5x256xf32, #tpu.memory_space<vmem>>, vector<1x225xf32>
    %82 = vector.broadcast %81 : vector<1x225xf32> to vector<8x225xf32>
    %83 = arith.mulf %80, %82 : vector<8x225xf32>
    %c24 = arith.constant 24 : index
    %c31_81 = arith.constant 31 : index
    %84 = vector.load %arg14[%c24, %c31_81] : memref<200x256xf32, #tpu.memory_space<vmem>>, vector<8x225xf32>
    tpu.vector_store %arg14[%c24, %c31_81], %83 {strides = array<i32>} : memref<200x256xf32, #tpu.memory_space<vmem>>, vector<8x225xf32>,
    %c32_82 = arith.constant 32 : index
    %c0_83 = arith.constant 0 : index
    %85 = vector.load %arg12[%c32_82, %c0_83] : memref<40x256xf32, #tpu.memory_space<vmem>>, vector<8x226xf32>
    %c4 = arith.constant 4 : index
    %c30 = arith.constant 30 : index
    %86 = vector.load %arg2[%c4, %c30] : memref<5x256xf32, #tpu.memory_space<vmem>>, vector<1x226xf32>
    %87 = vector.broadcast %86 : vector<1x226xf32> to vector<8x226xf32>
    %88 = arith.mulf %85, %87 : vector<8x226xf32>
    %c32_84 = arith.constant 32 : index
    %c30_85 = arith.constant 30 : index
    %89 = vector.load %arg14[%c32_84, %c30_85] : memref<200x256xf32, #tpu.memory_space<vmem>>, vector<8x226xf32>
    tpu.vector_store %arg14[%c32_84, %c30_85], %88 {strides = array<i32>} : memref<200x256xf32, #tpu.memory_space<vmem>>, vector<8x226xf32>,
    %c32_86 = arith.constant 32 : index
    %c0_87 = arith.constant 0 : index
    %90 = vector.load %arg12[%c32_86, %c0_87] : memref<40x256xf32, #tpu.memory_space<vmem>>, vector<8x238xf32>
    %c0_88 = arith.constant 0 : index
    %c18 = arith.constant 18 : index
    %91 = vector.load %arg2[%c0_88, %c18] : memref<5x256xf32, #tpu.memory_space<vmem>>, vector<1x238xf32>
    %92 = vector.broadcast %91 : vector<1x238xf32> to vector<8x238xf32>
    %93 = arith.mulf %90, %92 : vector<8x238xf32>
    %c40 = arith.constant 40 : index
    %c18_89 = arith.constant 18 : index
    %94 = vector.load %arg14[%c40, %c18_89] : memref<200x256xf32, #tpu.memory_space<vmem>>, vector<8x238xf32>
    tpu.vector_store %arg14[%c40, %c18_89], %93 {strides = array<i32>} : memref<200x256xf32, #tpu.memory_space<vmem>>, vector<8x238xf32>,
    %c32_90 = arith.constant 32 : index
    %c0_91 = arith.constant 0 : index
    %95 = vector.load %arg12[%c32_90, %c0_91] : memref<40x256xf32, #tpu.memory_space<vmem>>, vector<8x239xf32>
    %c1_92 = arith.constant 1 : index
    %c17_93 = arith.constant 17 : index
    %96 = vector.load %arg2[%c1_92, %c17_93] : memref<5x256xf32, #tpu.memory_space<vmem>>, vector<1x239xf32>
    %97 = vector.broadcast %96 : vector<1x239xf32> to vector<8x239xf32>
    %98 = arith.mulf %95, %97 : vector<8x239xf32>
    %c48_94 = arith.constant 48 : index
    %c17_95 = arith.constant 17 : index
    %99 = vector.load %arg14[%c48_94, %c17_95] : memref<200x256xf32, #tpu.memory_space<vmem>>, vector<8x239xf32>
    tpu.vector_store %arg14[%c48_94, %c17_95], %98 {strides = array<i32>} : memref<200x256xf32, #tpu.memory_space<vmem>>, vector<8x239xf32>,
    %c32_96 = arith.constant 32 : index
    %c0_97 = arith.constant 0 : index
    %100 = vector.load %arg12[%c32_96, %c0_97] : memref<40x256xf32, #tpu.memory_space<vmem>>, vector<8x240xf32>
    %c56 = arith.constant 56 : index
    %c16_98 = arith.constant 16 : index
    %101 = vector.load %arg14[%c56, %c16_98] : memref<200x256xf32, #tpu.memory_space<vmem>>, vector<8x240xf32>
    tpu.vector_store %arg14[%c56, %c16_98], %100 {strides = array<i32>} : memref<200x256xf32, #tpu.memory_space<vmem>>, vector<8x240xf32>,
    %c32_99 = arith.constant 32 : index
    %c0_100 = arith.constant 0 : index
    %102 = vector.load %arg12[%c32_99, %c0_100] : memref<40x256xf32, #tpu.memory_space<vmem>>, vector<8x241xf32>
    %c3_101 = arith.constant 3 : index
    %c15_102 = arith.constant 15 : index
    %103 = vector.load %arg2[%c3_101, %c15_102] : memref<5x256xf32, #tpu.memory_space<vmem>>, vector<1x241xf32>
    %104 = vector.broadcast %103 : vector<1x241xf32> to vector<8x241xf32>
    %105 = arith.mulf %102, %104 : vector<8x241xf32>
    %c64_103 = arith.constant 64 : index
    %c15_104 = arith.constant 15 : index
    %106 = vector.load %arg14[%c64_103, %c15_104] : memref<200x256xf32, #tpu.memory_space<vmem>>, vector<8x241xf32>
    tpu.vector_store %arg14[%c64_103, %c15_104], %105 {strides = array<i32>} : memref<200x256xf32, #tpu.memory_space<vmem>>, vector<8x241xf32>,
    %c32_105 = arith.constant 32 : index
    %c0_106 = arith.constant 0 : index
    %107 = vector.load %arg12[%c32_105, %c0_106] : memref<40x256xf32, #tpu.memory_space<vmem>>, vector<8x242xf32>
    %c4_107 = arith.constant 4 : index
    %c14 = arith.constant 14 : index
    %108 = vector.load %arg2[%c4_107, %c14] : memref<5x256xf32, #tpu.memory_space<vmem>>, vector<1x242xf32>
    %109 = vector.broadcast %108 : vector<1x242xf32> to vector<8x242xf32>
    %110 = arith.mulf %107, %109 : vector<8x242xf32>
    %c72 = arith.constant 72 : index
    %c14_108 = arith.constant 14 : index
    %111 = vector.load %arg14[%c72, %c14_108] : memref<200x256xf32, #tpu.memory_space<vmem>>, vector<8x242xf32>
    tpu.vector_store %arg14[%c72, %c14_108], %110 {strides = array<i32>} : memref<200x256xf32, #tpu.memory_space<vmem>>, vector<8x242xf32>,
    %c32_109 = arith.constant 32 : index
    %c0_110 = arith.constant 0 : index
    %112 = vector.load %arg12[%c32_109, %c0_110] : memref<40x256xf32, #tpu.memory_space<vmem>>, vector<8x254xf32>
    %c0_111 = arith.constant 0 : index
    %c2 = arith.constant 2 : index
    %113 = vector.load %arg2[%c0_111, %c2] : memref<5x256xf32, #tpu.memory_space<vmem>>, vector<1x254xf32>
    %114 = vector.broadcast %113 : vector<1x254xf32> to vector<8x254xf32>
    %115 = arith.mulf %112, %114 : vector<8x254xf32>
    %c80_112 = arith.constant 80 : index
    %c2_113 = arith.constant 2 : index
    %116 = vector.load %arg14[%c80_112, %c2_113] : memref<200x256xf32, #tpu.memory_space<vmem>>, vector<8x254xf32>
    tpu.vector_store %arg14[%c80_112, %c2_113], %115 {strides = array<i32>} : memref<200x256xf32, #tpu.memory_space<vmem>>, vector<8x254xf32>,
    %c32_114 = arith.constant 32 : index
    %c0_115 = arith.constant 0 : index
    %117 = vector.load %arg12[%c32_114, %c0_115] : memref<40x256xf32, #tpu.memory_space<vmem>>, vector<8x255xf32>
    %c1_116 = arith.constant 1 : index
    %c1_117 = arith.constant 1 : index
    %118 = vector.load %arg2[%c1_116, %c1_117] : memref<5x256xf32, #tpu.memory_space<vmem>>, vector<1x255xf32>
    %119 = vector.broadcast %118 : vector<1x255xf32> to vector<8x255xf32>
    %120 = arith.mulf %117, %119 : vector<8x255xf32>
    %c88 = arith.constant 88 : index
    %c1_118 = arith.constant 1 : index
    %121 = vector.load %arg14[%c88, %c1_118] : memref<200x256xf32, #tpu.memory_space<vmem>>, vector<8x255xf32>
    tpu.vector_store %arg14[%c88, %c1_118], %120 {strides = array<i32>} : memref<200x256xf32, #tpu.memory_space<vmem>>, vector<8x255xf32>,
    %c32_119 = arith.constant 32 : index
    %c0_120 = arith.constant 0 : index
    %122 = vector.load %arg12[%c32_119, %c0_120] : memref<40x256xf32, #tpu.memory_space<vmem>>, vector<8x256xf32>
    %c96_121 = arith.constant 96 : index
    %c0_122 = arith.constant 0 : index
    %123 = vector.load %arg14[%c96_121, %c0_122] : memref<200x256xf32, #tpu.memory_space<vmem>>, vector<8x256xf32>
    tpu.vector_store %arg14[%c96_121, %c0_122], %122 {strides = array<i32>} : memref<200x256xf32, #tpu.memory_space<vmem>>, vector<8x256xf32>,
    %c32_123 = arith.constant 32 : index
    %c1_124 = arith.constant 1 : index
    %124 = vector.load %arg12[%c32_123, %c1_124] : memref<40x256xf32, #tpu.memory_space<vmem>>, vector<8x255xf32>
    %c3_125 = arith.constant 3 : index
    %c0_126 = arith.constant 0 : index
    %125 = vector.load %arg2[%c3_125, %c0_126] : memref<5x256xf32, #tpu.memory_space<vmem>>, vector<1x255xf32>
    %126 = vector.broadcast %125 : vector<1x255xf32> to vector<8x255xf32>
    %127 = arith.mulf %124, %126 : vector<8x255xf32>
    %c104 = arith.constant 104 : index
    %c0_127 = arith.constant 0 : index
    %128 = vector.load %arg14[%c104, %c0_127] : memref<200x256xf32, #tpu.memory_space<vmem>>, vector<8x255xf32>
    tpu.vector_store %arg14[%c104, %c0_127], %127 {strides = array<i32>} : memref<200x256xf32, #tpu.memory_space<vmem>>, vector<8x255xf32>,
    %c32_128 = arith.constant 32 : index
    %c2_129 = arith.constant 2 : index
    %129 = vector.load %arg12[%c32_128, %c2_129] : memref<40x256xf32, #tpu.memory_space<vmem>>, vector<8x254xf32>
    %c4_130 = arith.constant 4 : index
    %c0_131 = arith.constant 0 : index
    %130 = vector.load %arg2[%c4_130, %c0_131] : memref<5x256xf32, #tpu.memory_space<vmem>>, vector<1x254xf32>
    %131 = vector.broadcast %130 : vector<1x254xf32> to vector<8x254xf32>
    %132 = arith.mulf %129, %131 : vector<8x254xf32>
    %c112_132 = arith.constant 112 : index
    %c0_133 = arith.constant 0 : index
    %133 = vector.load %arg14[%c112_132, %c0_133] : memref<200x256xf32, #tpu.memory_space<vmem>>, vector<8x254xf32>
    tpu.vector_store %arg14[%c112_132, %c0_133], %132 {strides = array<i32>} : memref<200x256xf32, #tpu.memory_space<vmem>>, vector<8x254xf32>,
    %c32_134 = arith.constant 32 : index
    %c14_135 = arith.constant 14 : index
    %134 = vector.load %arg12[%c32_134, %c14_135] : memref<40x256xf32, #tpu.memory_space<vmem>>, vector<8x242xf32>
    %c0_136 = arith.constant 0 : index
    %c0_137 = arith.constant 0 : index
    %135 = vector.load %arg2[%c0_136, %c0_137] : memref<5x256xf32, #tpu.memory_space<vmem>>, vector<1x242xf32>
    %136 = vector.broadcast %135 : vector<1x242xf32> to vector<8x242xf32>
    %137 = arith.mulf %134, %136 : vector<8x242xf32>
    %c120 = arith.constant 120 : index
    %c0_138 = arith.constant 0 : index
    %138 = vector.load %arg14[%c120, %c0_138] : memref<200x256xf32, #tpu.memory_space<vmem>>, vector<8x242xf32>
    tpu.vector_store %arg14[%c120, %c0_138], %137 {strides = array<i32>} : memref<200x256xf32, #tpu.memory_space<vmem>>, vector<8x242xf32>,
    %c32_139 = arith.constant 32 : index
    %c15_140 = arith.constant 15 : index
    %139 = vector.load %arg12[%c32_139, %c15_140] : memref<40x256xf32, #tpu.memory_space<vmem>>, vector<8x241xf32>
    %c1_141 = arith.constant 1 : index
    %c0_142 = arith.constant 0 : index
    %140 = vector.load %arg2[%c1_141, %c0_142] : memref<5x256xf32, #tpu.memory_space<vmem>>, vector<1x241xf32>
    %141 = vector.broadcast %140 : vector<1x241xf32> to vector<8x241xf32>
    %142 = arith.mulf %139, %141 : vector<8x241xf32>
    %c128_143 = arith.constant 128 : index
    %c0_144 = arith.constant 0 : index
    %143 = vector.load %arg14[%c128_143, %c0_144] : memref<200x256xf32, #tpu.memory_space<vmem>>, vector<8x241xf32>
    tpu.vector_store %arg14[%c128_143, %c0_144], %142 {strides = array<i32>} : memref<200x256xf32, #tpu.memory_space<vmem>>, vector<8x241xf32>,
    %c32_145 = arith.constant 32 : index
    %c16_146 = arith.constant 16 : index
    %144 = vector.load %arg12[%c32_145, %c16_146] : memref<40x256xf32, #tpu.memory_space<vmem>>, vector<8x240xf32>
    %c136 = arith.constant 136 : index
    %c0_147 = arith.constant 0 : index
    %145 = vector.load %arg14[%c136, %c0_147] : memref<200x256xf32, #tpu.memory_space<vmem>>, vector<8x240xf32>
    tpu.vector_store %arg14[%c136, %c0_147], %144 {strides = array<i32>} : memref<200x256xf32, #tpu.memory_space<vmem>>, vector<8x240xf32>,
    %c32_148 = arith.constant 32 : index
    %c17_149 = arith.constant 17 : index
    %146 = vector.load %arg12[%c32_148, %c17_149] : memref<40x256xf32, #tpu.memory_space<vmem>>, vector<8x239xf32>
    %c3_150 = arith.constant 3 : index
    %c0_151 = arith.constant 0 : index
    %147 = vector.load %arg2[%c3_150, %c0_151] : memref<5x256xf32, #tpu.memory_space<vmem>>, vector<1x239xf32>
    %148 = vector.broadcast %147 : vector<1x239xf32> to vector<8x239xf32>
    %149 = arith.mulf %146, %148 : vector<8x239xf32>
    %c144 = arith.constant 144 : index
    %c0_152 = arith.constant 0 : index
    %150 = vector.load %arg14[%c144, %c0_152] : memref<200x256xf32, #tpu.memory_space<vmem>>, vector<8x239xf32>
    tpu.vector_store %arg14[%c144, %c0_152], %149 {strides = array<i32>} : memref<200x256xf32, #tpu.memory_space<vmem>>, vector<8x239xf32>,
    %c32_153 = arith.constant 32 : index
    %c18_154 = arith.constant 18 : index
    %151 = vector.load %arg12[%c32_153, %c18_154] : memref<40x256xf32, #tpu.memory_space<vmem>>, vector<8x238xf32>
    %c4_155 = arith.constant 4 : index
    %c0_156 = arith.constant 0 : index
    %152 = vector.load %arg2[%c4_155, %c0_156] : memref<5x256xf32, #tpu.memory_space<vmem>>, vector<1x238xf32>
    %153 = vector.broadcast %152 : vector<1x238xf32> to vector<8x238xf32>
    %154 = arith.mulf %151, %153 : vector<8x238xf32>
    %c152 = arith.constant 152 : index
    %c0_157 = arith.constant 0 : index
    %155 = vector.load %arg14[%c152, %c0_157] : memref<200x256xf32, #tpu.memory_space<vmem>>, vector<8x238xf32>
    tpu.vector_store %arg14[%c152, %c0_157], %154 {strides = array<i32>} : memref<200x256xf32, #tpu.memory_space<vmem>>, vector<8x238xf32>,
    %c32_158 = arith.constant 32 : index
    %c30_159 = arith.constant 30 : index
    %156 = vector.load %arg12[%c32_158, %c30_159] : memref<40x256xf32, #tpu.memory_space<vmem>>, vector<8x226xf32>
    %c0_160 = arith.constant 0 : index
    %c0_161 = arith.constant 0 : index
    %157 = vector.load %arg2[%c0_160, %c0_161] : memref<5x256xf32, #tpu.memory_space<vmem>>, vector<1x226xf32>
    %158 = vector.broadcast %157 : vector<1x226xf32> to vector<8x226xf32>
    %159 = arith.mulf %156, %158 : vector<8x226xf32>
    %c160 = arith.constant 160 : index
    %c0_162 = arith.constant 0 : index
    %160 = vector.load %arg14[%c160, %c0_162] : memref<200x256xf32, #tpu.memory_space<vmem>>, vector<8x226xf32>
    tpu.vector_store %arg14[%c160, %c0_162], %159 {strides = array<i32>} : memref<200x256xf32, #tpu.memory_space<vmem>>, vector<8x226xf32>,
    %c32_163 = arith.constant 32 : index
    %c31_164 = arith.constant 31 : index
    %161 = vector.load %arg12[%c32_163, %c31_164] : memref<40x256xf32, #tpu.memory_space<vmem>>, vector<8x225xf32>
    %c1_165 = arith.constant 1 : index
    %c0_166 = arith.constant 0 : index
    %162 = vector.load %arg2[%c1_165, %c0_166] : memref<5x256xf32, #tpu.memory_space<vmem>>, vector<1x225xf32>
    %163 = vector.broadcast %162 : vector<1x225xf32> to vector<8x225xf32>
    %164 = arith.mulf %161, %163 : vector<8x225xf32>
    %c168 = arith.constant 168 : index
    %c0_167 = arith.constant 0 : index
    %165 = vector.load %arg14[%c168, %c0_167] : memref<200x256xf32, #tpu.memory_space<vmem>>, vector<8x225xf32>
    tpu.vector_store %arg14[%c168, %c0_167], %164 {strides = array<i32>} : memref<200x256xf32, #tpu.memory_space<vmem>>, vector<8x225xf32>,
    %c32_168 = arith.constant 32 : index
    %c32_169 = arith.constant 32 : index
    %166 = vector.load %arg12[%c32_168, %c32_169] : memref<40x256xf32, #tpu.memory_space<vmem>>, vector<8x224xf32>
    %c176 = arith.constant 176 : index
    %c0_170 = arith.constant 0 : index
    %167 = vector.load %arg14[%c176, %c0_170] : memref<200x256xf32, #tpu.memory_space<vmem>>, vector<8x224xf32>
    tpu.vector_store %arg14[%c176, %c0_170], %166 {strides = array<i32>} : memref<200x256xf32, #tpu.memory_space<vmem>>, vector<8x224xf32>,
    %c32_171 = arith.constant 32 : index
    %c33_172 = arith.constant 33 : index
    %168 = vector.load %arg12[%c32_171, %c33_172] : memref<40x256xf32, #tpu.memory_space<vmem>>, vector<8x223xf32>
    %c3_173 = arith.constant 3 : index
    %c0_174 = arith.constant 0 : index
    %169 = vector.load %arg2[%c3_173, %c0_174] : memref<5x256xf32, #tpu.memory_space<vmem>>, vector<1x223xf32>
    %170 = vector.broadcast %169 : vector<1x223xf32> to vector<8x223xf32>
    %171 = arith.mulf %168, %170 : vector<8x223xf32>
    %c184 = arith.constant 184 : index
    %c0_175 = arith.constant 0 : index
    %172 = vector.load %arg14[%c184, %c0_175] : memref<200x256xf32, #tpu.memory_space<vmem>>, vector<8x223xf32>
    tpu.vector_store %arg14[%c184, %c0_175], %171 {strides = array<i32>} : memref<200x256xf32, #tpu.memory_space<vmem>>, vector<8x223xf32>,
    %c32_176 = arith.constant 32 : index
    %c34_177 = arith.constant 34 : index
    %173 = vector.load %arg12[%c32_176, %c34_177] : memref<40x256xf32, #tpu.memory_space<vmem>>, vector<8x222xf32>
    %c4_178 = arith.constant 4 : index
    %c0_179 = arith.constant 0 : index
    %174 = vector.load %arg2[%c4_178, %c0_179] : memref<5x256xf32, #tpu.memory_space<vmem>>, vector<1x222xf32>
    %175 = vector.broadcast %174 : vector<1x222xf32> to vector<8x222xf32>
    %176 = arith.mulf %173, %175 : vector<8x222xf32>
    %c192 = arith.constant 192 : index
    %c0_180 = arith.constant 0 : index
    %177 = vector.load %arg14[%c192, %c0_180] : memref<200x256xf32, #tpu.memory_space<vmem>>, vector<8x222xf32>
    tpu.vector_store %arg14[%c192, %c0_180], %176 {strides = array<i32>} : memref<200x256xf32, #tpu.memory_space<vmem>>, vector<8x222xf32>,
    %c0_181 = arith.constant 0 : index
    %c0_182 = arith.constant 0 : index
    %178 = vector.load %arg7[%c0_181, %c0_182] : memref<16x200xbf16, #tpu.memory_space<vmem>>, vector<16x200xbf16>
    %179 = arith.extf %178 : vector<16x200xbf16> to vector<16x200xf32>
    %c0_183 = arith.constant 0 : index
    %c0_184 = arith.constant 0 : index
    %180 = vector.load %arg14[%c0_183, %c0_184] : memref<200x256xf32, #tpu.memory_space<vmem>>, vector<200x256xf32>
    %cst_185 = arith.constant dense<0.000000e+00> : vector<16x256xf32>
    %181 = tpu.matmul %179, %180, %cst_185 {dimension_numbers = #tpu.dot_dimension_numbers<[1], [0], [0], [1], [0, 0, 1, 1], [], []>} : vector<16x200xf32>, vector<200x256xf32>, vector<16x256xf32> -> vector<16x256xf32>
    %c0_186 = arith.constant 0 : index
    %c0_187 = arith.constant 0 : index
    %182 = vector.load %arg8[%c0_186, %c0_187] : memref<16x1xf32, #tpu.memory_space<vmem>>, vector<16x1xf32>
    %183 = vector.broadcast %182 : vector<16x1xf32> to vector<16x256xf32>
    %184 = arith.addf %181, %183 : vector<16x256xf32>
    %cst_188 = arith.constant 0.000000e+00 : f32
    %185 = vector.broadcast %cst_188 : f32 to vector<16x256xf32>
    %186 = arith.maximumf %184, %185 : vector<16x256xf32>
    %187 = arith.truncf %186 : vector<16x256xf32> to vector<16x256xbf16>
    %c0_189 = arith.constant 0 : index
    %c48_190 = arith.constant 48 : index
    %c0_191 = arith.constant 0 : index
    %188 = vector.load %arg11[%c0_189, %c48_190, %c0_191] : memref<1x80x256xbf16, #tpu.memory_space<vmem>>, vector<1x16x256xbf16>
    %189 = vector.shape_cast %188 : vector<1x16x256xbf16> to vector<16x256xbf16>
    %190 = vector.shape_cast %187 : vector<16x256xbf16> to vector<1x16x256xbf16>
    tpu.vector_store %arg11[%c0_189, %c48_190, %c0_191], %190 {strides = array<i32>} : memref<1x80x256xbf16, #tpu.memory_space<vmem>>, vector<1x16x256xbf16>,
    %c0_192 = arith.constant 0 : index
    %c0_193 = arith.constant 0 : index
    %191 = vector.load %arg15[%c0_192, %c0_193] : memref<32x256xbf16, #tpu.memory_space<vmem>>, vector<32x256xbf16>
    tpu.vector_store %arg15[%c0_192, %c0_193], %1 {strides = array<i32>} : memref<32x256xbf16, #tpu.memory_space<vmem>>, vector<32x256xbf16>,
    %c1_194 = arith.constant 1 : index
    %c1_195 = arith.constant 1 : index
    %192 = vector.load %arg2[%c1_194, %c1_195] : memref<5x256xf32, #tpu.memory_space<vmem>>, vector<1x255xf32>
    %cst_196 = arith.constant 0.000000e+00 : f32
    %193 = vector.broadcast %cst_196 : f32 to vector<1x255xf32>
    %194 = arith.cmpf ogt, %192, %193 : vector<1x255xf32>
    %195 = vector.extract_strided_slice %1 {offsets = [0, 0], sizes = [32, 255], strides = [1, 1]} : vector<32x256xbf16> to vector<32x255xbf16>
    %cst_197 = arith.constant 0xFF80 : bf16
    %196 = vector.shape_cast %194 : vector<1x255xi1> to vector<1x255xi1>
    %197 = vector.broadcast %196 : vector<1x255xi1> to vector<32x255xi1>
    %198 = vector.broadcast %cst_197 : bf16 to vector<32x255xbf16>
    %199 = arith.select %197, %195, %198 : vector<32x255xi1>, vector<32x255xbf16>
    %c0_198 = arith.constant 0 : index
    %c1_199 = arith.constant 1 : index
    %200 = vector.load %arg15[%c0_198, %c1_199] : memref<32x256xbf16, #tpu.memory_space<vmem>>, vector<32x255xbf16>
    %201 = arith.maximumf %200, %199 : vector<32x255xbf16>
    %c0_200 = arith.constant 0 : index
    %c1_201 = arith.constant 1 : index
    %202 = vector.load %arg15[%c0_200, %c1_201] : memref<32x256xbf16, #tpu.memory_space<vmem>>, vector<32x255xbf16>
    tpu.vector_store %arg15[%c0_200, %c1_201], %201 {strides = array<i32>} : memref<32x256xbf16, #tpu.memory_space<vmem>>, vector<32x255xbf16>,
    %c3_202 = arith.constant 3 : index
    %c0_203 = arith.constant 0 : index
    %203 = vector.load %arg2[%c3_202, %c0_203] : memref<5x256xf32, #tpu.memory_space<vmem>>, vector<1x255xf32>
    %cst_204 = arith.constant 0.000000e+00 : f32
    %204 = vector.broadcast %cst_204 : f32 to vector<1x255xf32>
    %205 = arith.cmpf ogt, %203, %204 : vector<1x255xf32>
    %206 = vector.extract_strided_slice %1 {offsets = [0, 1], sizes = [32, 255], strides = [1, 1]} : vector<32x256xbf16> to vector<32x255xbf16>
    %cst_205 = arith.constant 0xFF80 : bf16
    %207 = vector.shape_cast %205 : vector<1x255xi1> to vector<1x255xi1>
    %208 = vector.broadcast %207 : vector<1x255xi1> to vector<32x255xi1>
    %209 = vector.broadcast %cst_205 : bf16 to vector<32x255xbf16>
    %210 = arith.select %208, %206, %209 : vector<32x255xi1>, vector<32x255xbf16>
    %c0_206 = arith.constant 0 : index
    %c0_207 = arith.constant 0 : index
    %211 = vector.load %arg15[%c0_206, %c0_207] : memref<32x256xbf16, #tpu.memory_space<vmem>>, vector<32x255xbf16>
    %212 = arith.maximumf %211, %210 : vector<32x255xbf16>
    %c0_208 = arith.constant 0 : index
    %c0_209 = arith.constant 0 : index
    %213 = vector.load %arg15[%c0_208, %c0_209] : memref<32x256xbf16, #tpu.memory_space<vmem>>, vector<32x255xbf16>
    tpu.vector_store %arg15[%c0_208, %c0_209], %212 {strides = array<i32>} : memref<32x256xbf16, #tpu.memory_space<vmem>>, vector<32x255xbf16>,
    %c0_210 = arith.constant 0 : index
    %c0_211 = arith.constant 0 : index
    %214 = vector.load %arg15[%c0_210, %c0_211] : memref<32x256xbf16, #tpu.memory_space<vmem>>, vector<32x256xbf16>
    %c0_212 = arith.constant 0 : index
    %c16_213 = arith.constant 16 : index
    %215 = vector.load %arg15[%c0_212, %c16_213] : memref<32x256xbf16, #tpu.memory_space<vmem>>, vector<32x240xbf16>
    %216 = vector.extract_strided_slice %214 {offsets = [0, 0], sizes = [32, 240], strides = [1, 1]} : vector<32x256xbf16> to vector<32x240xbf16>
    %217 = arith.maximumf %215, %216 : vector<32x240xbf16>
    %c0_214 = arith.constant 0 : index
    %c16_215 = arith.constant 16 : index
    %218 = vector.load %arg15[%c0_214, %c16_215] : memref<32x256xbf16, #tpu.memory_space<vmem>>, vector<32x240xbf16>
    tpu.vector_store %arg15[%c0_214, %c16_215], %217 {strides = array<i32>} : memref<32x256xbf16, #tpu.memory_space<vmem>>, vector<32x240xbf16>,
    %c0_216 = arith.constant 0 : index
    %c0_217 = arith.constant 0 : index
    %219 = vector.load %arg15[%c0_216, %c0_217] : memref<32x256xbf16, #tpu.memory_space<vmem>>, vector<32x240xbf16>
    %220 = vector.extract_strided_slice %214 {offsets = [0, 16], sizes = [32, 240], strides = [1, 1]} : vector<32x256xbf16> to vector<32x240xbf16>
    %221 = arith.maximumf %219, %220 : vector<32x240xbf16>
    %c0_218 = arith.constant 0 : index
    %c0_219 = arith.constant 0 : index
    %222 = vector.load %arg15[%c0_218, %c0_219] : memref<32x256xbf16, #tpu.memory_space<vmem>>, vector<32x240xbf16>
    tpu.vector_store %arg15[%c0_218, %c0_219], %221 {strides = array<i32>} : memref<32x256xbf16, #tpu.memory_space<vmem>>, vector<32x240xbf16>,
    %c0_220 = arith.constant 0 : index
    %c0_221 = arith.constant 0 : index
    %223 = vector.load %arg9[%c0_220, %c0_221] : memref<16x32xbf16, #tpu.memory_space<vmem>>, vector<16x32xbf16>
    %c0_222 = arith.constant 0 : index
    %c0_223 = arith.constant 0 : index
    %224 = vector.load %arg15[%c0_222, %c0_223] : memref<32x256xbf16, #tpu.memory_space<vmem>>, vector<32x256xbf16>
    %cst_224 = arith.constant dense<0.000000e+00> : vector<16x256xf32>
    %225 = tpu.matmul %223, %224, %cst_224 {dimension_numbers = #tpu.dot_dimension_numbers<[1], [0], [0], [1], [0, 0, 1, 1], [], []>} : vector<16x32xbf16>, vector<32x256xbf16>, vector<16x256xf32> -> vector<16x256xf32>
    %c0_225 = arith.constant 0 : index
    %c0_226 = arith.constant 0 : index
    %226 = vector.load %arg10[%c0_225, %c0_226] : memref<16x1xf32, #tpu.memory_space<vmem>>, vector<16x1xf32>
    %227 = vector.broadcast %226 : vector<16x1xf32> to vector<16x256xf32>
    %228 = arith.addf %225, %227 : vector<16x256xf32>
    %cst_227 = arith.constant 0.000000e+00 : f32
    %229 = vector.broadcast %cst_227 : f32 to vector<16x256xf32>
    %230 = arith.maximumf %228, %229 : vector<16x256xf32>
    %231 = arith.truncf %230 : vector<16x256xf32> to vector<16x256xbf16>
    %c0_228 = arith.constant 0 : index
    %c64_229 = arith.constant 64 : index
    %c0_230 = arith.constant 0 : index
    %232 = vector.load %arg11[%c0_228, %c64_229, %c0_230] : memref<1x80x256xbf16, #tpu.memory_space<vmem>>, vector<1x16x256xbf16>
    %233 = vector.shape_cast %232 : vector<1x16x256xbf16> to vector<16x256xbf16>
    %234 = vector.shape_cast %231 : vector<16x256xbf16> to vector<1x16x256xbf16>
    tpu.vector_store %arg11[%c0_228, %c64_229, %c0_230], %234 {strides = array<i32>} : memref<1x80x256xbf16, #tpu.memory_space<vmem>>, vector<1x16x256xbf16>,
    return
  }
  func.func @transform_0(%arg0: i32) -> (i32, i32, i32) {
    %c0_i32 = arith.constant 0 : i32
    %c0_i32_0 = arith.constant 0 : i32
    %c0_i32_1 = arith.constant 0 : i32
    return %arg0, %c0_i32, %c0_i32_0 : i32, i32, i32
  }
  func.func @transform_1(%arg0: i32) -> (i32, i32) {
    %c0_i32 = arith.constant 0 : i32
    %c0_i32_0 = arith.constant 0 : i32
    %c0_i32_1 = arith.constant 0 : i32
    return %c0_i32, %c0_i32_0 : i32, i32
  }
  func.func @transform_2(%arg0: i32) -> (i32, i32) {
    %c0_i32 = arith.constant 0 : i32
    %c0_i32_0 = arith.constant 0 : i32
    %c0_i32_1 = arith.constant 0 : i32
    return %c0_i32, %c0_i32_0 : i32, i32
  }
  func.func @transform_3(%arg0: i32) -> (i32, i32) {
    %c0_i32 = arith.constant 0 : i32
    %c0_i32_0 = arith.constant 0 : i32
    %c0_i32_1 = arith.constant 0 : i32
    return %c0_i32, %c0_i32_0 : i32, i32
  }
  func.func @transform_4(%arg0: i32) -> (i32, i32) {
    %c0_i32 = arith.constant 0 : i32
    %c0_i32_0 = arith.constant 0 : i32
    %c0_i32_1 = arith.constant 0 : i32
    return %c0_i32, %c0_i32_0 : i32, i32
  }
  func.func @transform_5(%arg0: i32) -> (i32, i32) {
    %c0_i32 = arith.constant 0 : i32
    %c0_i32_0 = arith.constant 0 : i32
    %c0_i32_1 = arith.constant 0 : i32
    return %c0_i32, %c0_i32_0 : i32, i32
  }
  func.func @transform_6(%arg0: i32) -> (i32, i32) {
    %c0_i32 = arith.constant 0 : i32
    %c0_i32_0 = arith.constant 0 : i32
    %c0_i32_1 = arith.constant 0 : i32
    return %c0_i32, %c0_i32_0 : i32, i32
  }
  func.func @transform_7(%arg0: i32) -> (i32, i32) {
    %c0_i32 = arith.constant 0 : i32
    %c0_i32_0 = arith.constant 0 : i32
    %c0_i32_1 = arith.constant 0 : i32
    return %c0_i32, %c0_i32_0 : i32, i32
  }
  func.func @transform_8(%arg0: i32) -> (i32, i32) {
    %c0_i32 = arith.constant 0 : i32
    %c0_i32_0 = arith.constant 0 : i32
    %c0_i32_1 = arith.constant 0 : i32
    return %c0_i32, %c0_i32_0 : i32, i32
  }
  func.func @transform_9(%arg0: i32) -> (i32, i32) {
    %c0_i32 = arith.constant 0 : i32
    %c0_i32_0 = arith.constant 0 : i32
    %c0_i32_1 = arith.constant 0 : i32
    return %c0_i32, %c0_i32_0 : i32, i32
  }
  func.func @transform_10(%arg0: i32) -> (i32, i32, i32) {
    %c0_i32 = arith.constant 0 : i32
    %c0_i32_0 = arith.constant 0 : i32
    %c0_i32_1 = arith.constant 0 : i32
    return %arg0, %c0_i32, %c0_i32_0 : i32, i32, i32
  }
}

</mosaic_0001>

<llo_original>
// kernel: inception_block_forward.1
$region0: #{inception_block_forward.1}
  #allocation0 [shape = 'u32[]', space=smem, size = 0x4, offset = 0x4, fixed_abs, tag = 'smem constant byte address 0x4 - core index']
  #allocation1 [shape = 'u32[144,128]{1,0:T(1,128)}', space=vmem, size = 0x12000, scoped, tag = 'internal scratch']
  #allocation2 [shape = 'f32[40,256]{1,0:T(8,128)}', space=vmem, size = 0xa000, scoped, tag = 'scratch operand']
  #allocation3 [shape = 'f32[144,256]{1,0:T(8,128)}', space=vmem, size = 0x24000, scoped, tag = 'scratch operand']
  #allocation4 [shape = 'f32[200,256]{1,0:T(8,128)}', space=vmem, size = 0x32000, scoped, tag = 'scratch operand']
  #allocation5 [shape = 'bf16[32,256]{1,0:T(16,128)(2,1)}', space=vmem, size = 0x4000, scoped, tag = 'scratch operand']
  %s0 = inlined_call_operand.vmem [shape: bf16[2,32,256], index: 0, kind: input, shape index: {}]
  %s1 = inlined_call_operand.vmem [shape: f32[5,256], index: 1, kind: input, shape index: {}]
  %s2 = inlined_call_operand.vmem [shape: bf16[40,32], index: 2, kind: input, shape index: {}]
  %s3 = inlined_call_operand.vmem [shape: f32[40,1], index: 3, kind: input, shape index: {}]
  %s4 = inlined_call_operand.vmem [shape: bf16[32,144], index: 4, kind: input, shape index: {}]
  %s5 = inlined_call_operand.vmem [shape: f32[32,1], index: 5, kind: input, shape index: {}]
  %s6 = inlined_call_operand.vmem [shape: bf16[16,200], index: 6, kind: input, shape index: {}]
  %s7 = inlined_call_operand.vmem [shape: f32[16,1], index: 7, kind: input, shape index: {}]
  %s8 = inlined_call_operand.vmem [shape: bf16[16,32], index: 8, kind: input, shape index: {}]
  %s9 = inlined_call_operand.vmem [shape: f32[16,1], index: 9, kind: input, shape index: {}]
  %s10 = inlined_call_operand.vmem [shape: bf16[2,80,256], index: 10, kind: output, shape index: {}]
  %s11 = sld [smem:[#allocation0]]
  $region73: #{inception_block_forward.1} parent=0
    _
  %s13 = ssub.s32 1, %s11
  %s14 = scalar_select 0, %s13, %s11
  loop: start=0, step=1, limit=4
  $region2: #{inception_block_forward.1} parent=0 // loop_pre_header
    _
  $region3: #{inception_block_forward.1} parent=0 // loop_header
    %s16 = sphi 0, %s20
    %p17 = scmp.ge.s32.totalorder %s16, 4
    %s26 = sphi 0, %s28
    %s29 = sphi 0, %s26
    %s30 = sphi 0, %s29
    %s46 = sphi 0, %s30
    %s50 = sphi 0, %s50
    %s52 = sphi 0, %s50
    %s53 = sphi 0, %s52
    %s67 = sphi 0, %s53
    %s71 = sphi 0, %s71
    %s73 = sphi 0, %s71
    %s74 = sphi 0, %s73
    %s88 = sphi 0, %s74
    %s92 = sphi 0, %s92
    %s94 = sphi 0, %s92
    %s95 = sphi 0, %s94
    %s109 = sphi 0, %s95
    %s113 = sphi 0, %s113
    %s115 = sphi 0, %s113
    %s116 = sphi 0, %s115
    %s130 = sphi 0, %s116
    %s134 = sphi 0, %s134
    %s136 = sphi 0, %s134
    %s137 = sphi 0, %s136
    %s151 = sphi 0, %s137
    %s155 = sphi 0, %s155
    %s157 = sphi 0, %s155
    %s158 = sphi 0, %s157
    %s172 = sphi 0, %s158
    %s176 = sphi 0, %s176
    %s178 = sphi 0, %s176
    %s179 = sphi 0, %s178
    %s193 = sphi 0, %s179
    %s197 = sphi 0, %s197
    %s199 = sphi 0, %s197
    %s200 = sphi 0, %s199
    %s214 = sphi 0, %s200
    %s218 = sphi 0, %s218
    %s220 = sphi 0, %s218
    %s221 = sphi 0, %s220
    %s235 = sphi 0, %s221
    %s241 = sphi 0, %s243
    %s244 = sphi 0, %s241
    %s245 = sphi 0, %s244
    %s261 = sphi 0, %s245
  $region4: #{inception_block_forward.1} parent=0 // loop_header_branch
    %19 = sbr.rel (%p17) target = $region8
  $region5: #{inception_block_forward.1} parent=0 // loop_body
    %s21 = ssub.s32 %s16, 1
    %s22 = ssub.s32 %s16, 2
    %s23 = sadd.s32 %s16, 1
    %s24 = ssub.s32 %s16, %s23
    %p25 = scmp.eq.s32.totalorder %s24, 0
    %s27 = sadd.s32 %s26, 1
    %s28 = scalar_select %p25, %s26, %s27
    %p31 = pneg %p25
    %p32 = scmp.eq.s32.totalorder %s16, 1
    %p33 = por %p31, %p32
    %p34 = scmp.ne.s32.totalorder %s26, %s29
    %p35 = scmp.eq.s32.totalorder %s16, 0
    %p36 = por %p34, %p35
    %p37 = scmp.ne.s32.totalorder %s26, %s29
    %p38 = scmp.eq.s32.totalorder %s21, 1
    %p39 = por %p37, %p38
    %p40 = scmp.ne.s32.totalorder %s29, %s30
    %p41 = scmp.eq.s32.totalorder %s21, 0
    %p42 = por %p40, %p41
    %p43 = scmp.ne.s32.totalorder %s29, %s30
    %p44 = scmp.eq.s32.totalorder %s22, 1
    %p45 = por %p43, %p44
    %p47 = scmp.ne.s32.totalorder %s30, %s46
    %p48 = scmp.eq.s32.totalorder %s22, 0
    %p49 = por %p47, %p48
    %s51 = sadd.s32 %s50, 1
    %p54 = scmp.eq.s32.totalorder %s16, 1
    %p55 = scmp.ne.s32.totalorder %s50, %s52
    %p56 = scmp.eq.s32.totalorder %s16, 0
    %p57 = por %p55, %p56
    %p58 = scmp.ne.s32.totalorder %s50, %s52
    %p59 = scmp.eq.s32.totalorder %s21, 1
    %p60 = por %p58, %p59
    %p61 = scmp.ne.s32.totalorder %s52, %s53
    %p62 = scmp.eq.s32.totalorder %s21, 0
    %p63 = por %p61, %p62
    %p64 = scmp.ne.s32.totalorder %s52, %s53
    %p65 = scmp.eq.s32.totalorder %s22, 1
    %p66 = por %p64, %p65
    %p68 = scmp.ne.s32.totalorder %s53, %s67
    %p69 = scmp.eq.s32.totalorder %s22, 0
    %p70 = por %p68, %p69
    %s72 = sadd.s32 %s71, 1
    %p75 = scmp.eq.s32.totalorder %s16, 1
    %p76 = scmp.ne.s32.totalorder %s71, %s73
    %p77 = scmp.eq.s32.totalorder %s16, 0
    %p78 = por %p76, %p77
    %p79 = scmp.ne.s32.totalorder %s71, %s73
    %p80 = scmp.eq.s32.totalorder %s21, 1
    %p81 = por %p79, %p80
    %p82 = scmp.ne.s32.totalorder %s73, %s74
    %p83 = scmp.eq.s32.totalorder %s21, 0
    %p84 = por %p82, %p83
    %p85 = scmp.ne.s32.totalorder %s73, %s74
    %p86 = scmp.eq.s32.totalorder %s22, 1
    %p87 = por %p85, %p86
    %p89 = scmp.ne.s32.totalorder %s74, %s88
    %p90 = scmp.eq.s32.totalorder %s22, 0
    %p91 = por %p89, %p90
    %s93 = sadd.s32 %s92, 1
    %p96 = scmp.eq.s32.totalorder %s16, 1
    %p97 = scmp.ne.s32.totalorder %s92, %s94
    %p98 = scmp.eq.s32.totalorder %s16, 0
    %p99 = por %p97, %p98
    %p100 = scmp.ne.s32.totalorder %s92, %s94
    %p101 = scmp.eq.s32.totalorder %s21, 1
    %p102 = por %p100, %p101
    %p103 = scmp.ne.s32.totalorder %s94, %s95
    %p104 = scmp.eq.s32.totalorder %s21, 0
    %p105 = por %p103, %p104
    %p106 = scmp.ne.s32.totalorder %s94, %s95
    %p107 = scmp.eq.s32.totalorder %s22, 1
    %p108 = por %p106, %p107
    %p110 = scmp.ne.s32.totalorder %s95, %s109
    %p111 = scmp.eq.s32.totalorder %s22, 0
    %p112 = por %p110, %p111
    %s114 = sadd.s32 %s113, 1
    %p117 = scmp.eq.s32.totalorder %s16, 1
    %p118 = scmp.ne.s32.totalorder %s113, %s115
    %p119 = scmp.eq.s32.totalorder %s16, 0
    %p120 = por %p118, %p119
    %p121 = scmp.ne.s32.totalorder %s113, %s115
    %p122 = scmp.eq.s32.totalorder %s21, 1
    %p123 = por %p121, %p122
    %p124 = scmp.ne.s32.totalorder %s115, %s116
    %p125 = scmp.eq.s32.totalorder %s21, 0
    %p126 = por %p124, %p125
    %p127 = scmp.ne.s32.totalorder %s115, %s116
    %p128 = scmp.eq.s32.totalorder %s22, 1
    %p129 = por %p127, %p128
    %p131 = scmp.ne.s32.totalorder %s116, %s130
    %p132 = scmp.eq.s32.totalorder %s22, 0
    %p133 = por %p131, %p132
    %s135 = sadd.s32 %s134, 1
    %p138 = scmp.eq.s32.totalorder %s16, 1
    %p139 = scmp.ne.s32.totalorder %s134, %s136
    %p140 = scmp.eq.s32.totalorder %s16, 0
    %p141 = por %p139, %p140
    %p142 = scmp.ne.s32.totalorder %s134, %s136
    %p143 = scmp.eq.s32.totalorder %s21, 1
    %p144 = por %p142, %p143
    %p145 = scmp.ne.s32.totalorder %s136, %s137
    %p146 = scmp.eq.s32.totalorder %s21, 0
    %p147 = por %p145, %p146
    %p148 = scmp.ne.s32.totalorder %s136, %s137
    %p149 = scmp.eq.s32.totalorder %s22, 1
    %p150 = por %p148, %p149
    %p152 = scmp.ne.s32.totalorder %s137, %s151
    %p153 = scmp.eq.s32.totalorder %s22, 0
    %p154 = por %p152, %p153
    %s156 = sadd.s32 %s155, 1
    %p159 = scmp.eq.s32.totalorder %s16, 1
    %p160 = scmp.ne.s32.totalorder %s155, %s157
    %p161 = scmp.eq.s32.totalorder %s16, 0
    %p162 = por %p160, %p161
    %p163 = scmp.ne.s32.totalorder %s155, %s157
    %p164 = scmp.eq.s32.totalorder %s21, 1
    %p165 = por %p163, %p164
    %p166 = scmp.ne.s32.totalorder %s157, %s158
    %p167 = scmp.eq.s32.totalorder %s21, 0
    %p168 = por %p166, %p167
    %p169 = scmp.ne.s32.totalorder %s157, %s158
    %p170 = scmp.eq.s32.totalorder %s22, 1
    %p171 = por %p169, %p170
    %p173 = scmp.ne.s32.totalorder %s158, %s172
    %p174 = scmp.eq.s32.totalorder %s22, 0
    %p175 = por %p173, %p174
    %s177 = sadd.s32 %s176, 1
    %p180 = scmp.eq.s32.totalorder %s16, 1
    %p181 = scmp.ne.s32.totalorder %s176, %s178
    %p182 = scmp.eq.s32.totalorder %s16, 0
    %p183 = por %p181, %p182
    %p184 = scmp.ne.s32.totalorder %s176, %s178
    %p185 = scmp.eq.s32.totalorder %s21, 1
    %p186 = por %p184, %p185
    %p187 = scmp.ne.s32.totalorder %s178, %s179
    %p188 = scmp.eq.s32.totalorder %s21, 0
    %p189 = por %p187, %p188
    %p190 = scmp.ne.s32.totalorder %s178, %s179
    %p191 = scmp.eq.s32.totalorder %s22, 1
    %p192 = por %p190, %p191
    %p194 = scmp.ne.s32.totalorder %s179, %s193
    %p195 = scmp.eq.s32.totalorder %s22, 0
    %p196 = por %p194, %p195
    %s198 = sadd.s32 %s197, 1
    %p201 = scmp.eq.s32.totalorder %s16, 1
    %p202 = scmp.ne.s32.totalorder %s197, %s199
    %p203 = scmp.eq.s32.totalorder %s16, 0
    %p204 = por %p202, %p203
    %p205 = scmp.ne.s32.totalorder %s197, %s199
    %p206 = scmp.eq.s32.totalorder %s21, 1
    %p207 = por %p205, %p206
    %p208 = scmp.ne.s32.totalorder %s199, %s200
    %p209 = scmp.eq.s32.totalorder %s21, 0
    %p210 = por %p208, %p209
    %p211 = scmp.ne.s32.totalorder %s199, %s200
    %p212 = scmp.eq.s32.totalorder %s22, 1
    %p213 = por %p211, %p212
    %p215 = scmp.ne.s32.totalorder %s200, %s214
    %p216 = scmp.eq.s32.totalorder %s22, 0
    %p217 = por %p215, %p216
    %s219 = sadd.s32 %s218, 1
    %p222 = scmp.eq.s32.totalorder %s16, 1
    %p223 = scmp.ne.s32.totalorder %s218, %s220
    %p224 = scmp.eq.s32.totalorder %s16, 0
    %p225 = por %p223, %p224
    %p226 = scmp.ne.s32.totalorder %s218, %s220
    %p227 = scmp.eq.s32.totalorder %s21, 1
    %p228 = por %p226, %p227
    %p229 = scmp.ne.s32.totalorder %s220, %s221
    %p230 = scmp.eq.s32.totalorder %s21, 0
    %p231 = por %p229, %p230
    %p232 = scmp.ne.s32.totalorder %s220, %s221
    %p233 = scmp.eq.s32.totalorder %s22, 1
    %p234 = por %p232, %p233
    %p236 = scmp.ne.s32.totalorder %s221, %s235
    %p237 = scmp.eq.s32.totalorder %s22, 0
    %p238 = por %p236, %p237
    %s239 = ssub.s32 %s16, %s23
    %p240 = scmp.eq.s32.totalorder %s239, 0
    %s242 = sadd.s32 %s241, 1
    %s243 = scalar_select %p240, %s241, %s242
    %p246 = pneg %p240
    %p247 = scmp.eq.s32.totalorder %s16, 1
    %p248 = por %p246, %p247
    %p249 = scmp.ne.s32.totalorder %s241, %s244
    %p250 = scmp.eq.s32.totalorder %s16, 0
    %p251 = por %p249, %p250
    %p252 = scmp.ne.s32.totalorder %s241, %s244
    %p253 = scmp.eq.s32.totalorder %s21, 1
    %p254 = por %p252, %p253
    %p255 = scmp.ne.s32.totalorder %s244, %s245
    %p256 = scmp.eq.s32.totalorder %s21, 0
    %p257 = por %p255, %p256
    %p258 = scmp.ne.s32.totalorder %s244, %s245
    %p259 = scmp.eq.s32.totalorder %s22, 1
    %p260 = por %p258, %p259
    %p262 = scmp.ne.s32.totalorder %s245, %s261
    %p263 = scmp.eq.s32.totalorder %s22, 0
    %p264 = por %p262, %p263
    %p265 = scmp.le.s32.totalorder 1, %s16
    %p266 = scmp.lt.s32.totalorder %s16, 3
    %p267 = pnand %p265, %p266
    %p268 = pneg %p267
    // Predicated region
    $region9: #{inception_block_forward.1} parent=5 // pred_check
      _
    $region10: #{inception_block_forward.1} parent=5 // pred_check_branch
      %270 = sbr.rel (%p267) target = $region12
    $region11: #{inception_block_forward.1} parent=5 // pred_region
      %s271 = ssub.s32 %s16, 1
      // Predicated region
      $region13: #{inception_block_forward.1} parent=11 // pred_check
        %p272 = pneg %p63
      $region14: #{inception_block_forward.1} parent=11 // pred_check_branch
        %274 = sbr.rel (%p272) target = $region16
      $region15: #{inception_block_forward.1} parent=11 // pred_region
        _
      $region16: #{inception_block_forward.1} parent=11 // pred_fallthru
        _
      // Predicated region
      $region17: #{inception_block_forward.1} parent=11 // pred_check
        %p275 = pneg %p84
      $region18: #{inception_block_forward.1} parent=11 // pred_check_branch
        %277 = sbr.rel (%p275) target = $region20
      $region19: #{inception_block_forward.1} parent=11 // pred_region
        _
      $region20: #{inception_block_forward.1} parent=11 // pred_fallthru
        _
      // Predicated region
      $region21: #{inception_block_forward.1} parent=11 // pred_check
        %p278 = pneg %p105
      $region22: #{inception_block_forward.1} parent=11 // pred_check_branch
        %280 = sbr.rel (%p278) target = $region24
      $region23: #{inception_block_forward.1} parent=11 // pred_region
        _
      $region24: #{inception_block_forward.1} parent=11 // pred_fallthru
        _
      // Predicated region
      $region25: #{inception_block_forward.1} parent=11 // pred_check
        %p281 = pneg %p126
      $region26: #{inception_block_forward.1} parent=11 // pred_check_branch
        %283 = sbr.rel (%p281) target = $region28
      $region27: #{inception_block_forward.1} parent=11 // pred_region
        _
      $region28: #{inception_block_forward.1} parent=11 // pred_fallthru
        _
      // Predicated region
      $region29: #{inception_block_forward.1} parent=11 // pred_check
        %p284 = pneg %p147
      $region30: #{inception_block_forward.1} parent=11 // pred_check_branch
        %286 = sbr.rel (%p284) target = $region32
      $region31: #{inception_block_forward.1} parent=11 // pred_region
        _
      $region32: #{inception_block_forward.1} parent=11 // pred_fallthru
        _
      // Predicated region
      $region33: #{inception_block_forward.1} parent=11 // pred_check
        %p287 = pneg %p168
      $region34: #{inception_block_forward.1} parent=11 // pred_check_branch
        %289 = sbr.rel (%p287) target = $region36
      $region35: #{inception_block_forward.1} parent=11 // pred_region
        _
      $region36: #{inception_block_forward.1} parent=11 // pred_fallthru
        _
      // Predicated region
      $region37: #{inception_block_forward.1} parent=11 // pred_check
        %p290 = pneg %p189
      $region38: #{inception_block_forward.1} parent=11 // pred_check_branch
        %292 = sbr.rel (%p290) target = $region40
      $region39: #{inception_block_forward.1} parent=11 // pred_region
        _
      $region40: #{inception_block_forward.1} parent=11 // pred_fallthru
        _
      // Predicated region
      $region41: #{inception_block_forward.1} parent=11 // pred_check
        %p293 = pneg %p210
      $region42: #{inception_block_forward.1} parent=11 // pred_check_branch
        %295 = sbr.rel (%p293) target = $region44
      $region43: #{inception_block_forward.1} parent=11 // pred_region
        _
      $region44: #{inception_block_forward.1} parent=11 // pred_fallthru
        _
      // Predicated region
      $region45: #{inception_block_forward.1} parent=11 // pred_check
        %p296 = pneg %p231
      $region46: #{inception_block_forward.1} parent=11 // pred_check_branch
        %298 = sbr.rel (%p296) target = $region48
      $region47: #{inception_block_forward.1} parent=11 // pred_region
        _
      $region48: #{inception_block_forward.1} parent=11 // pred_fallthru
        _
    $region12: #{inception_block_forward.1} parent=5 // pred_fallthru
      _
    %p299 = scmp.lt.s32.totalorder %s16, 2
    // Predicated region
    $region49: #{inception_block_forward.1} parent=5 // pred_check
      %p300 = pneg %p299
    $region50: #{inception_block_forward.1} parent=5 // pred_check_branch
      %302 = sbr.rel (%p300) target = $region52
    $region51: #{inception_block_forward.1} parent=5 // pred_region
      // Predicated region
      $region53: #{inception_block_forward.1} parent=51 // pred_check
        %p303 = pneg %p36
      $region54: #{inception_block_forward.1} parent=51 // pred_check_branch
        %305 = sbr.rel (%p303) target = $region56
      $region55: #{inception_block_forward.1} parent=51 // pred_region
        %p306 = scmp.lt.s32.totalorder %s16, 1
        %s307 = scalar_select %p306, %s16, 1
        %s308 = smul.addr %s307, 8
        %s309 = smul.addr %s308, 4
        %s310 = scalar_lea.vmem %s0, %s309
      $region56: #{inception_block_forward.1} parent=51 // pred_fallthru
        _
    $region52: #{inception_block_forward.1} parent=5 // pred_fallthru
      _
    %p311 = scmp.le.s32.totalorder 1, %s16
    %p312 = scmp.lt.s32.totalorder %s16, 3
    %p313 = pnand %p311, %p312
    %p314 = pneg %p313
    // Predicated region
    $region57: #{inception_block_forward.1} parent=5 // pred_check
      _
    $region58: #{inception_block_forward.1} parent=5 // pred_check_branch
      %316 = sbr.rel (%p313) target = $region60
    $region59: #{inception_block_forward.1} parent=5 // pred_region
      %s317 = ssub.s32 %s16, 1
      %p318 = scmp.lt.s32.totalorder %s21, 1
      %s319 = scalar_select %p318, %s21, 1
      %s320 = smul.addr %s319, 8
      %s321 = smul.addr %s320, 4
      %s322 = scalar_lea.vmem %s0, %s321
      %p323 = pneg %p42
      %p324 = pneg %p39
      %p325 = pneg %p63
      %p326 = pneg %p60
      %p327 = pneg %p84
      %p328 = pneg %p81
      %p329 = pneg %p105
      %p330 = pneg %p102
      %p331 = pneg %p126
      %p332 = pneg %p123
      %p333 = pneg %p147
      %p334 = pneg %p144
      %p335 = pneg %p168
      %p336 = pneg %p165
      %p337 = pneg %p189
      %p338 = pneg %p186
      %p339 = pneg %p210
      %p340 = pneg %p207
      %p341 = pneg %p231
      %p342 = pneg %p228
      %p343 = pneg %p257
      %p344 = pneg %p254
      %p345 = scmp.lt.s32.totalorder %s21, 1
      %s346 = scalar_select %p345, %s21, 1
      %s347 = smul.addr %s346, 20
      %s348 = smul.addr %s347, 4
      %s349 = scalar_lea.vmem %s10, %s348
      %p350 = scmp.lt.s32.totalorder %s21, 1
      %s351 = scalar_select %p350, %s21, 1
      %s352 = smul.addr %s351, 8
      %s353 = smul.addr %s352, 4
      %s354 = scalar_lea.vmem %s0, %s353
      %p355 = scmp.lt.s32.totalorder %s21, 1
      %s356 = scalar_select %p355, %s21, 1
      %s357 = smul.addr %s356, 20
      %s358 = smul.addr %s357, 4
      %s359 = scalar_lea.vmem %s10, %s358
      %v364 = vld [vmem:[%s354] sm:$0xff]
      %v365 = vld [vmem:[%s354 + $0x8] sm:$0xff]
      %v366 = vld [vmem:[%s354 + $0x10] sm:$0xff]
      %v367 = vld [vmem:[%s354 + $0x18] sm:$0xff]
      %v368 = vld [vmem:[%s2] sm:$0xf]
      %v369 = vld [vmem:[%s2 + $0x4] sm:$0xf]
      %v370 = vld [vmem:[%s2 + $0x8] sm:$0xf]
      %v371 = vld [vmem:[%s2 + $0xc] sm:$0xf]
      %v372 = vld [vmem:[%s2 + $0x10] sm:$0xf]
      %v373 = vld [vmem:[%s3] sm:$0xff]
      %v374 = vld [vmem:[%s3 + $0x8] sm:$0xff]
      %v375 = vld [vmem:[%s3 + $0x10] sm:$0xff]
      %v376 = vld [vmem:[%s3 + $0x18] sm:$0xff]
      %v377 = vld [vmem:[%s3 + $0x20] sm:$0xff]
      %379 = vset.pattern.permute.xlu0 0
      %380 = vperm.xlu0 %379, %v373
      %v381 = vpop.permute.xlu0 %380
      %384 = vset.pattern.permute.xlu0 0
      %385 = vperm.xlu0 %384, %v374
      %v386 = vpop.permute.xlu0 %385
      %389 = vset.pattern.permute.xlu0 0
      %390 = vperm.xlu0 %389, %v375
      %v391 = vpop.permute.xlu0 %390
      %394 = vset.pattern.permute.xlu0 0
      %395 = vperm.xlu0 %394, %v376
      %v396 = vpop.permute.xlu0 %395
      %399 = vset.pattern.permute.xlu0 0
      %400 = vperm.xlu0 %399, %v377
      %v401 = vpop.permute.xlu0 %400
      %v408 = vunpack.c.l.b16 %v368
      %v409 = vunpack.c.l.b16 %v369
      %v410 = vunpack.c.l.b16 %v370
      %v411 = vunpack.c.l.b16 %v371
      %v412 = vunpack.c.l.b16 %v372
      %v413 = vpack.c.b16 %v409, %v408
      %v414 = vpack.c.b16 %v411, %v410
      %v415 = vpack.c.b16 %v412, %v412
      %v420 = vunpack.c.l.b16 %v364
      %v421 = vunpack.c.h.b16 %v364
      %v422 = vunpack.c.l.b16 %v365
      %v423 = vunpack.c.h.b16 %v365
      %v424 = vunpack.c.l.b16 %v366
      %v425 = vunpack.c.h.b16 %v366
      %v426 = vunpack.c.l.b16 %v367
      %v427 = vunpack.c.h.b16 %v367
      %v428 = vpack.c.b16 %v422, %v420
      %v429 = vpack.c.b16 %v423, %v421
      %v430 = vpack.c.b16 %v426, %v424
      %v431 = vpack.c.b16 %v427, %v425
      %vm436 = vcmask 261120
      %v438 = vsel %vm436, %v413, 0
      %v441 = vsel %vm436, %v414, 0
      %v444 = vsel %vm436, %v415, 0
      %446 = vmatprep.subr.bf16.mxu0 %v429
      %447 = vmatpush1.bf16.msra.mxu0 %v428
      %448 = vmatprep.subr.bf16.mxu0 %v431
      %449 = vmatpush1.bf16.msra.mxu0 %v430
      %450 = vmatprep.subr.bf16.mxu0 0
      %451 = vmatpush1.bf16.msra.mxu0 0
      %452 = vmatprep.subr.bf16.mxu0 0
      %453 = vmatpush1.bf16.msra.mxu0 0
      %454 = vmatprep.subr.bf16.mxu0 0
      %455 = vmatpush1.bf16.msra.mxu0 0
      %456 = vmatprep.subr.bf16.mxu0 0
      %457 = vmatpush1.bf16.msra.mxu0 0
      %458 = vmatprep.subr.bf16.mxu0 0
      %459 = vmatpush1.bf16.msra.mxu0 0
      %460 = vmatprep.subr.bf16.mxu0 0
      %461 = vmatpush1.bf16.msra.mxu0 0
      %462 = vmatprep.subr.bf16.mxu0 0
      %463 = vmatpush1.bf16.msra.mxu0 0
      %464 = vmatprep.subr.bf16.mxu0 0
      %465 = vmatpush1.bf16.msra.mxu0 0
      %466 = vmatprep.subr.bf16.mxu0 0
      %467 = vmatpush1.bf16.msra.mxu0 0
      %468 = vmatprep.subr.bf16.mxu0 0
      %469 = vmatpush1.bf16.msra.mxu0 0
      %470 = vmatprep.subr.bf16.mxu0 0
      %471 = vmatpush1.bf16.msra.mxu0 0
      %472 = vmatprep.subr.bf16.mxu0 0
      %473 = vmatpush1.bf16.msra.mxu0 0
      %474 = vmatprep.subr.bf16.mxu0 0
      %475 = vmatpush1.bf16.msra.mxu0 0
      %476 = vmatprep.subr.bf16.mxu0 0
      %477 = vmatpush1.bf16.msra.mxu0 0
      %478 = vmatprep.mubr.bf16.mxu0 0
      %479 = vmatmul.mubr.bf16.gmra.mrb[0].mxu0 %v438
      %v480 = vpop.f32.mrb[0].mxu0
      %v481 = vadd.f32 %v381, %v480
      %v482 = vpop.f32.mrb[0].mxu0
      %v483 = vadd.f32 %v381, %v482
      %v484 = vpop.f32.mrb[0].mxu0
      %v485 = vadd.f32 %v386, %v484
      %v486 = vpop.f32.mrb[0].mxu0
      %v487 = vadd.f32 %v386, %v486
      %488 = vmatprep.mubr.bf16.mxu0 0
      %489 = vmatmul.mubr.bf16.gmra.mrb[0].mxu0 %v441
      %v490 = vpop.f32.mrb[0].mxu0
      %v491 = vadd.f32 %v391, %v490
      %v492 = vpop.f32.mrb[0].mxu0
      %v493 = vadd.f32 %v391, %v492
      %v494 = vpop.f32.mrb[0].mxu0
      %v495 = vadd.f32 %v396, %v494
      %v496 = vpop.f32.mrb[0].mxu0
      %v497 = vadd.f32 %v396, %v496
      %498 = vmatprep.mubr.bf16.mxu0 0
      %499 = vmatmul.mubr.bf16.gmra.mrb[0].mxu0 %v444
      %v500 = vpop.f32.mrb[0].mxu0
      %v501 = vadd.f32 %v401, %v500
      %v502 = vpop.f32.mrb[0].mxu0
      %v503 = vadd.f32 %v401, %v502
      %v504 = vpop.f32.mrb[0].mxu0
      %v505 = vpop.f32.mrb[0].mxu0
      %506 = vdwg.mxu0
      %v507 = vmax.f32 %v481, 0.0
      %v508 = vmax.f32 %v483, 0.0
      %v509 = vmax.f32 %v485, 0.0
      %v510 = vmax.f32 %v487, 0.0
      %v511 = vmax.f32 %v491, 0.0
      %v512 = vmax.f32 %v493, 0.0
      %v513 = vmax.f32 %v495, 0.0
      %v514 = vmax.f32 %v497, 0.0
      %v515 = vmax.f32 %v501, 0.0
      %v516 = vmax.f32 %v503, 0.0
      %517 = vst [vmem:[#allocation2] sm:$0xff] %v507
      %518 = vst [vmem:[#allocation2 + $0x8] sm:$0xff] %v508
      %519 = vst [vmem:[#allocation2 + $0x10] sm:$0xff] %v509
      %520 = vst [vmem:[#allocation2 + $0x18] sm:$0xff] %v510
      %521 = vst [vmem:[#allocation2 + $0x20] sm:$0xff] %v511
      %522 = vst [vmem:[#allocation2 + $0x28] sm:$0xff] %v512
      %523 = vst [vmem:[#allocation2 + $0x30] sm:$0xff] %v513
      %524 = vst [vmem:[#allocation2 + $0x38] sm:$0xff] %v514
      %525 = vst [vmem:[#allocation2 + $0x40] sm:$0xff] %v515
      %526 = vst [vmem:[#allocation2 + $0x48] sm:$0xff] %v516
      %v527 = vpack.c.bf16 %v509, %v507
      %v528 = vpack.c.bf16 %v510, %v508
      %v531 = vunpack.c.l.b16 %v527
      %v532 = vunpack.c.l.b16 %v528
      %v533 = vunpack.c.h.b16 %v527
      %v534 = vunpack.c.h.b16 %v528
      %v535 = vpack.c.b16 %v532, %v531
      %v536 = vpack.c.b16 %v534, %v533
      %539 = vst [vmem:[%s359] sm:$0xff] %v535
      %540 = vst [vmem:[%s359 + $0x8] sm:$0xff] %v536
      %541 = vst [vmem:[#allocation3] sm:$0xff] 0.0
      %542 = vst [vmem:[#allocation3 + $0x8] sm:$0xff] 0.0
      %543 = vst [vmem:[#allocation3 + $0x10] sm:$0xff] 0.0
      %544 = vst [vmem:[#allocation3 + $0x18] sm:$0xff] 0.0
      %545 = vst [vmem:[#allocation3 + $0x20] sm:$0xff] 0.0
      %546 = vst [vmem:[#allocation3 + $0x28] sm:$0xff] 0.0
      %547 = vst [vmem:[#allocation3 + $0x30] sm:$0xff] 0.0
      %548 = vst [vmem:[#allocation3 + $0x38] sm:$0xff] 0.0
      %549 = vst [vmem:[#allocation3 + $0x40] sm:$0xff] 0.0
      %550 = vst [vmem:[#allocation3 + $0x48] sm:$0xff] 0.0
      %551 = vst [vmem:[#allocation3 + $0x50] sm:$0xff] 0.0
      %552 = vst [vmem:[#allocation3 + $0x58] sm:$0xff] 0.0
      %553 = vst [vmem:[#allocation3 + $0x60] sm:$0xff] 0.0
      %554 = vst [vmem:[#allocation3 + $0x68] sm:$0xff] 0.0
      %555 = vst [vmem:[#allocation3 + $0x70] sm:$0xff] 0.0
      %556 = vst [vmem:[#allocation3 + $0x78] sm:$0xff] 0.0
      %557 = vst [vmem:[#allocation3 + $0x80] sm:$0xff] 0.0
      %558 = vst [vmem:[#allocation3 + $0x88] sm:$0xff] 0.0
      %559 = vst [vmem:[#allocation3 + $0x90] sm:$0xff] 0.0
      %560 = vst [vmem:[#allocation3 + $0x98] sm:$0xff] 0.0
      %561 = vst [vmem:[#allocation3 + $0xa0] sm:$0xff] 0.0
      %562 = vst [vmem:[#allocation3 + $0xa8] sm:$0xff] 0.0
      %563 = vst [vmem:[#allocation3 + $0xb0] sm:$0xff] 0.0
      %564 = vst [vmem:[#allocation3 + $0xb8] sm:$0xff] 0.0
      %565 = vst [vmem:[#allocation3 + $0xc0] sm:$0xff] 0.0
      %566 = vst [vmem:[#allocation3 + $0xc8] sm:$0xff] 0.0
      %567 = vst [vmem:[#allocation3 + $0xd0] sm:$0xff] 0.0
      %568 = vst [vmem:[#allocation3 + $0xd8] sm:$0xff] 0.0
      %569 = vst [vmem:[#allocation3 + $0xe0] sm:$0xff] 0.0
      %570 = vst [vmem:[#allocation3 + $0xe8] sm:$0xff] 0.0
      %571 = vst [vmem:[#allocation3 + $0xf0] sm:$0xff] 0.0
      %572 = vst [vmem:[#allocation3 + $0xf8] sm:$0xff] 0.0
      %573 = vst [vmem:[#allocation3 + $0x100] sm:$0xff] 0.0
      %574 = vst [vmem:[#allocation3 + $0x108] sm:$0xff] 0.0
      %575 = vst [vmem:[#allocation3 + $0x110] sm:$0xff] 0.0
      %576 = vst [vmem:[#allocation3 + $0x118] sm:$0xff] 0.0
      %v577 = vld [vmem:[#allocation2 + $0x20] sm:$0xff]
      %v578 = vld [vmem:[#allocation2 + $0x28] sm:$0xff]
      %v579 = vld [vmem:[#allocation2 + $0x30] sm:$0xff]
      %v580 = vld [vmem:[#allocation2 + $0x38] sm:$0xff]
      %s581 = scalar_lea.vmem %s1, 1
      %v582 = vld [vmem:[%s581] ss:$8 sm:$0x3]
      %v584 = vlaneseq
      %v585 = vshrl.u32 %v584, 7
      %v586 = vsub.s32 0, %v585
      %v587 = vrot.slane %v582, %v586
      %v588 = vlaneseq
      %v589 = vshrl.u32 %v588, 7
      %v590 = vsub.s32 1, %v589
      %v591 = vrot.slane %v582, %v590
      %592 = vrot.lane.b32.xlu0 %v587, 111
      %v593 = vpop.permute.xlu0 %592
      %594 = vrot.lane.b32.xlu0 %v591, 111
      %v595 = vpop.permute.xlu0 %594
      %vm596 = vcmask 908288
      %v597 = vsel %vm596, %v593, %v595
      %v600 = vmul.f32 %v577, %v597
      %v601 = vmul.f32 %v578, %v595
      %v602 = vmul.f32 %v579, %v597
      %v603 = vmul.f32 %v580, %v595
      %608 = vrot.lane.b32.xlu0 %v600, 17
      %v609 = vpop.permute.xlu0 %608
      %610 = vrot.lane.b32.xlu0 %v601, 17
      %v611 = vpop.permute.xlu0 %610
      %612 = vrot.lane.b32.xlu0 %v602, 17
      %v613 = vpop.permute.xlu0 %612
      %614 = vrot.lane.b32.xlu0 %v603, 17
      %v615 = vpop.permute.xlu0 %614
      %vm616 = vcmask 138240
      %v617 = vsel %vm616, %v609, %v611
      %v618 = vsel %vm616, %v613, %v615
      %vm623 = vcmask 1047688
      %624 = vst.msk [vmem:[#allocation3] sm:$0xff] %vm623, %v609
      %625 = vst [vmem:[#allocation3 + $0x8] sm:$0xff] %v617
      %626 = vst.msk [vmem:[#allocation3 + $0x10] sm:$0xff] %vm623, %v613
      %627 = vst [vmem:[#allocation3 + $0x18] sm:$0xff] %v618
      %v628 = vld [vmem:[#allocation2 + $0x20] sm:$0xff]
      %v629 = vld [vmem:[#allocation2 + $0x28] sm:$0xff]
      %v630 = vld [vmem:[#allocation2 + $0x30] sm:$0xff]
      %v631 = vld [vmem:[#allocation2 + $0x38] sm:$0xff]
      %636 = vrot.lane.b32.xlu0 %v628, 16
      %v637 = vpop.permute.xlu0 %636
      %638 = vrot.lane.b32.xlu0 %v629, 16
      %v639 = vpop.permute.xlu0 %638
      %640 = vrot.lane.b32.xlu0 %v630, 16
      %v641 = vpop.permute.xlu0 %640
      %642 = vrot.lane.b32.xlu0 %v631, 16
      %v643 = vpop.permute.xlu0 %642
      %vm644 = vcmask 130048
      %v645 = vsel %vm644, %v637, %v639
      %v646 = vsel %vm644, %v641, %v643
      %vm651 = vcmask 1047680
      %652 = vst.msk [vmem:[#allocation3 + $0x20] sm:$0xff] %vm651, %v637
      %653 = vst [vmem:[#allocation3 + $0x28] sm:$0xff] %v645
      %654 = vst.msk [vmem:[#allocation3 + $0x30] sm:$0xff] %vm651, %v641
      %655 = vst [vmem:[#allocation3 + $0x38] sm:$0xff] %v646
      %v656 = vld [vmem:[#allocation2 + $0x20] sm:$0xff]
      %v657 = vld [vmem:[#allocation2 + $0x28] sm:$0xff]
      %v658 = vld [vmem:[#allocation2 + $0x30] sm:$0xff]
      %v659 = vld [vmem:[#allocation2 + $0x38] sm:$0xff]
      %s660 = scalar_lea.vmem %s1, 3
      %v661 = vld [vmem:[%s660] ss:$8 sm:$0x3]
      %v663 = vlaneseq
      %v664 = vshrl.u32 %v663, 7
      %v665 = vsub.s32 0, %v664
      %v666 = vrot.slane %v661, %v665
      %v667 = vlaneseq
      %v668 = vshrl.u32 %v667, 7
      %v669 = vsub.s32 1, %v668
      %v670 = vrot.slane %v661, %v669
      %671 = vrot.lane.b32.xlu0 %v666, 113
      %v672 = vpop.permute.xlu0 %671
      %673 = vrot.lane.b32.xlu0 %v670, 113
      %v674 = vpop.permute.xlu0 %673
      %vm675 = vcmask 924672
      %v676 = vsel %vm675, %v672, %v674
      %v679 = vmul.f32 %v656, %v676
      %v680 = vmul.f32 %v657, %v674
      %v681 = vmul.f32 %v658, %v676
      %v682 = vmul.f32 %v659, %v674
      %687 = vrot.lane.b32.xlu0 %v679, 15
      %v688 = vpop.permute.xlu0 %687
      %689 = vrot.lane.b32.xlu0 %v680, 15
      %v690 = vpop.permute.xlu0 %689
      %691 = vrot.lane.b32.xlu0 %v681, 15
      %v692 = vpop.permute.xlu0 %691
      %693 = vrot.lane.b32.xlu0 %v682, 15
      %v694 = vpop.permute.xlu0 %693
      %vm695 = vcmask 121856
      %v696 = vsel %vm695, %v688, %v690
      %v697 = vsel %vm695, %v692, %v694
      %vm702 = vcmask 1047672
      %703 = vst.msk [vmem:[#allocation3 + $0x40] sm:$0xff] %vm702, %v688
      %704 = vst [vmem:[#allocation3 + $0x48] sm:$0xff] %v696
      %705 = vst.msk [vmem:[#allocation3 + $0x50] sm:$0xff] %vm702, %v692
      %706 = vst [vmem:[#allocation3 + $0x58] sm:$0xff] %v697
      %v707 = vld [vmem:[#allocation2 + $0x20] sm:$0xff]
      %v708 = vld [vmem:[#allocation2 + $0x28] sm:$0xff]
      %v709 = vld [vmem:[#allocation2 + $0x30] sm:$0xff]
      %v710 = vld [vmem:[#allocation2 + $0x38] sm:$0xff]
      %v711 = vld [vmem:[%s581] ss:$8 sm:$0x3]
      %v713 = vlaneseq
      %v714 = vshrl.u32 %v713, 7
      %v715 = vsub.s32 0, %v714
      %v716 = vrot.slane %v711, %v715
      %v717 = vlaneseq
      %v718 = vshrl.u32 %v717, 7
      %v719 = vsub.s32 1, %v718
      %v720 = vrot.slane %v711, %v719
      %721 = vrot.lane.b32.xlu0 %v716, 127
      %v722 = vpop.permute.xlu0 %721
      %723 = vrot.lane.b32.xlu0 %v720, 127
      %v724 = vpop.permute.xlu0 %723
      %vm725 = vcmask 1039360
      %v726 = vsel %vm725, %v722, %v724
      %v729 = vmul.f32 %v707, %v726
      %v730 = vmul.f32 %v708, %v724
      %v731 = vmul.f32 %v709, %v726
      %v732 = vmul.f32 %v710, %v724
      %737 = vrot.lane.b32.xlu0 %v729, 1
      %v738 = vpop.permute.xlu0 %737
      %739 = vrot.lane.b32.xlu0 %v730, 1
      %v740 = vpop.permute.xlu0 %739
      %741 = vrot.lane.b32.xlu0 %v731, 1
      %v742 = vpop.permute.xlu0 %741
      %743 = vrot.lane.b32.xlu0 %v732, 1
      %v744 = vpop.permute.xlu0 %743
      %vm745 = vcmask 7168
      %v746 = vsel %vm745, %v738, %v740
      %v747 = vsel %vm745, %v742, %v744
      %vm752 = vcmask 1047560
      %753 = vst.msk [vmem:[#allocation3 + $0x60] sm:$0xff] %vm752, %v738
      %754 = vst [vmem:[#allocation3 + $0x68] sm:$0xff] %v746
      %755 = vst.msk [vmem:[#allocation3 + $0x70] sm:$0xff] %vm752, %v742
      %756 = vst [vmem:[#allocation3 + $0x78] sm:$0xff] %v747
      %v757 = vld [vmem:[#allocation2 + $0x20] sm:$0xff]
      %v758 = vld [vmem:[#allocation2 + $0x28] sm:$0xff]
      %v759 = vld [vmem:[#allocation2 + $0x30] sm:$0xff]
      %v760 = vld [vmem:[#allocation2 + $0x38] sm:$0xff]
      %761 = vst [vmem:[#allocation3 + $0x80] sm:$0xff] %v757
      %762 = vst [vmem:[#allocation3 + $0x88] sm:$0xff] %v758
      %763 = vst [vmem:[#allocation3 + $0x90] sm:$0xff] %v759
      %764 = vst [vmem:[#allocation3 + $0x98] sm:$0xff] %v760
      %v765 = vld [vmem:[#allocation2 + $0x20] sm:$0xff]
      %v766 = vld [vmem:[#allocation2 + $0x28] sm:$0xff]
      %v767 = vld [vmem:[#allocation2 + $0x30] sm:$0xff]
      %v768 = vld [vmem:[#allocation2 + $0x38] sm:$0xff]
      %v769 = vld [vmem:[%s660] ss:$8 sm:$0x3]
      %v771 = vlaneseq
      %v772 = vshrl.u32 %v771, 7
      %v773 = vsub.s32 0, %v772
      %v774 = vrot.slane %v769, %v773
      %v775 = vlaneseq
      %v776 = vshrl.u32 %v775, 7
      %v777 = vsub.s32 1, %v776
      %v778 = vrot.slane %v769, %v777
      %779 = vrot.lane.b32.xlu0 %v774, 1
      %v780 = vpop.permute.xlu0 %779
      %781 = vrot.lane.b32.xlu0 %v778, 1
      %v782 = vpop.permute.xlu0 %781
      %v783 = vsel %vm745, %v780, %v782
      %v786 = vmul.f32 %v765, %v780
      %v787 = vmul.f32 %v766, %v783
      %v788 = vmul.f32 %v767, %v780
      %v789 = vmul.f32 %v768, %v783
      %794 = vrot.lane.b32.xlu0 %v786, 127
      %v795 = vpop.permute.xlu0 %794
      %796 = vrot.lane.b32.xlu0 %v787, 127
      %v797 = vpop.permute.xlu0 %796
      %798 = vrot.lane.b32.xlu0 %v788, 127
      %v799 = vpop.permute.xlu0 %798
      %800 = vrot.lane.b32.xlu0 %v789, 127
      %v801 = vpop.permute.xlu0 %800
      %v802 = vsel %vm725, %v795, %v797
      %v803 = vsel %vm725, %v799, %v801
      %808 = vst [vmem:[#allocation3 + $0xa0] sm:$0xff] %v802
      %809 = vst.msk [vmem:[#allocation3 + $0xa8] sm:$0xff] %vm725, %v797
      %810 = vst [vmem:[#allocation3 + $0xb0] sm:$0xff] %v803
      %811 = vst.msk [vmem:[#allocation3 + $0xb8] sm:$0xff] %vm725, %v801
      %v812 = vld [vmem:[#allocation2 + $0x20] sm:$0xff]
      %v813 = vld [vmem:[#allocation2 + $0x28] sm:$0xff]
      %v814 = vld [vmem:[#allocation2 + $0x30] sm:$0xff]
      %v815 = vld [vmem:[#allocation2 + $0x38] sm:$0xff]
      %v816 = vld [vmem:[%s581] ss:$8 sm:$0x3]
      %v818 = vlaneseq
      %v819 = vshrl.u32 %v818, 7
      %v820 = vsub.s32 0, %v819
      %v821 = vrot.slane %v816, %v820
      %v822 = vlaneseq
      %v823 = vshrl.u32 %v822, 7
      %v824 = vsub.s32 1, %v823
      %v825 = vrot.slane %v816, %v824
      %826 = vrot.lane.b32.xlu0 %v821, 15
      %v827 = vpop.permute.xlu0 %826
      %828 = vrot.lane.b32.xlu0 %v825, 15
      %v829 = vpop.permute.xlu0 %828
      %v830 = vsel %vm695, %v827, %v829
      %v833 = vmul.f32 %v812, %v827
      %v834 = vmul.f32 %v813, %v830
      %v835 = vmul.f32 %v814, %v827
      %v836 = vmul.f32 %v815, %v830
      %841 = vrot.lane.b32.xlu0 %v833, 113
      %v842 = vpop.permute.xlu0 %841
      %843 = vrot.lane.b32.xlu0 %v834, 113
      %v844 = vpop.permute.xlu0 %843
      %845 = vrot.lane.b32.xlu0 %v835, 113
      %v846 = vpop.permute.xlu0 %845
      %847 = vrot.lane.b32.xlu0 %v836, 113
      %v848 = vpop.permute.xlu0 %847
      %v849 = vsel %vm675, %v842, %v844
      %v850 = vsel %vm675, %v846, %v848
      %855 = vst [vmem:[#allocation3 + $0xc0] sm:$0xff] %v849
      %856 = vst.msk [vmem:[#allocation3 + $0xc8] sm:$0xff] %vm675, %v844
      %857 = vst [vmem:[#allocation3 + $0xd0] sm:$0xff] %v850
      %858 = vst.msk [vmem:[#allocation3 + $0xd8] sm:$0xff] %vm675, %v848
      %v859 = vld [vmem:[#allocation2 + $0x20] sm:$0xff]
      %v860 = vld [vmem:[#allocation2 + $0x28] sm:$0xff]
      %v861 = vld [vmem:[#allocation2 + $0x30] sm:$0xff]
      %v862 = vld [vmem:[#allocation2 + $0x38] sm:$0xff]
      %867 = vrot.lane.b32.xlu0 %v859, 112
      %v868 = vpop.permute.xlu0 %867
      %869 = vrot.lane.b32.xlu0 %v860, 112
      %v870 = vpop.permute.xlu0 %869
      %871 = vrot.lane.b32.xlu0 %v861, 112
      %v872 = vpop.permute.xlu0 %871
      %873 = vrot.lane.b32.xlu0 %v862, 112
      %v874 = vpop.permute.xlu0 %873
      %vm875 = vcmask 916480
      %v876 = vsel %vm875, %v868, %v870
      %v877 = vsel %vm875, %v872, %v874
      %882 = vst [vmem:[#allocation3 + $0xe0] sm:$0xff] %v876
      %883 = vst.msk [vmem:[#allocation3 + $0xe8] sm:$0xff] %vm875, %v870
      %884 = vst [vmem:[#allocation3 + $0xf0] sm:$0xff] %v877
      %885 = vst.msk [vmem:[#allocation3 + $0xf8] sm:$0xff] %vm875, %v874
      %v886 = vld [vmem:[#allocation2 + $0x20] sm:$0xff]
      %v887 = vld [vmem:[#allocation2 + $0x28] sm:$0xff]
      %v888 = vld [vmem:[#allocation2 + $0x30] sm:$0xff]
      %v889 = vld [vmem:[#allocation2 + $0x38] sm:$0xff]
      %v890 = vld [vmem:[%s660] ss:$8 sm:$0x3]
      %v892 = vlaneseq
      %v893 = vshrl.u32 %v892, 7
      %v894 = vsub.s32 0, %v893
      %v895 = vrot.slane %v890, %v894
      %v896 = vlaneseq
      %v897 = vshrl.u32 %v896, 7
      %v898 = vsub.s32 1, %v897
      %v899 = vrot.slane %v890, %v898
      %900 = vrot.lane.b32.xlu0 %v895, 17
      %v901 = vpop.permute.xlu0 %900
      %902 = vrot.lane.b32.xlu0 %v899, 17
      %v903 = vpop.permute.xlu0 %902
      %v904 = vsel %vm616, %v901, %v903
      %v907 = vmul.f32 %v886, %v901
      %v908 = vmul.f32 %v887, %v904
      %v909 = vmul.f32 %v888, %v901
      %v910 = vmul.f32 %v889, %v904
      %915 = vrot.lane.b32.xlu0 %v907, 111
      %v916 = vpop.permute.xlu0 %915
      %917 = vrot.lane.b32.xlu0 %v908, 111
      %v918 = vpop.permute.xlu0 %917
      %919 = vrot.lane.b32.xlu0 %v909, 111
      %v920 = vpop.permute.xlu0 %919
      %921 = vrot.lane.b32.xlu0 %v910, 111
      %v922 = vpop.permute.xlu0 %921
      %v923 = vsel %vm596, %v916, %v918
      %v924 = vsel %vm596, %v920, %v922
      %929 = vst [vmem:[#allocation3 + $0x100] sm:$0xff] %v923
      %930 = vst.msk [vmem:[#allocation3 + $0x108] sm:$0xff] %vm596, %v918
      %931 = vst [vmem:[#allocation3 + $0x110] sm:$0xff] %v924
      %932 = vst.msk [vmem:[#allocation3 + $0x118] sm:$0xff] %vm596, %v922
      %v933 = vld [vmem:[%s4] sm:$0xff]
      %v934 = vld [vmem:[%s4 + $0x8] sm:$0xff]
      %v935 = vld [vmem:[%s4 + $0x10] sm:$0xff]
      %v936 = vld [vmem:[%s4 + $0x18] sm:$0xff]
      %v937 = vunpack.c.l.bf16 %v933
      %v938 = vunpack.c.h.bf16 %v933
      %v939 = vunpack.c.l.bf16 %v934
      %v940 = vunpack.c.h.bf16 %v934
      %v941 = vunpack.c.l.bf16 %v935
      %v942 = vunpack.c.h.bf16 %v935
      %v943 = vunpack.c.l.bf16 %v936
      %v944 = vunpack.c.h.bf16 %v936
      %v945 = vld [vmem:[#allocation3] sm:$0xff]
      %v946 = vld [vmem:[#allocation3 + $0x8] sm:$0xff]
      %v947 = vld [vmem:[#allocation3 + $0x10] sm:$0xff]
      %v948 = vld [vmem:[#allocation3 + $0x18] sm:$0xff]
      %v949 = vld [vmem:[#allocation3 + $0x20] sm:$0xff]
      %v950 = vld [vmem:[#allocation3 + $0x28] sm:$0xff]
      %v951 = vld [vmem:[#allocation3 + $0x30] sm:$0xff]
      %v952 = vld [vmem:[#allocation3 + $0x38] sm:$0xff]
      %v953 = vld [vmem:[#allocation3 + $0x40] sm:$0xff]
      %v954 = vld [vmem:[#allocation3 + $0x48] sm:$0xff]
      %v955 = vld [vmem:[#allocation3 + $0x50] sm:$0xff]
      %v956 = vld [vmem:[#allocation3 + $0x58] sm:$0xff]
      %v957 = vld [vmem:[#allocation3 + $0x60] sm:$0xff]
      %v958 = vld [vmem:[#allocation3 + $0x68] sm:$0xff]
      %v959 = vld [vmem:[#allocation3 + $0x70] sm:$0xff]
      %v960 = vld [vmem:[#allocation3 + $0x78] sm:$0xff]
      %v961 = vld [vmem:[#allocation3 + $0x80] sm:$0xff]
      %v962 = vld [vmem:[#allocation3 + $0x88] sm:$0xff]
      %v963 = vld [vmem:[#allocation3 + $0x90] sm:$0xff]
      %v964 = vld [vmem:[#allocation3 + $0x98] sm:$0xff]
      %v965 = vld [vmem:[#allocation3 + $0xa0] sm:$0xff]
      %v966 = vld [vmem:[#allocation3 + $0xa8] sm:$0xff]
      %v967 = vld [vmem:[#allocation3 + $0xb0] sm:$0xff]
      %v968 = vld [vmem:[#allocation3 + $0xb8] sm:$0xff]
      %v969 = vld [vmem:[#allocation3 + $0xc0] sm:$0xff]
      %v970 = vld [vmem:[#allocation3 + $0xc8] sm:$0xff]
      %v971 = vld [vmem:[#allocation3 + $0xd0] sm:$0xff]
      %v972 = vld [vmem:[#allocation3 + $0xd8] sm:$0xff]
      %v973 = vld [vmem:[#allocation3 + $0xe0] sm:$0xff]
      %v974 = vld [vmem:[#allocation3 + $0xe8] sm:$0xff]
      %v975 = vld [vmem:[#allocation3 + $0xf0] sm:$0xff]
      %v976 = vld [vmem:[#allocation3 + $0xf8] sm:$0xff]
      %v977 = vld [vmem:[#allocation3 + $0x100] sm:$0xff]
      %v978 = vld [vmem:[#allocation3 + $0x108] sm:$0xff]
      %v979 = vld [vmem:[#allocation3 + $0x110] sm:$0xff]
      %v980 = vld [vmem:[#allocation3 + $0x118] sm:$0xff]
      %v981 = vld [vmem:[%s5] sm:$0xff]
      %v982 = vld [vmem:[%s5 + $0x8] sm:$0xff]
      %v983 = vld [vmem:[%s5 + $0x10] sm:$0xff]
      %v984 = vld [vmem:[%s5 + $0x18] sm:$0xff]
      %986 = vset.pattern.permute.xlu0 0
      %987 = vperm.xlu0 %986, %v981
      %v988 = vpop.permute.xlu0 %987
      %991 = vset.pattern.permute.xlu0 0
      %992 = vperm.xlu0 %991, %v982
      %v993 = vpop.permute.xlu0 %992
      %996 = vset.pattern.permute.xlu0 0
      %997 = vperm.xlu0 %996, %v983
      %v998 = vpop.permute.xlu0 %997
      %1001 = vset.pattern.permute.xlu0 0
      %1002 = vperm.xlu0 %1001, %v984
      %v1003 = vpop.permute.xlu0 %1002
      %v1006 = vsel %vm644, %v938, 0
      %v1009 = vsel %vm644, %v940, 0
      %v1012 = vsel %vm644, %v942, 0
      %v1015 = vsel %vm644, %v944, 0
      %1017 = vmatprep.subr.mxu0 %v946
      %1018 = vmatpush1.msra.mxu0 %v945
      %1019 = vmatprep.subr.mxu0 %v948
      %1020 = vmatpush1.msra.mxu0 %v947
      %1021 = vmatprep.subr.mxu0 %v950
      %1022 = vmatpush1.msra.mxu0 %v949
      %1023 = vmatprep.subr.mxu0 %v952
      %1024 = vmatpush1.msra.mxu0 %v951
      %1025 = vmatprep.subr.mxu0 %v954
      %1026 = vmatpush1.msra.mxu0 %v953
      %1027 = vmatprep.subr.mxu0 %v956
      %1028 = vmatpush1.msra.mxu0 %v955
      %1029 = vmatprep.subr.mxu0 %v958
      %1030 = vmatpush1.msra.mxu0 %v957
      %1031 = vmatprep.subr.mxu0 %v960
      %1032 = vmatpush1.msra.mxu0 %v959
      %1033 = vmatprep.subr.mxu0 %v962
      %1034 = vmatpush1.msra.mxu0 %v961
      %1035 = vmatprep.subr.mxu0 %v964
      %1036 = vmatpush1.msra.mxu0 %v963
      %1037 = vmatprep.subr.mxu0 %v966
      %1038 = vmatpush1.msra.mxu0 %v965
      %1039 = vmatprep.subr.mxu0 %v968
      %1040 = vmatpush1.msra.mxu0 %v967
      %1041 = vmatprep.subr.mxu0 %v970
      %1042 = vmatpush1.msra.mxu0 %v969
      %1043 = vmatprep.subr.mxu0 %v972
      %1044 = vmatpush1.msra.mxu0 %v971
      %1045 = vmatprep.subr.mxu0 %v974
      %1046 = vmatpush1.msra.mxu0 %v973
      %1047 = vmatprep.subr.mxu0 %v976
      %1048 = vmatpush1.msra.mxu0 %v975
      %1049 = vmatprep.subr.mxu0 %v978
      %1050 = vmatpush1.msra.mxu0 %v977
      %1051 = vmatprep.subr.mxu0 %v980
      %1052 = vmatpush1.msra.mxu0 %v979
      %1053 = vmatprep.subr.mxu0 0.0
      %1054 = vmatpush1.msra.mxu0 0.0
      %1055 = vmatprep.subr.mxu0 0.0
      %1056 = vmatpush1.msra.mxu0 0.0
      %1057 = vmatprep.subr.mxu0 0.0
      %1058 = vmatpush1.msra.mxu0 0.0
      %1059 = vmatprep.subr.mxu0 0.0
      %1060 = vmatpush1.msra.mxu0 0.0
      %1061 = vmatprep.subr.mxu0 0.0
      %1062 = vmatpush1.msra.mxu0 0.0
      %1063 = vmatprep.subr.mxu0 0.0
      %1064 = vmatpush1.msra.mxu0 0.0
      %1065 = vmatprep.subr.mxu0 0.0
      %1066 = vmatpush1.msra.mxu0 0.0
      %1067 = vmatprep.subr.mxu0 0.0
      %1068 = vmatpush1.msra.mxu0 0.0
      %1069 = vmatprep.subr.mxu0 0.0
      %1070 = vmatpush1.msra.mxu0 0.0
      %1071 = vmatprep.subr.mxu0 0.0
      %1072 = vmatpush1.msra.mxu0 0.0
      %1073 = vmatprep.subr.mxu0 0.0
      %1074 = vmatpush1.msra.mxu0 0.0
      %1075 = vmatprep.subr.mxu0 0.0
      %1076 = vmatpush1.msra.mxu0 0.0
      %1077 = vmatprep.subr.mxu0 0.0
      %1078 = vmatpush1.msra.mxu0 0.0
      %1079 = vmatprep.subr.mxu0 0.0
      %1080 = vmatpush1.msra.mxu0 0.0
      %1081 = vmatprep.mubr.f32.mxu0 %v1006
      %1082 = vmatmul.mubr.f32.gmra.mrb[0].mxu0 %v937
      %v1083 = vpop.f32.mrb[0].mxu0
      %v1084 = vadd.f32 %v988, %v1083
      %v1085 = vpop.f32.mrb[0].mxu0
      %v1086 = vadd.f32 %v988, %v1085
      %1087 = vmatprep.mubr.f32.mxu0 %v1009
      %1088 = vmatmul.mubr.f32.gmra.mrb[0].mxu0 %v939
      %v1089 = vpop.f32.mrb[0].mxu0
      %v1090 = vadd.f32 %v993, %v1089
      %v1091 = vpop.f32.mrb[0].mxu0
      %v1092 = vadd.f32 %v993, %v1091
      %1093 = vmatprep.mubr.f32.mxu0 %v1012
      %1094 = vmatmul.mubr.f32.gmra.mrb[0].mxu0 %v941
      %v1095 = vpop.f32.mrb[0].mxu0
      %v1096 = vadd.f32 %v998, %v1095
      %v1097 = vpop.f32.mrb[0].mxu0
      %v1098 = vadd.f32 %v998, %v1097
      %1099 = vmatprep.mubr.f32.mxu0 %v1015
      %1100 = vmatmul.mubr.f32.gmra.mrb[0].mxu0 %v943
      %v1101 = vpop.f32.mrb[0].mxu0
      %v1102 = vadd.f32 %v1003, %v1101
      %v1103 = vpop.f32.mrb[0].mxu0
      %v1104 = vadd.f32 %v1003, %v1103
      %1105 = vdwg.mxu0
      %v1106 = vmax.f32 %v1084, 0.0
      %v1107 = vmax.f32 %v1086, 0.0
      %v1108 = vmax.f32 %v1090, 0.0
      %v1109 = vmax.f32 %v1092, 0.0
      %v1110 = vmax.f32 %v1096, 0.0
      %v1111 = vmax.f32 %v1098, 0.0
      %v1112 = vmax.f32 %v1102, 0.0
      %v1113 = vmax.f32 %v1104, 0.0
      %v1114 = vpack.c.bf16 %v1108, %v1106
      %v1115 = vpack.c.bf16 %v1109, %v1107
      %v1116 = vpack.c.bf16 %v1112, %v1110
      %v1117 = vpack.c.bf16 %v1113, %v1111
      %v1122 = vunpack.c.l.b16 %v1114
      %v1123 = vunpack.c.l.b16 %v1115
      %v1124 = vunpack.c.h.b16 %v1114
      %v1125 = vunpack.c.h.b16 %v1115
      %v1126 = vunpack.c.l.b16 %v1116
      %v1127 = vunpack.c.l.b16 %v1117
      %v1128 = vunpack.c.h.b16 %v1116
      %v1129 = vunpack.c.h.b16 %v1117
      %v1130 = vpack.c.b16 %v1123, %v1122
      %v1131 = vpack.c.b16 %v1125, %v1124
      %v1132 = vpack.c.b16 %v1127, %v1126
      %v1133 = vpack.c.b16 %v1129, %v1128
      %1138 = vst [vmem:[%s359 + $0x10] sm:$0xff] %v1130
      %1139 = vst [vmem:[%s359 + $0x18] sm:$0xff] %v1131
      %1140 = vst [vmem:[%s359 + $0x20] sm:$0xff] %v1132
      %1141 = vst [vmem:[%s359 + $0x28] sm:$0xff] %v1133
      %1142 = vst [vmem:[#allocation4] sm:$0xff] 0.0
      %1143 = vst [vmem:[#allocation4 + $0x8] sm:$0xff] 0.0
      %1144 = vst [vmem:[#allocation4 + $0x10] sm:$0xff] 0.0
      %1145 = vst [vmem:[#allocation4 + $0x18] sm:$0xff] 0.0
      %1146 = vst [vmem:[#allocation4 + $0x20] sm:$0xff] 0.0
      %1147 = vst [vmem:[#allocation4 + $0x28] sm:$0xff] 0.0
      %1148 = vst [vmem:[#allocation4 + $0x30] sm:$0xff] 0.0
      %1149 = vst [vmem:[#allocation4 + $0x38] sm:$0xff] 0.0
      %1150 = vst [vmem:[#allocation4 + $0x40] sm:$0xff] 0.0
      %1151 = vst [vmem:[#allocation4 + $0x48] sm:$0xff] 0.0
      %1152 = vst [vmem:[#allocation4 + $0x50] sm:$0xff] 0.0
      %1153 = vst [vmem:[#allocation4 + $0x58] sm:$0xff] 0.0
      %1154 = vst [vmem:[#allocation4 + $0x60] sm:$0xff] 0.0
      %1155 = vst [vmem:[#allocation4 + $0x68] sm:$0xff] 0.0
      %1156 = vst [vmem:[#allocation4 + $0x70] sm:$0xff] 0.0
      %1157 = vst [vmem:[#allocation4 + $0x78] sm:$0xff] 0.0
      %1158 = vst [vmem:[#allocation4 + $0x80] sm:$0xff] 0.0
      %1159 = vst [vmem:[#allocation4 + $0x88] sm:$0xff] 0.0
      %1160 = vst [vmem:[#allocation4 + $0x90] sm:$0xff] 0.0
      %1161 = vst [vmem:[#allocation4 + $0x98] sm:$0xff] 0.0
      %1162 = vst [vmem:[#allocation4 + $0xa0] sm:$0xff] 0.0
      %1163 = vst [vmem:[#allocation4 + $0xa8] sm:$0xff] 0.0
      %1164 = vst [vmem:[#allocation4 + $0xb0] sm:$0xff] 0.0
      %1165 = vst [vmem:[#allocation4 + $0xb8] sm:$0xff] 0.0
      %1166 = vst [vmem:[#allocation4 + $0xc0] sm:$0xff] 0.0
      %1167 = vst [vmem:[#allocation4 + $0xc8] sm:$0xff] 0.0
      %1168 = vst [vmem:[#allocation4 + $0xd0] sm:$0xff] 0.0
      %1169 = vst [vmem:[#allocation4 + $0xd8] sm:$0xff] 0.0
      %1170 = vst [vmem:[#allocation4 + $0xe0] sm:$0xff] 0.0
      %1171 = vst [vmem:[#allocation4 + $0xe8] sm:$0xff] 0.0
      %1172 = vst [vmem:[#allocation4 + $0xf0] sm:$0xff] 0.0
      %1173 = vst [vmem:[#allocation4 + $0xf8] sm:$0xff] 0.0
      %1174 = vst [vmem:[#allocation4 + $0x100] sm:$0xff] 0.0
      %1175 = vst [vmem:[#allocation4 + $0x108] sm:$0xff] 0.0
      %1176 = vst [vmem:[#allocation4 + $0x110] sm:$0xff] 0.0
      %1177 = vst [vmem:[#allocation4 + $0x118] sm:$0xff] 0.0
      %1178 = vst [vmem:[#allocation4 + $0x120] sm:$0xff] 0.0
      %1179 = vst [vmem:[#allocation4 + $0x128] sm:$0xff] 0.0
      %1180 = vst [vmem:[#allocation4 + $0x130] sm:$0xff] 0.0
      %1181 = vst [vmem:[#allocation4 + $0x138] sm:$0xff] 0.0
      %1182 = vst [vmem:[#allocation4 + $0x140] sm:$0xff] 0.0
      %1183 = vst [vmem:[#allocation4 + $0x148] sm:$0xff] 0.0
      %1184 = vst [vmem:[#allocation4 + $0x150] sm:$0xff] 0.0
      %1185 = vst [vmem:[#allocation4 + $0x158] sm:$0xff] 0.0
      %1186 = vst [vmem:[#allocation4 + $0x160] sm:$0xff] 0.0
      %1187 = vst [vmem:[#allocation4 + $0x168] sm:$0xff] 0.0
      %1188 = vst [vmem:[#allocation4 + $0x170] sm:$0xff] 0.0
      %1189 = vst [vmem:[#allocation4 + $0x178] sm:$0xff] 0.0
      %1190 = vst [vmem:[#allocation4 + $0x180] sm:$0xff] 0.0
      %1191 = vst [vmem:[#allocation4 + $0x188] sm:$0xff] 0.0
      %v1192 = vld [vmem:[#allocation2 + $0x40] sm:$0xff]
      %v1193 = vld [vmem:[#allocation2 + $0x48] sm:$0xff]
      %v1194 = vld [vmem:[%s1] ss:$8 sm:$0x3]
      %v1196 = vlaneseq
      %v1197 = vshrl.u32 %v1196, 7
      %v1198 = vsub.s32 0, %v1197
      %v1199 = vrot.slane %v1194, %v1198
      %v1200 = vlaneseq
      %v1201 = vshrl.u32 %v1200, 7
      %v1202 = vsub.s32 1, %v1201
      %v1203 = vrot.slane %v1194, %v1202
      %1204 = vrot.lane.b32.xlu0 %v1199, 94
      %v1205 = vpop.permute.xlu0 %1204
      %1206 = vrot.lane.b32.xlu0 %v1203, 94
      %v1207 = vpop.permute.xlu0 %1206
      %vm1208 = vcmask 769024
      %v1209 = vsel %vm1208, %v1205, %v1207
      %v1212 = vmul.f32 %v1192, %v1209
      %v1213 = vmul.f32 %v1193, %v1207
      %1216 = vrot.lane.b32.xlu0 %v1212, 34
      %v1217 = vpop.permute.xlu0 %1216
      %1218 = vrot.lane.b32.xlu0 %v1213, 34
      %v1219 = vpop.permute.xlu0 %1218
      %vm1220 = vcmask 277504
      %v1221 = vsel %vm1220, %v1217, %v1219
      %vm1224 = vcmask 1047824
      %1225 = vst.msk [vmem:[#allocation4] sm:$0xff] %vm1224, %v1217
      %1226 = vst [vmem:[#allocation4 + $0x8] sm:$0xff] %v1221
      %v1227 = vld [vmem:[#allocation2 + $0x40] sm:$0xff]
      %v1228 = vld [vmem:[#allocation2 + $0x48] sm:$0xff]
      %v1229 = vld [vmem:[%s581] ss:$8 sm:$0x3]
      %v1231 = vlaneseq
      %v1232 = vshrl.u32 %v1231, 7
      %v1233 = vsub.s32 0, %v1232
      %v1234 = vrot.slane %v1229, %v1233
      %v1235 = vlaneseq
      %v1236 = vshrl.u32 %v1235, 7
      %v1237 = vsub.s32 1, %v1236
      %v1238 = vrot.slane %v1229, %v1237
      %1239 = vrot.lane.b32.xlu0 %v1234, 95
      %v1240 = vpop.permute.xlu0 %1239
      %1241 = vrot.lane.b32.xlu0 %v1238, 95
      %v1242 = vpop.permute.xlu0 %1241
      %vm1243 = vcmask 777216
      %v1244 = vsel %vm1243, %v1240, %v1242
      %v1247 = vmul.f32 %v1227, %v1244
      %v1248 = vmul.f32 %v1228, %v1242
      %1251 = vrot.lane.b32.xlu0 %v1247, 33
      %v1252 = vpop.permute.xlu0 %1251
      %1253 = vrot.lane.b32.xlu0 %v1248, 33
      %v1254 = vpop.permute.xlu0 %1253
      %vm1255 = vcmask 269312
      %v1256 = vsel %vm1255, %v1252, %v1254
      %vm1259 = vcmask 1047816
      %1260 = vst.msk [vmem:[#allocation4 + $0x10] sm:$0xff] %vm1259, %v1252
      %1261 = vst [vmem:[#allocation4 + $0x18] sm:$0xff] %v1256
      %v1262 = vld [vmem:[#allocation2 + $0x40] sm:$0xff]
      %v1263 = vld [vmem:[#allocation2 + $0x48] sm:$0xff]
      %1266 = vrot.lane.b32.xlu0 %v1262, 32
      %v1267 = vpop.permute.xlu0 %1266
      %1268 = vrot.lane.b32.xlu0 %v1263, 32
      %v1269 = vpop.permute.xlu0 %1268
      %v1270 = vsel %vm436, %v1267, %v1269
      %vm1273 = vcmask 1047808
      %1274 = vst.msk [vmem:[#allocation4 + $0x20] sm:$0xff] %vm1273, %v1267
      %1275 = vst [vmem:[#allocation4 + $0x28] sm:$0xff] %v1270
      %v1276 = vld [vmem:[#allocation2 + $0x40] sm:$0xff]
      %v1277 = vld [vmem:[#allocation2 + $0x48] sm:$0xff]
      %v1278 = vld [vmem:[%s660] ss:$8 sm:$0x3]
      %v1280 = vlaneseq
      %v1281 = vshrl.u32 %v1280, 7
      %v1282 = vsub.s32 0, %v1281
      %v1283 = vrot.slane %v1278, %v1282
      %v1284 = vlaneseq
      %v1285 = vshrl.u32 %v1284, 7
      %v1286 = vsub.s32 1, %v1285
      %v1287 = vrot.slane %v1278, %v1286
      %1288 = vrot.lane.b32.xlu0 %v1283, 97
      %v1289 = vpop.permute.xlu0 %1288
      %1290 = vrot.lane.b32.xlu0 %v1287, 97
      %v1291 = vpop.permute.xlu0 %1290
      %vm1292 = vcmask 793600
      %v1293 = vsel %vm1292, %v1289, %v1291
      %v1296 = vmul.f32 %v1276, %v1293
      %v1297 = vmul.f32 %v1277, %v1291
      %1300 = vrot.lane.b32.xlu0 %v1296, 31
      %v1301 = vpop.permute.xlu0 %1300
      %1302 = vrot.lane.b32.xlu0 %v1297, 31
      %v1303 = vpop.permute.xlu0 %1302
      %vm1304 = vcmask 252928
      %v1305 = vsel %vm1304, %v1301, %v1303
      %vm1308 = vcmask 1047800
      %1309 = vst.msk [vmem:[#allocation4 + $0x30] sm:$0xff] %vm1308, %v1301
      %1310 = vst [vmem:[#allocation4 + $0x38] sm:$0xff] %v1305
      %v1311 = vld [vmem:[#allocation2 + $0x40] sm:$0xff]
      %v1312 = vld [vmem:[#allocation2 + $0x48] sm:$0xff]
      %s1313 = scalar_lea.vmem %s1, 4
      %v1314 = vld [vmem:[%s1313] ss:$8 sm:$0x3]
      %v1316 = vlaneseq
      %v1317 = vshrl.u32 %v1316, 7
      %v1318 = vsub.s32 0, %v1317
      %v1319 = vrot.slane %v1314, %v1318
      %v1320 = vlaneseq
      %v1321 = vshrl.u32 %v1320, 7
      %v1322 = vsub.s32 1, %v1321
      %v1323 = vrot.slane %v1314, %v1322
      %1324 = vrot.lane.b32.xlu0 %v1319, 98
      %v1325 = vpop.permute.xlu0 %1324
      %1326 = vrot.lane.b32.xlu0 %v1323, 98
      %v1327 = vpop.permute.xlu0 %1326
      %vm1328 = vcmask 801792
      %v1329 = vsel %vm1328, %v1325, %v1327
      %v1332 = vmul.f32 %v1311, %v1329
      %v1333 = vmul.f32 %v1312, %v1327
      %1336 = vrot.lane.b32.xlu0 %v1332, 30
      %v1337 = vpop.permute.xlu0 %1336
      %1338 = vrot.lane.b32.xlu0 %v1333, 30
      %v1339 = vpop.permute.xlu0 %1338
      %vm1340 = vcmask 244736
      %v1341 = vsel %vm1340, %v1337, %v1339
      %vm1344 = vcmask 1047792
      %1345 = vst.msk [vmem:[#allocation4 + $0x40] sm:$0xff] %vm1344, %v1337
      %1346 = vst [vmem:[#allocation4 + $0x48] sm:$0xff] %v1341
      %v1347 = vld [vmem:[#allocation2 + $0x40] sm:$0xff]
      %v1348 = vld [vmem:[#allocation2 + $0x48] sm:$0xff]
      %v1349 = vld [vmem:[%s1] ss:$8 sm:$0x3]
      %v1351 = vlaneseq
      %v1352 = vshrl.u32 %v1351, 7
      %v1353 = vsub.s32 0, %v1352
      %v1354 = vrot.slane %v1349, %v1353
      %v1355 = vlaneseq
      %v1356 = vshrl.u32 %v1355, 7
      %v1357 = vsub.s32 1, %v1356
      %v1358 = vrot.slane %v1349, %v1357
      %1359 = vrot.lane.b32.xlu0 %v1354, 110
      %v1360 = vpop.permute.xlu0 %1359
      %1361 = vrot.lane.b32.xlu0 %v1358, 110
      %v1362 = vpop.permute.xlu0 %1361
      %vm1363 = vcmask 900096
      %v1364 = vsel %vm1363, %v1360, %v1362
      %v1367 = vmul.f32 %v1347, %v1364
      %v1368 = vmul.f32 %v1348, %v1362
      %1371 = vrot.lane.b32.xlu0 %v1367, 18
      %v1372 = vpop.permute.xlu0 %1371
      %1373 = vrot.lane.b32.xlu0 %v1368, 18
      %v1374 = vpop.permute.xlu0 %1373
      %vm1375 = vcmask 146432
      %v1376 = vsel %vm1375, %v1372, %v1374
      %vm1379 = vcmask 1047696
      %1380 = vst.msk [vmem:[#allocation4 + $0x50] sm:$0xff] %vm1379, %v1372
      %1381 = vst [vmem:[#allocation4 + $0x58] sm:$0xff] %v1376
      %v1382 = vld [vmem:[#allocation2 + $0x40] sm:$0xff]
      %v1383 = vld [vmem:[#allocation2 + $0x48] sm:$0xff]
      %v1384 = vld [vmem:[%s581] ss:$8 sm:$0x3]
      %v1386 = vlaneseq
      %v1387 = vshrl.u32 %v1386, 7
      %v1388 = vsub.s32 0, %v1387
      %v1389 = vrot.slane %v1384, %v1388
      %v1390 = vlaneseq
      %v1391 = vshrl.u32 %v1390, 7
      %v1392 = vsub.s32 1, %v1391
      %v1393 = vrot.slane %v1384, %v1392
      %1394 = vrot.lane.b32.xlu0 %v1389, 111
      %v1395 = vpop.permute.xlu0 %1394
      %1396 = vrot.lane.b32.xlu0 %v1393, 111
      %v1397 = vpop.permute.xlu0 %1396
      %v1398 = vsel %vm596, %v1395, %v1397
      %v1401 = vmul.f32 %v1382, %v1398
      %v1402 = vmul.f32 %v1383, %v1397
      %1405 = vrot.lane.b32.xlu0 %v1401, 17
      %v1406 = vpop.permute.xlu0 %1405
      %1407 = vrot.lane.b32.xlu0 %v1402, 17
      %v1408 = vpop.permute.xlu0 %1407
      %v1409 = vsel %vm616, %v1406, %v1408
      %1412 = vst.msk [vmem:[#allocation4 + $0x60] sm:$0xff] %vm623, %v1406
      %1413 = vst [vmem:[#allocation4 + $0x68] sm:$0xff] %v1409
      %v1414 = vld [vmem:[#allocation2 + $0x40] sm:$0xff]
      %v1415 = vld [vmem:[#allocation2 + $0x48] sm:$0xff]
      %1418 = vrot.lane.b32.xlu0 %v1414, 16
      %v1419 = vpop.permute.xlu0 %1418
      %1420 = vrot.lane.b32.xlu0 %v1415, 16
      %v1421 = vpop.permute.xlu0 %1420
      %v1422 = vsel %vm644, %v1419, %v1421
      %1425 = vst.msk [vmem:[#allocation4 + $0x70] sm:$0xff] %vm651, %v1419
      %1426 = vst [vmem:[#allocation4 + $0x78] sm:$0xff] %v1422
      %v1427 = vld [vmem:[#allocation2 + $0x40] sm:$0xff]
      %v1428 = vld [vmem:[#allocation2 + $0x48] sm:$0xff]
      %v1429 = vld [vmem:[%s660] ss:$8 sm:$0x3]
      %v1431 = vlaneseq
      %v1432 = vshrl.u32 %v1431, 7
      %v1433 = vsub.s32 0, %v1432
      %v1434 = vrot.slane %v1429, %v1433
      %v1435 = vlaneseq
      %v1436 = vshrl.u32 %v1435, 7
      %v1437 = vsub.s32 1, %v1436
      %v1438 = vrot.slane %v1429, %v1437
      %1439 = vrot.lane.b32.xlu0 %v1434, 113
      %v1440 = vpop.permute.xlu0 %1439
      %1441 = vrot.lane.b32.xlu0 %v1438, 113
      %v1442 = vpop.permute.xlu0 %1441
      %v1443 = vsel %vm675, %v1440, %v1442
      %v1446 = vmul.f32 %v1427, %v1443
      %v1447 = vmul.f32 %v1428, %v1442
      %1450 = vrot.lane.b32.xlu0 %v1446, 15
      %v1451 = vpop.permute.xlu0 %1450
      %1452 = vrot.lane.b32.xlu0 %v1447, 15
      %v1453 = vpop.permute.xlu0 %1452
      %v1454 = vsel %vm695, %v1451, %v1453
      %1457 = vst.msk [vmem:[#allocation4 + $0x80] sm:$0xff] %vm702, %v1451
      %1458 = vst [vmem:[#allocation4 + $0x88] sm:$0xff] %v1454
      %v1459 = vld [vmem:[#allocation2 + $0x40] sm:$0xff]
      %v1460 = vld [vmem:[#allocation2 + $0x48] sm:$0xff]
      %v1461 = vld [vmem:[%s1313] ss:$8 sm:$0x3]
      %v1463 = vlaneseq
      %v1464 = vshrl.u32 %v1463, 7
      %v1465 = vsub.s32 0, %v1464
      %v1466 = vrot.slane %v1461, %v1465
      %v1467 = vlaneseq
      %v1468 = vshrl.u32 %v1467, 7
      %v1469 = vsub.s32 1, %v1468
      %v1470 = vrot.slane %v1461, %v1469
      %1471 = vrot.lane.b32.xlu0 %v1466, 114
      %v1472 = vpop.permute.xlu0 %1471
      %1473 = vrot.lane.b32.xlu0 %v1470, 114
      %v1474 = vpop.permute.xlu0 %1473
      %vm1475 = vcmask 932864
      %v1476 = vsel %vm1475, %v1472, %v1474
      %v1479 = vmul.f32 %v1459, %v1476
      %v1480 = vmul.f32 %v1460, %v1474
      %1483 = vrot.lane.b32.xlu0 %v1479, 14
      %v1484 = vpop.permute.xlu0 %1483
      %1485 = vrot.lane.b32.xlu0 %v1480, 14
      %v1486 = vpop.permute.xlu0 %1485
      %vm1487 = vcmask 113664
      %v1488 = vsel %vm1487, %v1484, %v1486
      %vm1491 = vcmask 1047664
      %1492 = vst.msk [vmem:[#allocation4 + $0x90] sm:$0xff] %vm1491, %v1484
      %1493 = vst [vmem:[#allocation4 + $0x98] sm:$0xff] %v1488
      %v1494 = vld [vmem:[#allocation2 + $0x40] sm:$0xff]
      %v1495 = vld [vmem:[#allocation2 + $0x48] sm:$0xff]
      %v1496 = vld [vmem:[%s1] ss:$8 sm:$0x3]
      %v1498 = vlaneseq
      %v1499 = vshrl.u32 %v1498, 7
      %v1500 = vsub.s32 0, %v1499
      %v1501 = vrot.slane %v1496, %v1500
      %v1502 = vlaneseq
      %v1503 = vshrl.u32 %v1502, 7
      %v1504 = vsub.s32 1, %v1503
      %v1505 = vrot.slane %v1496, %v1504
      %1506 = vrot.lane.b32.xlu0 %v1501, 126
      %v1507 = vpop.permute.xlu0 %1506
      %1508 = vrot.lane.b32.xlu0 %v1505, 126
      %v1509 = vpop.permute.xlu0 %1508
      %vm1510 = vcmask 1031168
      %v1511 = vsel %vm1510, %v1507, %v1509
      %v1514 = vmul.f32 %v1494, %v1511
      %v1515 = vmul.f32 %v1495, %v1509
      %1518 = vrot.lane.b32.xlu0 %v1514, 2
      %v1519 = vpop.permute.xlu0 %1518
      %1520 = vrot.lane.b32.xlu0 %v1515, 2
      %v1521 = vpop.permute.xlu0 %1520
      %vm1522 = vcmask 15360
      %v1523 = vsel %vm1522, %v1519, %v1521
      %vm1526 = vcmask 1047568
      %1527 = vst.msk [vmem:[#allocation4 + $0xa0] sm:$0xff] %vm1526, %v1519
      %1528 = vst [vmem:[#allocation4 + $0xa8] sm:$0xff] %v1523
      %v1529 = vld [vmem:[#allocation2 + $0x40] sm:$0xff]
      %v1530 = vld [vmem:[#allocation2 + $0x48] sm:$0xff]
      %v1531 = vld [vmem:[%s581] ss:$8 sm:$0x3]
      %v1533 = vlaneseq
      %v1534 = vshrl.u32 %v1533, 7
      %v1535 = vsub.s32 0, %v1534
      %v1536 = vrot.slane %v1531, %v1535
      %v1537 = vlaneseq
      %v1538 = vshrl.u32 %v1537, 7
      %v1539 = vsub.s32 1, %v1538
      %v1540 = vrot.slane %v1531, %v1539
      %1541 = vrot.lane.b32.xlu0 %v1536, 127
      %v1542 = vpop.permute.xlu0 %1541
      %1543 = vrot.lane.b32.xlu0 %v1540, 127
      %v1544 = vpop.permute.xlu0 %1543
      %v1545 = vsel %vm725, %v1542, %v1544
      %v1548 = vmul.f32 %v1529, %v1545
      %v1549 = vmul.f32 %v1530, %v1544
      %1552 = vrot.lane.b32.xlu0 %v1548, 1
      %v1553 = vpop.permute.xlu0 %1552
      %1554 = vrot.lane.b32.xlu0 %v1549, 1
      %v1555 = vpop.permute.xlu0 %1554
      %v1556 = vsel %vm745, %v1553, %v1555
      %1559 = vst.msk [vmem:[#allocation4 + $0xb0] sm:$0xff] %vm752, %v1553
      %1560 = vst [vmem:[#allocation4 + $0xb8] sm:$0xff] %v1556
      %v1561 = vld [vmem:[#allocation2 + $0x40] sm:$0xff]
      %v1562 = vld [vmem:[#allocation2 + $0x48] sm:$0xff]
      %1563 = vst [vmem:[#allocation4 + $0xc0] sm:$0xff] %v1561
      %1564 = vst [vmem:[#allocation4 + $0xc8] sm:$0xff] %v1562
      %v1565 = vld [vmem:[#allocation2 + $0x40] sm:$0xff]
      %v1566 = vld [vmem:[#allocation2 + $0x48] sm:$0xff]
      %v1567 = vld [vmem:[%s660] ss:$8 sm:$0x3]
      %v1569 = vlaneseq
      %v1570 = vshrl.u32 %v1569, 7
      %v1571 = vsub.s32 0, %v1570
      %v1572 = vrot.slane %v1567, %v1571
      %v1573 = vlaneseq
      %v1574 = vshrl.u32 %v1573, 7
      %v1575 = vsub.s32 1, %v1574
      %v1576 = vrot.slane %v1567, %v1575
      %1577 = vrot.lane.b32.xlu0 %v1572, 1
      %v1578 = vpop.permute.xlu0 %1577
      %1579 = vrot.lane.b32.xlu0 %v1576, 1
      %v1580 = vpop.permute.xlu0 %1579
      %v1581 = vsel %vm745, %v1578, %v1580
      %v1584 = vmul.f32 %v1565, %v1578
      %v1585 = vmul.f32 %v1566, %v1581
      %1588 = vrot.lane.b32.xlu0 %v1584, 127
      %v1589 = vpop.permute.xlu0 %1588
      %1590 = vrot.lane.b32.xlu0 %v1585, 127
      %v1591 = vpop.permute.xlu0 %1590
      %v1592 = vsel %vm725, %v1589, %v1591
      %1595 = vst [vmem:[#allocation4 + $0xd0] sm:$0xff] %v1592
      %1596 = vst.msk [vmem:[#allocation4 + $0xd8] sm:$0xff] %vm725, %v1591
      %v1597 = vld [vmem:[#allocation2 + $0x40] sm:$0xff]
      %v1598 = vld [vmem:[#allocation2 + $0x48] sm:$0xff]
      %v1599 = vld [vmem:[%s1313] ss:$8 sm:$0x3]
      %v1601 = vlaneseq
      %v1602 = vshrl.u32 %v1601, 7
      %v1603 = vsub.s32 0, %v1602
      %v1604 = vrot.slane %v1599, %v1603
      %v1605 = vlaneseq
      %v1606 = vshrl.u32 %v1605, 7
      %v1607 = vsub.s32 1, %v1606
      %v1608 = vrot.slane %v1599, %v1607
      %1609 = vrot.lane.b32.xlu0 %v1604, 2
      %v1610 = vpop.permute.xlu0 %1609
      %1611 = vrot.lane.b32.xlu0 %v1608, 2
      %v1612 = vpop.permute.xlu0 %1611
      %v1613 = vsel %vm1522, %v1610, %v1612
      %v1616 = vmul.f32 %v1597, %v1610
      %v1617 = vmul.f32 %v1598, %v1613
      %1620 = vrot.lane.b32.xlu0 %v1616, 126
      %v1621 = vpop.permute.xlu0 %1620
      %1622 = vrot.lane.b32.xlu0 %v1617, 126
      %v1623 = vpop.permute.xlu0 %1622
      %v1624 = vsel %vm1510, %v1621, %v1623
      %1627 = vst [vmem:[#allocation4 + $0xe0] sm:$0xff] %v1624
      %1628 = vst.msk [vmem:[#allocation4 + $0xe8] sm:$0xff] %vm1510, %v1623
      %v1629 = vld [vmem:[#allocation2 + $0x40] sm:$0xff]
      %v1630 = vld [vmem:[#allocation2 + $0x48] sm:$0xff]
      %v1631 = vld [vmem:[%s1] ss:$8 sm:$0x3]
      %v1633 = vlaneseq
      %v1634 = vshrl.u32 %v1633, 7
      %v1635 = vsub.s32 0, %v1634
      %v1636 = vrot.slane %v1631, %v1635
      %v1637 = vlaneseq
      %v1638 = vshrl.u32 %v1637, 7
      %v1639 = vsub.s32 1, %v1638
      %v1640 = vrot.slane %v1631, %v1639
      %1641 = vrot.lane.b32.xlu0 %v1636, 14
      %v1642 = vpop.permute.xlu0 %1641
      %1643 = vrot.lane.b32.xlu0 %v1640, 14
      %v1644 = vpop.permute.xlu0 %1643
      %v1645 = vsel %vm1487, %v1642, %v1644
      %v1648 = vmul.f32 %v1629, %v1642
      %v1649 = vmul.f32 %v1630, %v1645
      %1652 = vrot.lane.b32.xlu0 %v1648, 114
      %v1653 = vpop.permute.xlu0 %1652
      %1654 = vrot.lane.b32.xlu0 %v1649, 114
      %v1655 = vpop.permute.xlu0 %1654
      %v1656 = vsel %vm1475, %v1653, %v1655
      %1659 = vst [vmem:[#allocation4 + $0xf0] sm:$0xff] %v1656
      %1660 = vst.msk [vmem:[#allocation4 + $0xf8] sm:$0xff] %vm1475, %v1655
      %v1661 = vld [vmem:[#allocation2 + $0x40] sm:$0xff]
      %v1662 = vld [vmem:[#allocation2 + $0x48] sm:$0xff]
      %v1663 = vld [vmem:[%s581] ss:$8 sm:$0x3]
      %v1665 = vlaneseq
      %v1666 = vshrl.u32 %v1665, 7
      %v1667 = vsub.s32 0, %v1666
      %v1668 = vrot.slane %v1663, %v1667
      %v1669 = vlaneseq
      %v1670 = vshrl.u32 %v1669, 7
      %v1671 = vsub.s32 1, %v1670
      %v1672 = vrot.slane %v1663, %v1671
      %1673 = vrot.lane.b32.xlu0 %v1668, 15
      %v1674 = vpop.permute.xlu0 %1673
      %1675 = vrot.lane.b32.xlu0 %v1672, 15
      %v1676 = vpop.permute.xlu0 %1675
      %v1677 = vsel %vm695, %v1674, %v1676
      %v1680 = vmul.f32 %v1661, %v1674
      %v1681 = vmul.f32 %v1662, %v1677
      %1684 = vrot.lane.b32.xlu0 %v1680, 113
      %v1685 = vpop.permute.xlu0 %1684
      %1686 = vrot.lane.b32.xlu0 %v1681, 113
      %v1687 = vpop.permute.xlu0 %1686
      %v1688 = vsel %vm675, %v1685, %v1687
      %1691 = vst [vmem:[#allocation4 + $0x100] sm:$0xff] %v1688
      %1692 = vst.msk [vmem:[#allocation4 + $0x108] sm:$0xff] %vm675, %v1687
      %v1693 = vld [vmem:[#allocation2 + $0x40] sm:$0xff]
      %v1694 = vld [vmem:[#allocation2 + $0x48] sm:$0xff]
      %1697 = vrot.lane.b32.xlu0 %v1693, 112
      %v1698 = vpop.permute.xlu0 %1697
      %1699 = vrot.lane.b32.xlu0 %v1694, 112
      %v1700 = vpop.permute.xlu0 %1699
      %v1701 = vsel %vm875, %v1698, %v1700
      %1704 = vst [vmem:[#allocation4 + $0x110] sm:$0xff] %v1701
      %1705 = vst.msk [vmem:[#allocation4 + $0x118] sm:$0xff] %vm875, %v1700
      %v1706 = vld [vmem:[#allocation2 + $0x40] sm:$0xff]
      %v1707 = vld [vmem:[#allocation2 + $0x48] sm:$0xff]
      %v1708 = vld [vmem:[%s660] ss:$8 sm:$0x3]
      %v1710 = vlaneseq
      %v1711 = vshrl.u32 %v1710, 7
      %v1712 = vsub.s32 0, %v1711
      %v1713 = vrot.slane %v1708, %v1712
      %v1714 = vlaneseq
      %v1715 = vshrl.u32 %v1714, 7
      %v1716 = vsub.s32 1, %v1715
      %v1717 = vrot.slane %v1708, %v1716
      %1718 = vrot.lane.b32.xlu0 %v1713, 17
      %v1719 = vpop.permute.xlu0 %1718
      %1720 = vrot.lane.b32.xlu0 %v1717, 17
      %v1721 = vpop.permute.xlu0 %1720
      %v1722 = vsel %vm616, %v1719, %v1721
      %v1725 = vmul.f32 %v1706, %v1719
      %v1726 = vmul.f32 %v1707, %v1722
      %1729 = vrot.lane.b32.xlu0 %v1725, 111
      %v1730 = vpop.permute.xlu0 %1729
      %1731 = vrot.lane.b32.xlu0 %v1726, 111
      %v1732 = vpop.permute.xlu0 %1731
      %v1733 = vsel %vm596, %v1730, %v1732
      %1736 = vst [vmem:[#allocation4 + $0x120] sm:$0xff] %v1733
      %1737 = vst.msk [vmem:[#allocation4 + $0x128] sm:$0xff] %vm596, %v1732
      %v1738 = vld [vmem:[#allocation2 + $0x40] sm:$0xff]
      %v1739 = vld [vmem:[#allocation2 + $0x48] sm:$0xff]
      %v1740 = vld [vmem:[%s1313] ss:$8 sm:$0x3]
      %v1742 = vlaneseq
      %v1743 = vshrl.u32 %v1742, 7
      %v1744 = vsub.s32 0, %v1743
      %v1745 = vrot.slane %v1740, %v1744
      %v1746 = vlaneseq
      %v1747 = vshrl.u32 %v1746, 7
      %v1748 = vsub.s32 1, %v1747
      %v1749 = vrot.slane %v1740, %v1748
      %1750 = vrot.lane.b32.xlu0 %v1745, 18
      %v1751 = vpop.permute.xlu0 %1750
      %1752 = vrot.lane.b32.xlu0 %v1749, 18
      %v1753 = vpop.permute.xlu0 %1752
      %v1754 = vsel %vm1375, %v1751, %v1753
      %v1757 = vmul.f32 %v1738, %v1751
      %v1758 = vmul.f32 %v1739, %v1754
      %1761 = vrot.lane.b32.xlu0 %v1757, 110
      %v1762 = vpop.permute.xlu0 %1761
      %1763 = vrot.lane.b32.xlu0 %v1758, 110
      %v1764 = vpop.permute.xlu0 %1763
      %v1765 = vsel %vm1363, %v1762, %v1764
      %1768 = vst [vmem:[#allocation4 + $0x130] sm:$0xff] %v1765
      %1769 = vst.msk [vmem:[#allocation4 + $0x138] sm:$0xff] %vm1363, %v1764
      %v1770 = vld [vmem:[#allocation2 + $0x40] sm:$0xff]
      %v1771 = vld [vmem:[#allocation2 + $0x48] sm:$0xff]
      %v1772 = vld [vmem:[%s1] ss:$8 sm:$0x3]
      %v1774 = vlaneseq
      %v1775 = vshrl.u32 %v1774, 7
      %v1776 = vsub.s32 0, %v1775
      %v1777 = vrot.slane %v1772, %v1776
      %v1778 = vlaneseq
      %v1779 = vshrl.u32 %v1778, 7
      %v1780 = vsub.s32 1, %v1779
      %v1781 = vrot.slane %v1772, %v1780
      %1782 = vrot.lane.b32.xlu0 %v1777, 30
      %v1783 = vpop.permute.xlu0 %1782
      %1784 = vrot.lane.b32.xlu0 %v1781, 30
      %v1785 = vpop.permute.xlu0 %1784
      %v1786 = vsel %vm1340, %v1783, %v1785
      %v1789 = vmul.f32 %v1770, %v1783
      %v1790 = vmul.f32 %v1771, %v1786
      %1793 = vrot.lane.b32.xlu0 %v1789, 98
      %v1794 = vpop.permute.xlu0 %1793
      %1795 = vrot.lane.b32.xlu0 %v1790, 98
      %v1796 = vpop.permute.xlu0 %1795
      %v1797 = vsel %vm1328, %v1794, %v1796
      %1800 = vst [vmem:[#allocation4 + $0x140] sm:$0xff] %v1797
      %1801 = vst.msk [vmem:[#allocation4 + $0x148] sm:$0xff] %vm1328, %v1796
      %v1802 = vld [vmem:[#allocation2 + $0x40] sm:$0xff]
      %v1803 = vld [vmem:[#allocation2 + $0x48] sm:$0xff]
      %v1804 = vld [vmem:[%s581] ss:$8 sm:$0x3]
      %v1806 = vlaneseq
      %v1807 = vshrl.u32 %v1806, 7
      %v1808 = vsub.s32 0, %v1807
      %v1809 = vrot.slane %v1804, %v1808
      %v1810 = vlaneseq
      %v1811 = vshrl.u32 %v1810, 7
      %v1812 = vsub.s32 1, %v1811
      %v1813 = vrot.slane %v1804, %v1812
      %1814 = vrot.lane.b32.xlu0 %v1809, 31
      %v1815 = vpop.permute.xlu0 %1814
      %1816 = vrot.lane.b32.xlu0 %v1813, 31
      %v1817 = vpop.permute.xlu0 %1816
      %v1818 = vsel %vm1304, %v1815, %v1817
      %v1821 = vmul.f32 %v1802, %v1815
      %v1822 = vmul.f32 %v1803, %v1818
      %1825 = vrot.lane.b32.xlu0 %v1821, 97
      %v1826 = vpop.permute.xlu0 %1825
      %1827 = vrot.lane.b32.xlu0 %v1822, 97
      %v1828 = vpop.permute.xlu0 %1827
      %v1829 = vsel %vm1292, %v1826, %v1828
      %1832 = vst [vmem:[#allocation4 + $0x150] sm:$0xff] %v1829
      %1833 = vst.msk [vmem:[#allocation4 + $0x158] sm:$0xff] %vm1292, %v1828
      %v1834 = vld [vmem:[#allocation2 + $0x40] sm:$0xff]
      %v1835 = vld [vmem:[#allocation2 + $0x48] sm:$0xff]
      %1838 = vrot.lane.b32.xlu0 %v1834, 96
      %v1839 = vpop.permute.xlu0 %1838
      %1840 = vrot.lane.b32.xlu0 %v1835, 96
      %v1841 = vpop.permute.xlu0 %1840
      %vm1842 = vcmask 785408
      %v1843 = vsel %vm1842, %v1839, %v1841
      %1846 = vst [vmem:[#allocation4 + $0x160] sm:$0xff] %v1843
      %1847 = vst.msk [vmem:[#allocation4 + $0x168] sm:$0xff] %vm1842, %v1841
      %v1848 = vld [vmem:[#allocation2 + $0x40] sm:$0xff]
      %v1849 = vld [vmem:[#allocation2 + $0x48] sm:$0xff]
      %v1850 = vld [vmem:[%s660] ss:$8 sm:$0x3]
      %v1852 = vlaneseq
      %v1853 = vshrl.u32 %v1852, 7
      %v1854 = vsub.s32 0, %v1853
      %v1855 = vrot.slane %v1850, %v1854
      %v1856 = vlaneseq
      %v1857 = vshrl.u32 %v1856, 7
      %v1858 = vsub.s32 1, %v1857
      %v1859 = vrot.slane %v1850, %v1858
      %1860 = vrot.lane.b32.xlu0 %v1855, 33
      %v1861 = vpop.permute.xlu0 %1860
      %1862 = vrot.lane.b32.xlu0 %v1859, 33
      %v1863 = vpop.permute.xlu0 %1862
      %v1864 = vsel %vm1255, %v1861, %v1863
      %v1867 = vmul.f32 %v1848, %v1861
      %v1868 = vmul.f32 %v1849, %v1864
      %1871 = vrot.lane.b32.xlu0 %v1867, 95
      %v1872 = vpop.permute.xlu0 %1871
      %1873 = vrot.lane.b32.xlu0 %v1868, 95
      %v1874 = vpop.permute.xlu0 %1873
      %v1875 = vsel %vm1243, %v1872, %v1874
      %1878 = vst [vmem:[#allocation4 + $0x170] sm:$0xff] %v1875
      %1879 = vst.msk [vmem:[#allocation4 + $0x178] sm:$0xff] %vm1243, %v1874
      %v1880 = vld [vmem:[#allocation2 + $0x40] sm:$0xff]
      %v1881 = vld [vmem:[#allocation2 + $0x48] sm:$0xff]
      %v1882 = vld [vmem:[%s1313] ss:$8 sm:$0x3]
      %v1884 = vlaneseq
      %v1885 = vshrl.u32 %v1884, 7
      %v1886 = vsub.s32 0, %v1885
      %v1887 = vrot.slane %v1882, %v1886
      %v1888 = vlaneseq
      %v1889 = vshrl.u32 %v1888, 7
      %v1890 = vsub.s32 1, %v1889
      %v1891 = vrot.slane %v1882, %v1890
      %1892 = vrot.lane.b32.xlu0 %v1887, 34
      %v1893 = vpop.permute.xlu0 %1892
      %1894 = vrot.lane.b32.xlu0 %v1891, 34
      %v1895 = vpop.permute.xlu0 %1894
      %v1896 = vsel %vm1220, %v1893, %v1895
      %v1899 = vmul.f32 %v1880, %v1893
      %v1900 = vmul.f32 %v1881, %v1896
      %1903 = vrot.lane.b32.xlu0 %v1899, 94
      %v1904 = vpop.permute.xlu0 %1903
      %1905 = vrot.lane.b32.xlu0 %v1900, 94
      %v1906 = vpop.permute.xlu0 %1905
      %v1907 = vsel %vm1208, %v1904, %v1906
      %1910 = vst [vmem:[#allocation4 + $0x180] sm:$0xff] %v1907
      %1911 = vst.msk [vmem:[#allocation4 + $0x188] sm:$0xff] %vm1208, %v1906
      %v1912 = vld [vmem:[%s6] sm:$0xff]
      %v1913 = vld [vmem:[%s6 + $0x8] sm:$0xff]
      %v1914 = vunpack.c.l.bf16 %v1912
      %v1915 = vunpack.c.h.bf16 %v1912
      %v1916 = vunpack.c.l.bf16 %v1913
      %v1917 = vunpack.c.h.bf16 %v1913
      %v1918 = vld [vmem:[#allocation4] sm:$0xff]
      %v1919 = vld [vmem:[#allocation4 + $0x8] sm:$0xff]
      %v1920 = vld [vmem:[#allocation4 + $0x10] sm:$0xff]
      %v1921 = vld [vmem:[#allocation4 + $0x18] sm:$0xff]
      %v1922 = vld [vmem:[#allocation4 + $0x20] sm:$0xff]
      %v1923 = vld [vmem:[#allocation4 + $0x28] sm:$0xff]
      %v1924 = vld [vmem:[#allocation4 + $0x30] sm:$0xff]
      %v1925 = vld [vmem:[#allocation4 + $0x38] sm:$0xff]
      %v1926 = vld [vmem:[#allocation4 + $0x40] sm:$0xff]
      %v1927 = vld [vmem:[#allocation4 + $0x48] sm:$0xff]
      %v1928 = vld [vmem:[#allocation4 + $0x50] sm:$0xff]
      %v1929 = vld [vmem:[#allocation4 + $0x58] sm:$0xff]
      %v1930 = vld [vmem:[#allocation4 + $0x60] sm:$0xff]
      %v1931 = vld [vmem:[#allocation4 + $0x68] sm:$0xff]
      %v1932 = vld [vmem:[#allocation4 + $0x70] sm:$0xff]
      %v1933 = vld [vmem:[#allocation4 + $0x78] sm:$0xff]
      %v1934 = vld [vmem:[#allocation4 + $0x80] sm:$0xff]
      %v1935 = vld [vmem:[#allocation4 + $0x88] sm:$0xff]
      %v1936 = vld [vmem:[#allocation4 + $0x90] sm:$0xff]
      %v1937 = vld [vmem:[#allocation4 + $0x98] sm:$0xff]
      %v1938 = vld [vmem:[#allocation4 + $0xa0] sm:$0xff]
      %v1939 = vld [vmem:[#allocation4 + $0xa8] sm:$0xff]
      %v1940 = vld [vmem:[#allocation4 + $0xb0] sm:$0xff]
      %v1941 = vld [vmem:[#allocation4 + $0xb8] sm:$0xff]
      %v1942 = vld [vmem:[#allocation4 + $0xc0] sm:$0xff]
      %v1943 = vld [vmem:[#allocation4 + $0xc8] sm:$0xff]
      %v1944 = vld [vmem:[#allocation4 + $0xd0] sm:$0xff]
      %v1945 = vld [vmem:[#allocation4 + $0xd8] sm:$0xff]
      %v1946 = vld [vmem:[#allocation4 + $0xe0] sm:$0xff]
      %v1947 = vld [vmem:[#allocation4 + $0xe8] sm:$0xff]
      %v1948 = vld [vmem:[#allocation4 + $0xf0] sm:$0xff]
      %v1949 = vld [vmem:[#allocation4 + $0xf8] sm:$0xff]
      %v1950 = vld [vmem:[#allocation4 + $0x100] sm:$0xff]
      %v1951 = vld [vmem:[#allocation4 + $0x108] sm:$0xff]
      %v1952 = vld [vmem:[#allocation4 + $0x110] sm:$0xff]
      %v1953 = vld [vmem:[#allocation4 + $0x118] sm:$0xff]
      %v1954 = vld [vmem:[#allocation4 + $0x120] sm:$0xff]
      %v1955 = vld [vmem:[#allocation4 + $0x128] sm:$0xff]
      %v1956 = vld [vmem:[#allocation4 + $0x130] sm:$0xff]
      %v1957 = vld [vmem:[#allocation4 + $0x138] sm:$0xff]
      %v1958 = vld [vmem:[#allocation4 + $0x140] sm:$0xff]
      %v1959 = vld [vmem:[#allocation4 + $0x148] sm:$0xff]
      %v1960 = vld [vmem:[#allocation4 + $0x150] sm:$0xff]
      %v1961 = vld [vmem:[#allocation4 + $0x158] sm:$0xff]
      %v1962 = vld [vmem:[#allocation4 + $0x160] sm:$0xff]
      %v1963 = vld [vmem:[#allocation4 + $0x168] sm:$0xff]
      %v1964 = vld [vmem:[#allocation4 + $0x170] sm:$0xff]
      %v1965 = vld [vmem:[#allocation4 + $0x178] sm:$0xff]
      %v1966 = vld [vmem:[#allocation4 + $0x180] sm:$0xff]
      %v1967 = vld [vmem:[#allocation4 + $0x188] sm:$0xff]
      %v1968 = vld [vmem:[%s7] sm:$0xff]
      %v1969 = vld [vmem:[%s7 + $0x8] sm:$0xff]
      %1971 = vset.pattern.permute.xlu0 0
      %1972 = vperm.xlu0 %1971, %v1968
      %v1973 = vpop.permute.xlu0 %1972
      %1976 = vset.pattern.permute.xlu0 0
      %1977 = vperm.xlu0 %1976, %v1969
      %v1978 = vpop.permute.xlu0 %1977
      %vm1980 = vcmask 588800
      %v1982 = vsel %vm1980, %v1915, 0
      %v1985 = vsel %vm1980, %v1917, 0
      %1987 = vmatprep.subr.mxu0 %v1919
      %1988 = vmatpush1.msra.mxu0 %v1918
      %1989 = vmatprep.subr.mxu0 %v1921
      %1990 = vmatpush1.msra.mxu0 %v1920
      %1991 = vmatprep.subr.mxu0 %v1923
      %1992 = vmatpush1.msra.mxu0 %v1922
      %1993 = vmatprep.subr.mxu0 %v1925
      %1994 = vmatpush1.msra.mxu0 %v1924
      %1995 = vmatprep.subr.mxu0 %v1927
      %1996 = vmatpush1.msra.mxu0 %v1926
      %1997 = vmatprep.subr.mxu0 %v1929
      %1998 = vmatpush1.msra.mxu0 %v1928
      %1999 = vmatprep.subr.mxu0 %v1931
      %2000 = vmatpush1.msra.mxu0 %v1930
      %2001 = vmatprep.subr.mxu0 %v1933
      %2002 = vmatpush1.msra.mxu0 %v1932
      %2003 = vmatprep.subr.mxu0 %v1935
      %2004 = vmatpush1.msra.mxu0 %v1934
      %2005 = vmatprep.subr.mxu0 %v1937
      %2006 = vmatpush1.msra.mxu0 %v1936
      %2007 = vmatprep.subr.mxu0 %v1939
      %2008 = vmatpush1.msra.mxu0 %v1938
      %2009 = vmatprep.subr.mxu0 %v1941
      %2010 = vmatpush1.msra.mxu0 %v1940
      %2011 = vmatprep.subr.mxu0 %v1943
      %2012 = vmatpush1.msra.mxu0 %v1942
      %2013 = vmatprep.subr.mxu0 %v1945
      %2014 = vmatpush1.msra.mxu0 %v1944
      %2015 = vmatprep.subr.mxu0 %v1947
      %2016 = vmatpush1.msra.mxu0 %v1946
      %2017 = vmatprep.subr.mxu0 %v1949
      %2018 = vmatpush1.msra.mxu0 %v1948
      %2019 = vmatprep.subr.mxu0 %v1951
      %2020 = vmatpush1.msra.mxu0 %v1950
      %2021 = vmatprep.subr.mxu0 %v1953
      %2022 = vmatpush1.msra.mxu0 %v1952
      %2023 = vmatprep.subr.mxu0 %v1955
      %2024 = vmatpush1.msra.mxu0 %v1954
      %2025 = vmatprep.subr.mxu0 %v1957
      %2026 = vmatpush1.msra.mxu0 %v1956
      %2027 = vmatprep.subr.mxu0 %v1959
      %2028 = vmatpush1.msra.mxu0 %v1958
      %2029 = vmatprep.subr.mxu0 %v1961
      %2030 = vmatpush1.msra.mxu0 %v1960
      %2031 = vmatprep.subr.mxu0 %v1963
      %2032 = vmatpush1.msra.mxu0 %v1962
      %2033 = vmatprep.subr.mxu0 %v1965
      %2034 = vmatpush1.msra.mxu0 %v1964
      %2035 = vmatprep.subr.mxu0 %v1967
      %2036 = vmatpush1.msra.mxu0 %v1966
      %2037 = vmatprep.subr.mxu0 0.0
      %2038 = vmatpush1.msra.mxu0 0.0
      %2039 = vmatprep.subr.mxu0 0.0
      %2040 = vmatpush1.msra.mxu0 0.0
      %2041 = vmatprep.subr.mxu0 0.0
      %2042 = vmatpush1.msra.mxu0 0.0
      %2043 = vmatprep.subr.mxu0 0.0
      %2044 = vmatpush1.msra.mxu0 0.0
      %2045 = vmatprep.subr.mxu0 0.0
      %2046 = vmatpush1.msra.mxu0 0.0
      %2047 = vmatprep.subr.mxu0 0.0
      %2048 = vmatpush1.msra.mxu0 0.0
      %2049 = vmatprep.subr.mxu0 0.0
      %2050 = vmatpush1.msra.mxu0 0.0
      %2051 = vmatprep.mubr.f32.mxu0 %v1982
      %2052 = vmatmul.mubr.f32.gmra.mrb[0].mxu0 %v1914
      %v2053 = vpop.f32.mrb[0].mxu0
      %v2054 = vadd.f32 %v1973, %v2053
      %v2055 = vpop.f32.mrb[0].mxu0
      %v2056 = vadd.f32 %v1973, %v2055
      %2057 = vmatprep.mubr.f32.mxu0 %v1985
      %2058 = vmatmul.mubr.f32.gmra.mrb[0].mxu0 %v1916
      %v2059 = vpop.f32.mrb[0].mxu0
      %v2060 = vadd.f32 %v1978, %v2059
      %v2061 = vpop.f32.mrb[0].mxu0
      %v2062 = vadd.f32 %v1978, %v2061
      %2063 = vdwg.mxu0
      %v2064 = vmax.f32 %v2054, 0.0
      %v2065 = vmax.f32 %v2056, 0.0
      %v2066 = vmax.f32 %v2060, 0.0
      %v2067 = vmax.f32 %v2062, 0.0
      %v2068 = vpack.c.bf16 %v2066, %v2064
      %v2069 = vpack.c.bf16 %v2067, %v2065
      %v2072 = vunpack.c.l.b16 %v2068
      %v2073 = vunpack.c.l.b16 %v2069
      %v2074 = vunpack.c.h.b16 %v2068
      %v2075 = vunpack.c.h.b16 %v2069
      %v2076 = vpack.c.b16 %v2073, %v2072
      %v2077 = vpack.c.b16 %v2075, %v2074
      %2080 = vst [vmem:[%s359 + $0x30] sm:$0xff] %v2076
      %2081 = vst [vmem:[%s359 + $0x38] sm:$0xff] %v2077
      %2082 = vst [vmem:[#allocation5] sm:$0xff] %v428
      %2083 = vst [vmem:[#allocation5 + $0x8] sm:$0xff] %v429
      %2084 = vst [vmem:[#allocation5 + $0x10] sm:$0xff] %v430
      %2085 = vst [vmem:[#allocation5 + $0x18] sm:$0xff] %v431
      %v2086 = vld [vmem:[%s581] ss:$8 sm:$0x3]
      %vm2087 = vcmp.gt.f32.partialorder %v2086, 0.0
      %v2088 = vsel %vm2087, 1, 0
      %v2089 = vlaneseq
      %v2090 = vshrl.u32 %v2089, 7
      %v2091 = vsub.s32 0, %v2090
      %v2092 = vrot.slane %v2088, %v2091
      %v2093 = vlaneseq
      %v2094 = vshrl.u32 %v2093, 7
      %v2095 = vsub.s32 1, %v2094
      %v2096 = vrot.slane %v2088, %v2095
      %vm2097 = vcmp.eq.s32.totalorder %v2092, 1
      %vm2098 = vcmp.eq.s32.totalorder %v2096, 1
      %vm2099 = vmpackc.low %vm2098, %vm2097
      %v2100 = vsel %vm2099, 65537, 0
      %2101 = vrot.lane.b32.xlu0 %v2100, 127
      %v2102 = vpop.permute.xlu0 %2101
      %v2103 = vrot.slane %v2102, 4
      %vm2104 = vcmask 1039360
      %v2105 = vsel %vm2104, %v2102, %v2103
      %vm2106 = vcmp.ne.s16.totalorder %v2105, 0
      %v2107 = vsel %vm2106, %v364, 4286644096
      %v2108 = vsel %vm2106, %v365, 4286644096
      %v2109 = vsel %vm2106, %v366, 4286644096
      %v2110 = vsel %vm2106, %v367, 4286644096
      %v2111 = vld [vmem:[#allocation5] sm:$0xff]
      %v2112 = vld [vmem:[#allocation5 + $0x8] sm:$0xff]
      %v2113 = vld [vmem:[#allocation5 + $0x10] sm:$0xff]
      %v2114 = vld [vmem:[#allocation5 + $0x18] sm:$0xff]
      %v2119 = vunpack.c.l.b16 %v2107
      %v2120 = vunpack.c.h.b16 %v2107
      %v2121 = vunpack.c.l.b16 %v2108
      %v2122 = vunpack.c.h.b16 %v2108
      %v2123 = vunpack.c.l.b16 %v2109
      %v2124 = vunpack.c.h.b16 %v2109
      %v2125 = vunpack.c.l.b16 %v2110
      %v2126 = vunpack.c.h.b16 %v2110
      %v2127 = vpack.c.b16 %v2121, %v2119
      %v2128 = vpack.c.b16 %v2122, %v2120
      %v2129 = vpack.c.b16 %v2125, %v2123
      %v2130 = vpack.c.b16 %v2126, %v2124
      %2131 = vrot.lane.b32.xlu0 %v2127, 1
      %v2132 = vpop.permute.xlu0 %2131
      %2133 = vrot.lane.b32.xlu0 %v2128, 1
      %v2134 = vpop.permute.xlu0 %2133
      %2135 = vrot.lane.b32.xlu0 %v2129, 1
      %v2136 = vpop.permute.xlu0 %2135
      %2137 = vrot.lane.b32.xlu0 %v2130, 1
      %v2138 = vpop.permute.xlu0 %2137
      %vm2139 = vcmask 7168
      %v2140 = vsel %vm2139, %v2132, %v2134
      %v2141 = vsel %vm2139, %v2136, %v2138
      %v2146 = vmax.bf16 %v2111, %v2132
      %v2147 = vmax.bf16 %v2112, %v2140
      %v2148 = vmax.bf16 %v2113, %v2136
      %v2149 = vmax.bf16 %v2114, %v2141
      %2150 = vst.msk [vmem:[#allocation5] sm:$0xff] %vm752, %v2146
      %2151 = vst [vmem:[#allocation5 + $0x8] sm:$0xff] %v2147
      %2152 = vst.msk [vmem:[#allocation5 + $0x10] sm:$0xff] %vm752, %v2148
      %2153 = vst [vmem:[#allocation5 + $0x18] sm:$0xff] %v2149
      %v2154 = vld [vmem:[%s660] ss:$8 sm:$0x3]
      %vm2155 = vcmp.gt.f32.partialorder %v2154, 0.0
      %v2156 = vsel %vm2155, 1, 0
      %v2157 = vlaneseq
      %v2158 = vshrl.u32 %v2157, 7
      %v2159 = vsub.s32 0, %v2158
      %v2160 = vrot.slane %v2156, %v2159
      %v2161 = vlaneseq
      %v2162 = vshrl.u32 %v2161, 7
      %v2163 = vsub.s32 1, %v2162
      %v2164 = vrot.slane %v2156, %v2163
      %vm2165 = vcmp.eq.s32.totalorder %v2160, 1
      %vm2166 = vcmp.eq.s32.totalorder %v2164, 1
      %vm2167 = vmpackc.low %vm2166, %vm2165
      %v2168 = vsel %vm2167, 65537, 0
      %2169 = vrot.lane.b32.xlu0 %v2168, 1
      %v2170 = vpop.permute.xlu0 %2169
      %v2171 = vrot.slane %v2170, 4
      %v2172 = vsel %vm2139, %v2171, %v2170
      %vm2173 = vcmp.ne.s16.totalorder %v2172, 0
      %v2174 = vsel %vm2173, %v364, 4286644096
      %v2175 = vsel %vm2173, %v365, 4286644096
      %v2176 = vsel %vm2173, %v366, 4286644096
      %v2177 = vsel %vm2173, %v367, 4286644096
      %v2178 = vld [vmem:[#allocation5] sm:$0xff]
      %v2179 = vld [vmem:[#allocation5 + $0x8] sm:$0xff]
      %v2180 = vld [vmem:[#allocation5 + $0x10] sm:$0xff]
      %v2181 = vld [vmem:[#allocation5 + $0x18] sm:$0xff]
      %v2186 = vunpack.c.l.b16 %v2174
      %v2187 = vunpack.c.h.b16 %v2174
      %v2188 = vunpack.c.l.b16 %v2175
      %v2189 = vunpack.c.h.b16 %v2175
      %v2190 = vunpack.c.l.b16 %v2176
      %v2191 = vunpack.c.h.b16 %v2176
      %v2192 = vunpack.c.l.b16 %v2177
      %v2193 = vunpack.c.h.b16 %v2177
      %v2194 = vpack.c.b16 %v2188, %v2186
      %v2195 = vpack.c.b16 %v2189, %v2187
      %v2196 = vpack.c.b16 %v2192, %v2190
      %v2197 = vpack.c.b16 %v2193, %v2191
      %2198 = vrot.lane.b32.xlu0 %v2194, 127
      %v2199 = vpop.permute.xlu0 %2198
      %2200 = vrot.lane.b32.xlu0 %v2195, 127
      %v2201 = vpop.permute.xlu0 %2200
      %2202 = vrot.lane.b32.xlu0 %v2196, 127
      %v2203 = vpop.permute.xlu0 %2202
      %2204 = vrot.lane.b32.xlu0 %v2197, 127
      %v2205 = vpop.permute.xlu0 %2204
      %v2206 = vsel %vm2104, %v2199, %v2201
      %v2207 = vsel %vm2104, %v2203, %v2205
      %v2212 = vmax.bf16 %v2178, %v2206
      %v2213 = vmax.bf16 %v2179, %v2201
      %v2214 = vmax.bf16 %v2180, %v2207
      %v2215 = vmax.bf16 %v2181, %v2205
      %2216 = vst [vmem:[#allocation5] sm:$0xff] %v2212
      %2217 = vst.msk [vmem:[#allocation5 + $0x8] sm:$0xff] %vm725, %v2213
      %2218 = vst [vmem:[#allocation5 + $0x10] sm:$0xff] %v2214
      %2219 = vst.msk [vmem:[#allocation5 + $0x18] sm:$0xff] %vm725, %v2215
      %v2220 = vld [vmem:[#allocation5] sm:$0xff]
      %v2221 = vld [vmem:[#allocation5 + $0x8] sm:$0xff]
      %v2222 = vld [vmem:[#allocation5 + $0x10] sm:$0xff]
      %v2223 = vld [vmem:[#allocation5 + $0x18] sm:$0xff]
      %2228 = vrot.lane.b32.xlu0 %v2220, 16
      %v2229 = vpop.permute.xlu0 %2228
      %2230 = vrot.lane.b32.xlu0 %v2221, 16
      %v2231 = vpop.permute.xlu0 %2230
      %2232 = vrot.lane.b32.xlu0 %v2222, 16
      %v2233 = vpop.permute.xlu0 %2232
      %2234 = vrot.lane.b32.xlu0 %v2223, 16
      %v2235 = vpop.permute.xlu0 %2234
      %vm2236 = vcmask 130048
      %v2237 = vsel %vm2236, %v2229, %v2231
      %v2238 = vsel %vm2236, %v2233, %v2235
      %v2243 = vmax.bf16 %v2220, %v2229
      %v2244 = vmax.bf16 %v2221, %v2237
      %v2245 = vmax.bf16 %v2222, %v2233
      %v2246 = vmax.bf16 %v2223, %v2238
      %2247 = vst.msk [vmem:[#allocation5] sm:$0xff] %vm651, %v2243
      %2248 = vst [vmem:[#allocation5 + $0x8] sm:$0xff] %v2244
      %2249 = vst.msk [vmem:[#allocation5 + $0x10] sm:$0xff] %vm651, %v2245
      %2250 = vst [vmem:[#allocation5 + $0x18] sm:$0xff] %v2246
      %v2251 = vld [vmem:[#allocation5] sm:$0xff]
      %v2252 = vld [vmem:[#allocation5 + $0x8] sm:$0xff]
      %v2253 = vld [vmem:[#allocation5 + $0x10] sm:$0xff]
      %v2254 = vld [vmem:[#allocation5 + $0x18] sm:$0xff]
      %2255 = vrot.lane.b32.xlu0 %v2220, 112
      %v2256 = vpop.permute.xlu0 %2255
      %2257 = vrot.lane.b32.xlu0 %v2221, 112
      %v2258 = vpop.permute.xlu0 %2257
      %2259 = vrot.lane.b32.xlu0 %v2222, 112
      %v2260 = vpop.permute.xlu0 %2259
      %2261 = vrot.lane.b32.xlu0 %v2223, 112
      %v2262 = vpop.permute.xlu0 %2261
      %vm2263 = vcmask 916480
      %v2264 = vsel %vm2263, %v2256, %v2258
      %v2265 = vsel %vm2263, %v2260, %v2262
      %v2270 = vmax.bf16 %v2251, %v2264
      %v2271 = vmax.bf16 %v2252, %v2258
      %v2272 = vmax.bf16 %v2253, %v2265
      %v2273 = vmax.bf16 %v2254, %v2262
      %2274 = vst [vmem:[#allocation5] sm:$0xff] %v2270
      %2275 = vst.msk [vmem:[#allocation5 + $0x8] sm:$0xff] %vm875, %v2271
      %2276 = vst [vmem:[#allocation5 + $0x10] sm:$0xff] %v2272
      %2277 = vst.msk [vmem:[#allocation5 + $0x18] sm:$0xff] %vm875, %v2273
      %v2278 = vld [vmem:[%s8] sm:$0xf]
      %v2279 = vld [vmem:[%s8 + $0x4] sm:$0xf]
      %v2280 = vld [vmem:[#allocation5] sm:$0xff]
      %v2281 = vld [vmem:[#allocation5 + $0x8] sm:$0xff]
      %v2282 = vld [vmem:[#allocation5 + $0x10] sm:$0xff]
      %v2283 = vld [vmem:[#allocation5 + $0x18] sm:$0xff]
      %v2284 = vld [vmem:[%s9] sm:$0xff]
      %v2285 = vld [vmem:[%s9 + $0x8] sm:$0xff]
      %2287 = vset.pattern.permute.xlu0 0
      %2288 = vperm.xlu0 %2287, %v2284
      %v2289 = vpop.permute.xlu0 %2288
      %2292 = vset.pattern.permute.xlu0 0
      %2293 = vperm.xlu0 %2292, %v2285
      %v2294 = vpop.permute.xlu0 %2293
      %v2298 = vunpack.c.l.b16 %v2278
      %v2299 = vunpack.c.l.b16 %v2279
      %v2300 = vpack.c.b16 %v2299, %v2298
      %v2302 = vsel %vm436, %v2300, 0
      %2304 = vmatprep.subr.bf16.mxu0 %v2281
      %2305 = vmatpush1.bf16.msra.mxu0 %v2280
      %2306 = vmatprep.subr.bf16.mxu0 %v2283
      %2307 = vmatpush1.bf16.msra.mxu0 %v2282
      %2308 = vmatprep.subr.bf16.mxu0 0
      %2309 = vmatpush1.bf16.msra.mxu0 0
      %2310 = vmatprep.subr.bf16.mxu0 0
      %2311 = vmatpush1.bf16.msra.mxu0 0
      %2312 = vmatprep.subr.bf16.mxu0 0
      %2313 = vmatpush1.bf16.msra.mxu0 0
      %2314 = vmatprep.subr.bf16.mxu0 0
      %2315 = vmatpush1.bf16.msra.mxu0 0
      %2316 = vmatprep.subr.bf16.mxu0 0
      %2317 = vmatpush1.bf16.msra.mxu0 0
      %2318 = vmatprep.subr.bf16.mxu0 0
      %2319 = vmatpush1.bf16.msra.mxu0 0
      %2320 = vmatprep.subr.bf16.mxu0 0
      %2321 = vmatpush1.bf16.msra.mxu0 0
      %2322 = vmatprep.subr.bf16.mxu0 0
      %2323 = vmatpush1.bf16.msra.mxu0 0
      %2324 = vmatprep.subr.bf16.mxu0 0
      %2325 = vmatpush1.bf16.msra.mxu0 0
      %2326 = vmatprep.subr.bf16.mxu0 0
      %2327 = vmatpush1.bf16.msra.mxu0 0
      %2328 = vmatprep.subr.bf16.mxu0 0
      %2329 = vmatpush1.bf16.msra.mxu0 0
      %2330 = vmatprep.subr.bf16.mxu0 0
      %2331 = vmatpush1.bf16.msra.mxu0 0
      %2332 = vmatprep.subr.bf16.mxu0 0
      %2333 = vmatpush1.bf16.msra.mxu0 0
      %2334 = vmatprep.subr.bf16.mxu0 0
      %2335 = vmatpush1.bf16.msra.mxu0 0
      %2336 = vmatprep.mubr.bf16.mxu0 0
      %2337 = vmatmul.mubr.bf16.gmra.mrb[0].mxu0 %v2302
      %v2338 = vpop.f32.mrb[0].mxu0
      %v2339 = vadd.f32 %v2289, %v2338
      %v2340 = vpop.f32.mrb[0].mxu0
      %v2341 = vadd.f32 %v2289, %v2340
      %v2342 = vpop.f32.mrb[0].mxu0
      %v2343 = vadd.f32 %v2294, %v2342
      %v2344 = vpop.f32.mrb[0].mxu0
      %v2345 = vadd.f32 %v2294, %v2344
      %2346 = vdwg.mxu0
      %v2347 = vmax.f32 %v2339, 0.0
      %v2348 = vmax.f32 %v2341, 0.0
      %v2349 = vmax.f32 %v2343, 0.0
      %v2350 = vmax.f32 %v2345, 0.0
      %v2351 = vpack.c.bf16 %v2349, %v2347
      %v2352 = vpack.c.bf16 %v2350, %v2348
      %v2355 = vunpack.c.l.b16 %v2351
      %v2356 = vunpack.c.l.b16 %v2352
      %v2357 = vunpack.c.h.b16 %v2351
      %v2358 = vunpack.c.h.b16 %v2352
      %v2359 = vpack.c.b16 %v2356, %v2355
      %v2360 = vpack.c.b16 %v2358, %v2357
      %2363 = vst [vmem:[%s359 + $0x40] sm:$0xff] %v2359
      %2364 = vst [vmem:[%s359 + $0x48] sm:$0xff] %v2360
      %p2365 = scmp.lt.s32.totalorder %s21, 1
      %s2366 = scalar_select %p2365, %s21, 1
      %s2367 = smul.addr %s2366, 20
      %s2368 = smul.addr %s2367, 4
      %s2369 = scalar_lea.vmem %s10, %s2368
      // Predicated region
      $region61: #{inception_block_forward.1} parent=59 // pred_check
        %p2370 = pneg %p254
      $region62: #{inception_block_forward.1} parent=59 // pred_check_branch
        %2372 = sbr.rel (%p2370) target = $region64
      $region63: #{inception_block_forward.1} parent=59 // pred_region
        _
      $region64: #{inception_block_forward.1} parent=59 // pred_fallthru
        _
    $region60: #{inception_block_forward.1} parent=5 // pred_fallthru
      _
    %p2373 = scmp.le.s32.totalorder 2, %s16
    // Predicated region
    $region65: #{inception_block_forward.1} parent=5 // pred_check
      %p2374 = pneg %p2373
    $region66: #{inception_block_forward.1} parent=5 // pred_check_branch
      %2376 = sbr.rel (%p2374) target = $region68
    $region67: #{inception_block_forward.1} parent=5 // pred_region
      %s2377 = ssub.s32 %s16, 2
      // Predicated region
      $region69: #{inception_block_forward.1} parent=67 // pred_check
        %p2378 = pneg %p260
      $region70: #{inception_block_forward.1} parent=67 // pred_check_branch
        %2380 = sbr.rel (%p2378) target = $region72
      $region71: #{inception_block_forward.1} parent=67 // pred_region
        %p2381 = scmp.lt.s32.totalorder %s22, 1
        %s2382 = scalar_select %p2381, %s22, 1
        %s2383 = smul.addr %s2382, 20
        %s2384 = smul.addr %s2383, 4
        %s2385 = scalar_lea.vmem %s10, %s2384
      $region72: #{inception_block_forward.1} parent=67 // pred_fallthru
        _
    $region68: #{inception_block_forward.1} parent=5 // pred_fallthru
      _
  $region6: #{inception_block_forward.1} parent=0 // loop_footer
    %s20 = sadd.s32 1, %s16
  $region7: #{inception_block_forward.1} parent=0 // loop_footer_branch
    %15 = sbr.rel target = $region3
  $region8: #{inception_block_forward.1} parent=0 // loop_exit
    _

</llo_original>
